<compile_context>
chip_gen: v7x
topology: tpu7x:2x2x1
jax: 0.10.0
libtpu: 0.0.40
codegen_flags: <defaults>
</compile_context>

<pallas_src>
import numpy as np
import jax
import jax.numpy as jnp
from jax import lax
from jax.experimental import pallas as pl
from jax.experimental.pallas import tpu as pltpu

LAYER_ID = 0          # layer_id == 0 -> ln0 path is exercised
N_LAYER = 2
EPS = 1e-5            # PyTorch nn.LayerNorm default eps
NB = 8                # batch rows per kernel instance (= sublane count)


# ----------------------------- kernel helpers ------------------------------

def _ln(x, g, b):
    mu = jnp.mean(x, axis=-1, keepdims=True)
    xc = x - mu
    var = jnp.mean(xc * xc, axis=-1, keepdims=True)
    return xc * lax.rsqrt(var + EPS) * g + b


def _dot(a, w):
    # bf16 operands -> native single-pass MXU; f32 accumulation.
    return jnp.dot(a.astype(jnp.bfloat16), w.astype(jnp.bfloat16),
                   preferred_element_type=jnp.float32)


# --------------------------------- kernel ----------------------------------

def block_kernel(x_ref,
                 ln0g, ln0b, ln1g, ln1b, ln2g, ln2b,
                 amk, amv, amr, adecay, afirst,
                 wk, wv, wr, wo,
                 fmk, fmr, fwk, fwv, fwr,
                 o_ref,
                 k_s, v_s):
    T, B, C = x_ref.shape          # time-major tile: (T, NB, C)
    N = T * B
    x = x_ref[...].astype(jnp.float32).reshape(N, C)   # rows ordered (t, b)

    # Token shift: row (t, b) <- row (t-1, b); t == 0 rows <- 0.
    # One roll by a full sublane tile + one shared (N, 1) mask.
    is_t0 = lax.broadcasted_iota(jnp.int32, (N, 1), 0) < B

    def shift(y):
        return jnp.where(is_t0, 0.0, pltpu.roll(y, shift=B, axis=0))

    if LAYER_ID == 0:
        x = _ln(x, ln0g[...], ln0b[...])

    # ---------------- att = Long_Mem(ln1(x)) + x  (RWKV time-mix) -----------
    xn = _ln(x, ln1g[...], ln1b[...])
    xs = shift(xn)
    d = xn - xs
    xk = xs + d * amk[...]
    xv = xs + d * amv[...]
    xr = xs + d * amr[...]

    k = _dot(xk, wk[...])
    v = _dot(xv, wv[...])
    r = jax.nn.sigmoid(_dot(xr, wr[...]))

    k_s[...] = k.reshape(T, B, C)        # free relayout (B == 8 sublanes)
    v_s[...] = v.reshape(T, B, C)

    # Hoisted full-tile broadcasts (avoid per-unrolled-step sublane bcast).
    u = jnp.broadcast_to(afirst[...], (B, C))            # time_first
    w = jnp.broadcast_to(-jnp.exp(adecay[...]), (B, C))  # -exp(time_decay)

    def wkv_body(t, carry):
        a, bb, p = carry                 # (B, C) each -> full (8, C) tiles
        kt = k_s[t]                      # unmasked (8, C) load
        vt = v_s[t]
        ww = u + kt
        q = jnp.maximum(p, ww)
        e1 = jnp.exp(p - q)
        e2 = jnp.exp(ww - q)
        num = e1 * a + e2 * vt
        den = e1 * bb + e2
        v_s[t] = num * pl.reciprocal(den, approx=False)   # overwrite v with wkv
        ww2 = p + w
        q2 = jnp.maximum(ww2, kt)
        e1b = jnp.exp(ww2 - q2)
        e2b = jnp.exp(kt - q2)
        return (e1b * a + e2b * vt, e1b * bb + e2b, q2)

    init = (jnp.zeros((B, C), jnp.float32),
            jnp.zeros((B, C), jnp.float32),
            jnp.full((B, C), -1e38, jnp.float32))
    unroll = next(uf for uf in (8, 4, 2, 1) if T % uf == 0)
    lax.fori_loop(0, T, wkv_body, init, unroll=unroll)

    wkv = v_s[...].reshape(N, C)
    x = x + _dot(r * wkv, wo[...])

    # ---------------- ffn = MatForward(ln2(x)) + x  (channel-mix) -----------
    xn2 = _ln(x, ln2g[...], ln2b[...])
    xs2 = shift(xn2)
    d2 = xn2 - xs2
    xk2 = xs2 + d2 * fmk[...]
    xr2 = xs2 + d2 * fmr[...]

    kf = _dot(xk2, fwk[...])
    kf = jnp.square(jnp.maximum(kf, 0.0))          # relu^2
    kv = _dot(kf, fwv[...])
    rf = jax.nn.sigmoid(_dot(xr2, fwr[...]))
    x = x + rf * kv

    o_ref[...] = x.reshape(T, B, C).astype(o_ref.dtype)


# -------------------------------- wrapper ----------------------------------

PARAM_ORDER = ['ln0_g', 'ln0_b', 'ln1_g', 'ln1_b', 'ln2_g', 'ln2_b',
               'amk', 'amv', 'amr', 'adecay', 'afirst',
               'wk', 'wv', 'wr', 'wo',
               'fmk', 'fmr', 'fwk', 'fwv', 'fwr']
BF16_PARAMS = {'wk', 'wv', 'wr', 'wo', 'fwk', 'fwv', 'fwr'}


def block_forward(x, params):
    B, T, C = x.shape
    H = params['fwk'].shape[1]
    Bp = ((B + NB - 1) // NB) * NB

    # Batch onto the sublane axis: (B, T, C) -> (T, Bp, C).
    xT = jnp.transpose(x, (1, 0, 2))
    if Bp != B:
        xT = jnp.pad(xT, ((0, 0), (0, Bp - B), (0, 0)))

    plist = [params[n].astype(jnp.bfloat16) if n in BF16_PARAMS else params[n]
             for n in PARAM_ORDER]

    in_specs = [pl.BlockSpec((T, NB, C), lambda i: (0, i, 0))]
    for p in plist:
        in_specs.append(pl.BlockSpec(p.shape, lambda i: (0, 0)))

    grid_spec = pltpu.PrefetchScalarGridSpec(
        num_scalar_prefetch=0,
        grid=(Bp // NB,),
        in_specs=in_specs,
        out_specs=pl.BlockSpec((T, NB, C), lambda i: (0, i, 0)),
        scratch_shapes=[pltpu.VMEM((T, NB, C), jnp.float32),
                        pltpu.VMEM((T, NB, C), jnp.float32)],
    )

    flops = 2 * Bp * T * C * (5 * C + 2 * H)
    transcendentals = 6 * Bp * T * C
    bytes_accessed = (2 * Bp * T * C * 4                 # x in + out (f32)
                      + (5 * C * C + 2 * C * H) * 2      # bf16 weights
                      + 13 * C * 4)                      # small vectors

    out = pl.pallas_call(
        block_kernel,
        out_shape=jax.ShapeDtypeStruct((T, Bp, C), x.dtype),
        grid_spec=grid_spec,
        compiler_params=pltpu.CompilerParams(
            dimension_semantics=("parallel",),
            vmem_limit_bytes=32 * 1024 * 1024),
        cost_estimate=pl.CostEstimate(flops=flops,
                                      transcendentals=transcendentals,
                                      bytes_accessed=bytes_accessed),
    )(xT, *plist)

    if Bp != B:
        out = out[:, :B]
    return jnp.transpose(out, (1, 0, 2))


# ------------------------------ pure-JAX ref --------------------------------

def _rdot(a, w):
    # Mirror the kernel's matmul precision (bf16 operands, f32 accumulation).
    return jnp.dot(a.astype(jnp.bfloat16), w.astype(jnp.bfloat16),
                   preferred_element_type=jnp.float32)


def ref_single(xb, p):
    def ln(y, g, b):
        mu = y.mean(-1, keepdims=True)
        var = ((y - mu) ** 2).mean(-1, keepdims=True)
        return (y - mu) / jnp.sqrt(var + EPS) * g + b

    def shift(y):
        return jnp.concatenate([jnp.zeros_like(y[:1]), y[:-1]], axis=0)

    def wkv(k, v, w, u):
        Cc = k.shape[-1]
        def step(carry, kv_t):
            a, b, pp = carry
            kt, vt = kv_t
            ww = u + kt
            q = jnp.maximum(pp, ww)
            e1, e2 = jnp.exp(pp - q), jnp.exp(ww - q)
            out = (e1 * a + e2 * vt) / (e1 * b + e2)
            ww2 = pp + w
            q2 = jnp.maximum(ww2, kt)
            e1b, e2b = jnp.exp(ww2 - q2), jnp.exp(kt - q2)
            return (e1b * a + e2b * vt, e1b * b + e2b, q2), out
        init = (jnp.zeros(Cc), jnp.zeros(Cc), jnp.full((Cc,), -1e38))
        _, outs = lax.scan(step, init, (k, v))
        return outs

    y = xb
    if LAYER_ID == 0:
        y = ln(y, p['ln0_g'][0], p['ln0_b'][0])

    xn = ln(y, p['ln1_g'][0], p['ln1_b'][0])
    xs = shift(xn)
    xk = xn * p['amk'][0] + xs * (1 - p['amk'][0])
    xv = xn * p['amv'][0] + xs * (1 - p['amv'][0])
    xr = xn * p['amr'][0] + xs * (1 - p['amr'][0])
    k = _rdot(xk, p['wk'])
    v = _rdot(xv, p['wv'])
    r = jax.nn.sigmoid(_rdot(xr, p['wr']))
    u = p['afirst'][0]
    w = -jnp.exp(p['adecay'][0])
    att = _rdot(r * wkv(k, v, w, u), p['wo'])
    y = y + att

    xn2 = ln(y, p['ln2_g'][0], p['ln2_b'][0])
    xs2 = shift(xn2)
    xk2 = xn2 * p['fmk'][0] + xs2 * (1 - p['fmk'][0])
    xr2 = xn2 * p['fmr'][0] + xs2 * (1 - p['fmr'][0])
    kf = jnp.square(jnp.maximum(_rdot(xk2, p['fwk']), 0.0))
    kv = _rdot(kf, p['fwv'])
    rf = jax.nn.sigmoid(_rdot(xr2, p['fwr']))
    return y + rf * kv


# ------------------------------ param init ----------------------------------

def init_params(key, C, H):
    ks = jax.random.split(key, 8)
    scale = C ** -0.5
    p = {
        'ln0_g': jnp.ones((1, C), jnp.float32),
        'ln0_b': jnp.zeros((1, C), jnp.float32),
        'ln1_g': jnp.ones((1, C), jnp.float32),
        'ln1_b': jnp.zeros((1, C), jnp.float32),
        'ln2_g': jnp.ones((1, C), jnp.float32),
        'ln2_b': jnp.zeros((1, C), jnp.float32),
        'amk': (jnp.arange(C, dtype=jnp.float32) / C).reshape(1, C),
        'amv': ((jnp.arange(C, dtype=jnp.float32) / C) * 0.5 + 0.25).reshape(1, C),
        'amr': ((jnp.arange(C, dtype=jnp.float32) / C) * 0.5).reshape(1, C),
        'adecay': jnp.linspace(-5.0, 1.0, C, dtype=jnp.float32).reshape(1, C),
        'afirst': (jnp.linspace(-1.0, 1.0, C, dtype=jnp.float32) * 0.5).reshape(1, C),
        'wk': jax.random.normal(ks[0], (C, C), jnp.float32) * scale,
        'wv': jax.random.normal(ks[1], (C, C), jnp.float32) * scale,
        'wr': jax.random.normal(ks[2], (C, C), jnp.float32) * scale,
        'wo': jax.random.normal(ks[3], (C, C), jnp.float32) * scale,
        'fmk': ((jnp.arange(C, dtype=jnp.float32) / C) * 0.7).reshape(1, C),
        'fmr': ((jnp.arange(C, dtype=jnp.float32) / C) * 0.3 + 0.1).reshape(1, C),
        'fwk': jax.random.normal(ks[4], (C, H), jnp.float32) * scale,
        'fwv': jax.random.normal(ks[5], (H, C), jnp.float32) * (H ** -0.5),
        'fwr': jax.random.normal(ks[6], (C, C), jnp.float32) * scale,
    }
    return p


# --------------------------------- main --------------------------------------

if __name__ == "__main__":
    B, T, C = 16, 8, 32         # batch (2 grid tiles of 8), seq, n_embd
    H = 4 * C                   # ffn hidden size

    key = jax.random.PRNGKey(0)
    kx, kp = jax.random.split(key)
    x = jax.random.normal(kx, (B, T, C), jnp.float32)
    params = init_params(kp, C, H)

    out = jax.block_until_ready(block_forward(x, params))
    ref = jax.block_until_ready(jax.vmap(lambda xb: ref_single(xb, params))(x))

    np.testing.assert_allclose(np.asarray(out), np.asarray(ref),
                               rtol=5e-2, atol=5e-2)
    print("KERNEL_OK")
</pallas_src>

<mosaic_0001>
module attributes {stable_mosaic.version = 11 : i64} {
  func.func @block_kernel(%arg0: i32, %arg1: memref<8x8x32xf32, #tpu.memory_space<vmem>>, %arg2: memref<1x32xf32, #tpu.memory_space<vmem>>, %arg3: memref<1x32xf32, #tpu.memory_space<vmem>>, %arg4: memref<1x32xf32, #tpu.memory_space<vmem>>, %arg5: memref<1x32xf32, #tpu.memory_space<vmem>>, %arg6: memref<1x32xf32, #tpu.memory_space<vmem>>, %arg7: memref<1x32xf32, #tpu.memory_space<vmem>>, %arg8: memref<1x32xf32, #tpu.memory_space<vmem>>, %arg9: memref<1x32xf32, #tpu.memory_space<vmem>>, %arg10: memref<1x32xf32, #tpu.memory_space<vmem>>, %arg11: memref<1x32xf32, #tpu.memory_space<vmem>>, %arg12: memref<1x32xf32, #tpu.memory_space<vmem>>, %arg13: memref<32x32xbf16, #tpu.memory_space<vmem>>, %arg14: memref<32x32xbf16, #tpu.memory_space<vmem>>, %arg15: memref<32x32xbf16, #tpu.memory_space<vmem>>, %arg16: memref<32x32xbf16, #tpu.memory_space<vmem>>, %arg17: memref<1x32xf32, #tpu.memory_space<vmem>>, %arg18: memref<1x32xf32, #tpu.memory_space<vmem>>, %arg19: memref<32x128xbf16, #tpu.memory_space<vmem>>, %arg20: memref<128x32xbf16, #tpu.memory_space<vmem>>, %arg21: memref<32x32xbf16, #tpu.memory_space<vmem>>, %arg22: memref<8x8x32xf32, #tpu.memory_space<vmem>>, %arg23: memref<8x8x32xf32, #tpu.memory_space<vmem>>, %arg24: memref<8x8x32xf32, #tpu.memory_space<vmem>>) attributes {dimension_semantics = [#tpu.dimension_semantics<parallel>], iteration_bounds = array<i64: 2>, scalar_prefetch = 0 : i64, scratch_operands = 2 : i64, tpu.core_type = #tpu.core_type<tc>, window_params = [{transform_indices = @transform_0, window_bounds = array<i64: 8, 8, 32>}, {pipeline_mode = #tpu.pipeline_mode<synchronous>, transform_indices = @transform_1, window_bounds = array<i64: 1, 32>}, {pipeline_mode = #tpu.pipeline_mode<synchronous>, transform_indices = @transform_2, window_bounds = array<i64: 1, 32>}, {pipeline_mode = #tpu.pipeline_mode<synchronous>, transform_indices = @transform_3, window_bounds = array<i64: 1, 32>}, {pipeline_mode = #tpu.pipeline_mode<synchronous>, transform_indices = @transform_4, window_bounds = array<i64: 1, 32>}, {pipeline_mode = #tpu.pipeline_mode<synchronous>, transform_indices = @transform_5, window_bounds = array<i64: 1, 32>}, {pipeline_mode = #tpu.pipeline_mode<synchronous>, transform_indices = @transform_6, window_bounds = array<i64: 1, 32>}, {pipeline_mode = #tpu.pipeline_mode<synchronous>, transform_indices = @transform_7, window_bounds = array<i64: 1, 32>}, {pipeline_mode = #tpu.pipeline_mode<synchronous>, transform_indices = @transform_8, window_bounds = array<i64: 1, 32>}, {pipeline_mode = #tpu.pipeline_mode<synchronous>, transform_indices = @transform_9, window_bounds = array<i64: 1, 32>}, {pipeline_mode = #tpu.pipeline_mode<synchronous>, transform_indices = @transform_10, window_bounds = array<i64: 1, 32>}, {pipeline_mode = #tpu.pipeline_mode<synchronous>, transform_indices = @transform_11, window_bounds = array<i64: 1, 32>}, {pipeline_mode = #tpu.pipeline_mode<synchronous>, transform_indices = @transform_12, window_bounds = array<i64: 32, 32>}, {pipeline_mode = #tpu.pipeline_mode<synchronous>, transform_indices = @transform_13, window_bounds = array<i64: 32, 32>}, {pipeline_mode = #tpu.pipeline_mode<synchronous>, transform_indices = @transform_14, window_bounds = array<i64: 32, 32>}, {pipeline_mode = #tpu.pipeline_mode<synchronous>, transform_indices = @transform_15, window_bounds = array<i64: 32, 32>}, {pipeline_mode = #tpu.pipeline_mode<synchronous>, transform_indices = @transform_16, window_bounds = array<i64: 1, 32>}, {pipeline_mode = #tpu.pipeline_mode<synchronous>, transform_indices = @transform_17, window_bounds = array<i64: 1, 32>}, {pipeline_mode = #tpu.pipeline_mode<synchronous>, transform_indices = @transform_18, window_bounds = array<i64: 32, 128>}, {pipeline_mode = #tpu.pipeline_mode<synchronous>, transform_indices = @transform_19, window_bounds = array<i64: 128, 32>}, {pipeline_mode = #tpu.pipeline_mode<synchronous>, transform_indices = @transform_20, window_bounds = array<i64: 32, 32>}, {transform_indices = @transform_21, window_bounds = array<i64: 8, 8, 32>}]} {
    %c0 = arith.constant 0 : index
    %c0_0 = arith.constant 0 : index
    %c0_1 = arith.constant 0 : index
    %0 = vector.load %arg1[%c0, %c0_0, %c0_1] : memref<8x8x32xf32, #tpu.memory_space<vmem>>, vector<8x8x32xf32>
    %1 = vector.shape_cast %0 : vector<8x8x32xf32> to vector<64x32xf32>
    %2 = tpu.iota {dimensions = array<i32: 0>} : vector<64x1xi32>
    %c8_i32 = arith.constant 8 : i32
    %3 = vector.broadcast %c8_i32 : i32 to vector<64x1xi32>
    %4 = arith.cmpi slt, %2, %3 : vector<64x1xi32>
    %c0_2 = arith.constant 0 : index
    %c0_3 = arith.constant 0 : index
    %5 = vector.load %arg2[%c0_2, %c0_3] : memref<1x32xf32, #tpu.memory_space<vmem>>, vector<1x32xf32>
    %c0_4 = arith.constant 0 : index
    %c0_5 = arith.constant 0 : index
    %6 = vector.load %arg3[%c0_4, %c0_5] : memref<1x32xf32, #tpu.memory_space<vmem>>, vector<1x32xf32>
    %cst = arith.constant dense<0.000000e+00> : vector<64xf32>
    %7 = vector.multi_reduction <add>, %1, %cst [1] : vector<64x32xf32> to vector<64xf32>
    %8 = vector.shape_cast %7 : vector<64xf32> to vector<64x1xf32>
    %cst_6 = arith.constant 3.200000e+01 : f32
    %9 = vector.broadcast %cst_6 : f32 to vector<64x1xf32>
    %10 = arith.divf %8, %9 : vector<64x1xf32>
    %11 = vector.broadcast %10 : vector<64x1xf32> to vector<64x32xf32>
    %12 = arith.subf %1, %11 : vector<64x32xf32>
    %13 = arith.mulf %12, %12 : vector<64x32xf32>
    %cst_7 = arith.constant dense<0.000000e+00> : vector<64xf32>
    %14 = vector.multi_reduction <add>, %13, %cst_7 [1] : vector<64x32xf32> to vector<64xf32>
    %15 = vector.shape_cast %14 : vector<64xf32> to vector<64x1xf32>
    %cst_8 = arith.constant 3.200000e+01 : f32
    %16 = vector.broadcast %cst_8 : f32 to vector<64x1xf32>
    %17 = arith.divf %15, %16 : vector<64x1xf32>
    %cst_9 = arith.constant 9.99999974E-6 : f32
    %18 = vector.broadcast %cst_9 : f32 to vector<64x1xf32>
    %19 = arith.addf %17, %18 : vector<64x1xf32>
    %20 = math.rsqrt %19 : vector<64x1xf32>
    %21 = vector.broadcast %20 : vector<64x1xf32> to vector<64x32xf32>
    %22 = arith.mulf %12, %21 : vector<64x32xf32>
    %23 = vector.broadcast %5 : vector<1x32xf32> to vector<64x32xf32>
    %24 = arith.mulf %22, %23 : vector<64x32xf32>
    %25 = vector.broadcast %6 : vector<1x32xf32> to vector<64x32xf32>
    %26 = arith.addf %24, %25 : vector<64x32xf32>
    %c0_10 = arith.constant 0 : index
    %c0_11 = arith.constant 0 : index
    %27 = vector.load %arg4[%c0_10, %c0_11] : memref<1x32xf32, #tpu.memory_space<vmem>>, vector<1x32xf32>
    %c0_12 = arith.constant 0 : index
    %c0_13 = arith.constant 0 : index
    %28 = vector.load %arg5[%c0_12, %c0_13] : memref<1x32xf32, #tpu.memory_space<vmem>>, vector<1x32xf32>
    %cst_14 = arith.constant dense<0.000000e+00> : vector<64xf32>
    %29 = vector.multi_reduction <add>, %26, %cst_14 [1] : vector<64x32xf32> to vector<64xf32>
    %30 = vector.shape_cast %29 : vector<64xf32> to vector<64x1xf32>
    %cst_15 = arith.constant 3.200000e+01 : f32
    %31 = vector.broadcast %cst_15 : f32 to vector<64x1xf32>
    %32 = arith.divf %30, %31 : vector<64x1xf32>
    %33 = vector.broadcast %32 : vector<64x1xf32> to vector<64x32xf32>
    %34 = arith.subf %26, %33 : vector<64x32xf32>
    %35 = arith.mulf %34, %34 : vector<64x32xf32>
    %cst_16 = arith.constant dense<0.000000e+00> : vector<64xf32>
    %36 = vector.multi_reduction <add>, %35, %cst_16 [1] : vector<64x32xf32> to vector<64xf32>
    %37 = vector.shape_cast %36 : vector<64xf32> to vector<64x1xf32>
    %cst_17 = arith.constant 3.200000e+01 : f32
    %38 = vector.broadcast %cst_17 : f32 to vector<64x1xf32>
    %39 = arith.divf %37, %38 : vector<64x1xf32>
    %cst_18 = arith.constant 9.99999974E-6 : f32
    %40 = vector.broadcast %cst_18 : f32 to vector<64x1xf32>
    %41 = arith.addf %39, %40 : vector<64x1xf32>
    %42 = math.rsqrt %41 : vector<64x1xf32>
    %43 = vector.broadcast %42 : vector<64x1xf32> to vector<64x32xf32>
    %44 = arith.mulf %34, %43 : vector<64x32xf32>
    %45 = vector.broadcast %27 : vector<1x32xf32> to vector<64x32xf32>
    %46 = arith.mulf %44, %45 : vector<64x32xf32>
    %47 = vector.broadcast %28 : vector<1x32xf32> to vector<64x32xf32>
    %48 = arith.addf %46, %47 : vector<64x32xf32>
    %c8_i32_19 = arith.constant 8 : i32
    %49 = tpu.dynamic_rotate %48 by %c8_i32_19 dim 0 : vector<64x32xf32>, i32 -> vector<64x32xf32>
    %cst_20 = arith.constant 0.000000e+00 : f32
    %50 = vector.shape_cast %4 : vector<64x1xi1> to vector<64x1xi1>
    %51 = vector.broadcast %50 : vector<64x1xi1> to vector<64x32xi1>
    %52 = vector.broadcast %cst_20 : f32 to vector<64x32xf32>
    %53 = arith.select %51, %52, %49 : vector<64x32xi1>, vector<64x32xf32>
    %54 = arith.subf %48, %53 : vector<64x32xf32>
    %c0_21 = arith.constant 0 : index
    %c0_22 = arith.constant 0 : index
    %55 = vector.load %arg8[%c0_21, %c0_22] : memref<1x32xf32, #tpu.memory_space<vmem>>, vector<1x32xf32>
    %56 = vector.broadcast %55 : vector<1x32xf32> to vector<64x32xf32>
    %57 = arith.mulf %54, %56 : vector<64x32xf32>
    %58 = arith.addf %53, %57 : vector<64x32xf32>
    %c0_23 = arith.constant 0 : index
    %c0_24 = arith.constant 0 : index
    %59 = vector.load %arg9[%c0_23, %c0_24] : memref<1x32xf32, #tpu.memory_space<vmem>>, vector<1x32xf32>
    %60 = vector.broadcast %59 : vector<1x32xf32> to vector<64x32xf32>
    %61 = arith.mulf %54, %60 : vector<64x32xf32>
    %62 = arith.addf %53, %61 : vector<64x32xf32>
    %c0_25 = arith.constant 0 : index
    %c0_26 = arith.constant 0 : index
    %63 = vector.load %arg10[%c0_25, %c0_26] : memref<1x32xf32, #tpu.memory_space<vmem>>, vector<1x32xf32>
    %64 = vector.broadcast %63 : vector<1x32xf32> to vector<64x32xf32>
    %65 = arith.mulf %54, %64 : vector<64x32xf32>
    %66 = arith.addf %53, %65 : vector<64x32xf32>
    %c0_27 = arith.constant 0 : index
    %c0_28 = arith.constant 0 : index
    %67 = vector.load %arg13[%c0_27, %c0_28] : memref<32x32xbf16, #tpu.memory_space<vmem>>, vector<32x32xbf16>
    %68 = arith.truncf %58 : vector<64x32xf32> to vector<64x32xbf16>
    %cst_29 = arith.constant dense<0.000000e+00> : vector<64x32xf32>
    %69 = tpu.matmul %68, %67, %cst_29 {dimension_numbers = #tpu.dot_dimension_numbers<[1], [0], [0], [1], [0, 0, 1, 1], [], []>} : vector<64x32xbf16>, vector<32x32xbf16>, vector<64x32xf32> -> vector<64x32xf32>
    %c0_30 = arith.constant 0 : index
    %c0_31 = arith.constant 0 : index
    %70 = vector.load %arg14[%c0_30, %c0_31] : memref<32x32xbf16, #tpu.memory_space<vmem>>, vector<32x32xbf16>
    %71 = arith.truncf %62 : vector<64x32xf32> to vector<64x32xbf16>
    %cst_32 = arith.constant dense<0.000000e+00> : vector<64x32xf32>
    %72 = tpu.matmul %71, %70, %cst_32 {dimension_numbers = #tpu.dot_dimension_numbers<[1], [0], [0], [1], [0, 0, 1, 1], [], []>} : vector<64x32xbf16>, vector<32x32xbf16>, vector<64x32xf32> -> vector<64x32xf32>
    %c0_33 = arith.constant 0 : index
    %c0_34 = arith.constant 0 : index
    %73 = vector.load %arg15[%c0_33, %c0_34] : memref<32x32xbf16, #tpu.memory_space<vmem>>, vector<32x32xbf16>
    %74 = arith.truncf %66 : vector<64x32xf32> to vector<64x32xbf16>
    %cst_35 = arith.constant dense<0.000000e+00> : vector<64x32xf32>
    %75 = tpu.matmul %74, %73, %cst_35 {dimension_numbers = #tpu.dot_dimension_numbers<[1], [0], [0], [1], [0, 0, 1, 1], [], []>} : vector<64x32xbf16>, vector<32x32xbf16>, vector<64x32xf32> -> vector<64x32xf32>
    %76 = arith.negf %75 : vector<64x32xf32>
    %77 = math.exp %76 : vector<64x32xf32>
    %cst_36 = arith.constant 1.000000e+00 : f32
    %78 = vector.broadcast %cst_36 : f32 to vector<64x32xf32>
    %79 = arith.addf %78, %77 : vector<64x32xf32>
    %80 = arith.divf %78, %79 : vector<64x32xf32>
    %81 = vector.shape_cast %69 : vector<64x32xf32> to vector<8x8x32xf32>
    %c0_37 = arith.constant 0 : index
    %c0_38 = arith.constant 0 : index
    %c0_39 = arith.constant 0 : index
    %82 = vector.load %arg23[%c0_37, %c0_38, %c0_39] : memref<8x8x32xf32, #tpu.memory_space<vmem>>, vector<8x8x32xf32>
    tpu.vector_store %arg23[%c0_37, %c0_38, %c0_39], %81 {strides = array<i32>} : memref<8x8x32xf32, #tpu.memory_space<vmem>>, vector<8x8x32xf32>,
    %83 = vector.shape_cast %72 : vector<64x32xf32> to vector<8x8x32xf32>
    %c0_40 = arith.constant 0 : index
    %c0_41 = arith.constant 0 : index
    %c0_42 = arith.constant 0 : index
    %84 = vector.load %arg24[%c0_40, %c0_41, %c0_42] : memref<8x8x32xf32, #tpu.memory_space<vmem>>, vector<8x8x32xf32>
    tpu.vector_store %arg24[%c0_40, %c0_41, %c0_42], %83 {strides = array<i32>} : memref<8x8x32xf32, #tpu.memory_space<vmem>>, vector<8x8x32xf32>,
    %c0_43 = arith.constant 0 : index
    %c0_44 = arith.constant 0 : index
    %85 = vector.load %arg12[%c0_43, %c0_44] : memref<1x32xf32, #tpu.memory_space<vmem>>, vector<1x32xf32>
    %86 = vector.shape_cast %85 : vector<1x32xf32> to vector<1x32xf32>
    %87 = vector.broadcast %86 : vector<1x32xf32> to vector<8x32xf32>
    %c0_45 = arith.constant 0 : index
    %c0_46 = arith.constant 0 : index
    %88 = vector.load %arg11[%c0_45, %c0_46] : memref<1x32xf32, #tpu.memory_space<vmem>>, vector<1x32xf32>
    %89 = math.exp %88 : vector<1x32xf32>
    %cst_47 = arith.constant 0.000000e+00 : f32
    %90 = vector.broadcast %cst_47 : f32 to vector<1x32xf32>
    %91 = arith.subf %90, %89 : vector<1x32xf32>
    %92 = vector.shape_cast %91 : vector<1x32xf32> to vector<1x32xf32>
    %93 = vector.broadcast %92 : vector<1x32xf32> to vector<8x32xf32>
    %cst_48 = arith.constant 0.000000e+00 : f32
    %94 = vector.broadcast %cst_48 : f32 to vector<8x32xf32>
    %cst_49 = arith.constant 0.000000e+00 : f32
    %95 = vector.broadcast %cst_49 : f32 to vector<8x32xf32>
    %cst_50 = arith.constant -9.99999968E+37 : f32
    %96 = vector.broadcast %cst_50 : f32 to vector<8x32xf32>
    %c0_i32 = arith.constant 0 : i32
    %97 = arith.index_cast %c0_i32 : i32 to index
    %c0_51 = arith.constant 0 : index
    %c0_52 = arith.constant 0 : index
    %98 = vector.load %arg23[%97, %c0_51, %c0_52] : memref<8x8x32xf32, #tpu.memory_space<vmem>>, vector<1x8x32xf32>
    %99 = vector.shape_cast %98 : vector<1x8x32xf32> to vector<8x32xf32>
    %100 = arith.index_cast %c0_i32 : i32 to index
    %c0_53 = arith.constant 0 : index
    %c0_54 = arith.constant 0 : index
    %101 = vector.load %arg24[%100, %c0_53, %c0_54] : memref<8x8x32xf32, #tpu.memory_space<vmem>>, vector<1x8x32xf32>
    %102 = vector.shape_cast %101 : vector<1x8x32xf32> to vector<8x32xf32>
    %103 = arith.addf %87, %99 : vector<8x32xf32>
    %104 = arith.maximumf %96, %103 : vector<8x32xf32>
    %105 = arith.subf %96, %104 : vector<8x32xf32>
    %106 = math.exp %105 : vector<8x32xf32>
    %107 = arith.subf %103, %104 : vector<8x32xf32>
    %108 = math.exp %107 : vector<8x32xf32>
    %109 = arith.mulf %106, %94 : vector<8x32xf32>
    %110 = arith.mulf %108, %102 : vector<8x32xf32>
    %111 = arith.addf %109, %110 : vector<8x32xf32>
    %112 = arith.mulf %106, %95 : vector<8x32xf32>
    %113 = arith.addf %112, %108 : vector<8x32xf32>
    %114 = tpu.reciprocal %113 : vector<8x32xf32> -> vector<8x32xf32>
    %115 = arith.mulf %111, %114 : vector<8x32xf32>
    %116 = arith.index_cast %c0_i32 : i32 to index
    %c0_55 = arith.constant 0 : index
    %c0_56 = arith.constant 0 : index
    %117 = vector.load %arg24[%116, %c0_55, %c0_56] : memref<8x8x32xf32, #tpu.memory_space<vmem>>, vector<1x8x32xf32>
    %118 = vector.shape_cast %117 : vector<1x8x32xf32> to vector<8x32xf32>
    %119 = vector.shape_cast %115 : vector<8x32xf32> to vector<1x8x32xf32>
    tpu.vector_store %arg24[%116, %c0_55, %c0_56], %119 {strides = array<i32>} : memref<8x8x32xf32, #tpu.memory_space<vmem>>, vector<1x8x32xf32>,
    %120 = arith.addf %96, %93 : vector<8x32xf32>
    %121 = arith.maximumf %120, %99 : vector<8x32xf32>
    %122 = arith.subf %120, %121 : vector<8x32xf32>
    %123 = math.exp %122 : vector<8x32xf32>
    %124 = arith.subf %99, %121 : vector<8x32xf32>
    %125 = math.exp %124 : vector<8x32xf32>
    %126 = arith.mulf %123, %94 : vector<8x32xf32>
    %127 = arith.mulf %125, %102 : vector<8x32xf32>
    %128 = arith.addf %126, %127 : vector<8x32xf32>
    %129 = arith.mulf %123, %95 : vector<8x32xf32>
    %130 = arith.addf %129, %125 : vector<8x32xf32>
    %c1_i32 = arith.constant 1 : i32
    %131 = arith.index_cast %c1_i32 : i32 to index
    %c0_57 = arith.constant 0 : index
    %c0_58 = arith.constant 0 : index
    %132 = vector.load %arg23[%131, %c0_57, %c0_58] : memref<8x8x32xf32, #tpu.memory_space<vmem>>, vector<1x8x32xf32>
    %133 = vector.shape_cast %132 : vector<1x8x32xf32> to vector<8x32xf32>
    %134 = arith.index_cast %c1_i32 : i32 to index
    %c0_59 = arith.constant 0 : index
    %c0_60 = arith.constant 0 : index
    %135 = vector.load %arg24[%134, %c0_59, %c0_60] : memref<8x8x32xf32, #tpu.memory_space<vmem>>, vector<1x8x32xf32>
    %136 = vector.shape_cast %135 : vector<1x8x32xf32> to vector<8x32xf32>
    %137 = arith.addf %87, %133 : vector<8x32xf32>
    %138 = arith.maximumf %121, %137 : vector<8x32xf32>
    %139 = arith.subf %121, %138 : vector<8x32xf32>
    %140 = math.exp %139 : vector<8x32xf32>
    %141 = arith.subf %137, %138 : vector<8x32xf32>
    %142 = math.exp %141 : vector<8x32xf32>
    %143 = arith.mulf %140, %128 : vector<8x32xf32>
    %144 = arith.mulf %142, %136 : vector<8x32xf32>
    %145 = arith.addf %143, %144 : vector<8x32xf32>
    %146 = arith.mulf %140, %130 : vector<8x32xf32>
    %147 = arith.addf %146, %142 : vector<8x32xf32>
    %148 = tpu.reciprocal %147 : vector<8x32xf32> -> vector<8x32xf32>
    %149 = arith.mulf %145, %148 : vector<8x32xf32>
    %150 = arith.index_cast %c1_i32 : i32 to index
    %c0_61 = arith.constant 0 : index
    %c0_62 = arith.constant 0 : index
    %151 = vector.load %arg24[%150, %c0_61, %c0_62] : memref<8x8x32xf32, #tpu.memory_space<vmem>>, vector<1x8x32xf32>
    %152 = vector.shape_cast %151 : vector<1x8x32xf32> to vector<8x32xf32>
    %153 = vector.shape_cast %149 : vector<8x32xf32> to vector<1x8x32xf32>
    tpu.vector_store %arg24[%150, %c0_61, %c0_62], %153 {strides = array<i32>} : memref<8x8x32xf32, #tpu.memory_space<vmem>>, vector<1x8x32xf32>,
    %154 = arith.addf %121, %93 : vector<8x32xf32>
    %155 = arith.maximumf %154, %133 : vector<8x32xf32>
    %156 = arith.subf %154, %155 : vector<8x32xf32>
    %157 = math.exp %156 : vector<8x32xf32>
    %158 = arith.subf %133, %155 : vector<8x32xf32>
    %159 = math.exp %158 : vector<8x32xf32>
    %160 = arith.mulf %157, %128 : vector<8x32xf32>
    %161 = arith.mulf %159, %136 : vector<8x32xf32>
    %162 = arith.addf %160, %161 : vector<8x32xf32>
    %163 = arith.mulf %157, %130 : vector<8x32xf32>
    %164 = arith.addf %163, %159 : vector<8x32xf32>
    %c2_i32 = arith.constant 2 : i32
    %165 = arith.index_cast %c2_i32 : i32 to index
    %c0_63 = arith.constant 0 : index
    %c0_64 = arith.constant 0 : index
    %166 = vector.load %arg23[%165, %c0_63, %c0_64] : memref<8x8x32xf32, #tpu.memory_space<vmem>>, vector<1x8x32xf32>
    %167 = vector.shape_cast %166 : vector<1x8x32xf32> to vector<8x32xf32>
    %168 = arith.index_cast %c2_i32 : i32 to index
    %c0_65 = arith.constant 0 : index
    %c0_66 = arith.constant 0 : index
    %169 = vector.load %arg24[%168, %c0_65, %c0_66] : memref<8x8x32xf32, #tpu.memory_space<vmem>>, vector<1x8x32xf32>
    %170 = vector.shape_cast %169 : vector<1x8x32xf32> to vector<8x32xf32>
    %171 = arith.addf %87, %167 : vector<8x32xf32>
    %172 = arith.maximumf %155, %171 : vector<8x32xf32>
    %173 = arith.subf %155, %172 : vector<8x32xf32>
    %174 = math.exp %173 : vector<8x32xf32>
    %175 = arith.subf %171, %172 : vector<8x32xf32>
    %176 = math.exp %175 : vector<8x32xf32>
    %177 = arith.mulf %174, %162 : vector<8x32xf32>
    %178 = arith.mulf %176, %170 : vector<8x32xf32>
    %179 = arith.addf %177, %178 : vector<8x32xf32>
    %180 = arith.mulf %174, %164 : vector<8x32xf32>
    %181 = arith.addf %180, %176 : vector<8x32xf32>
    %182 = tpu.reciprocal %181 : vector<8x32xf32> -> vector<8x32xf32>
    %183 = arith.mulf %179, %182 : vector<8x32xf32>
    %184 = arith.index_cast %c2_i32 : i32 to index
    %c0_67 = arith.constant 0 : index
    %c0_68 = arith.constant 0 : index
    %185 = vector.load %arg24[%184, %c0_67, %c0_68] : memref<8x8x32xf32, #tpu.memory_space<vmem>>, vector<1x8x32xf32>
    %186 = vector.shape_cast %185 : vector<1x8x32xf32> to vector<8x32xf32>
    %187 = vector.shape_cast %183 : vector<8x32xf32> to vector<1x8x32xf32>
    tpu.vector_store %arg24[%184, %c0_67, %c0_68], %187 {strides = array<i32>} : memref<8x8x32xf32, #tpu.memory_space<vmem>>, vector<1x8x32xf32>,
    %188 = arith.addf %155, %93 : vector<8x32xf32>
    %189 = arith.maximumf %188, %167 : vector<8x32xf32>
    %190 = arith.subf %188, %189 : vector<8x32xf32>
    %191 = math.exp %190 : vector<8x32xf32>
    %192 = arith.subf %167, %189 : vector<8x32xf32>
    %193 = math.exp %192 : vector<8x32xf32>
    %194 = arith.mulf %191, %162 : vector<8x32xf32>
    %195 = arith.mulf %193, %170 : vector<8x32xf32>
    %196 = arith.addf %194, %195 : vector<8x32xf32>
    %197 = arith.mulf %191, %164 : vector<8x32xf32>
    %198 = arith.addf %197, %193 : vector<8x32xf32>
    %c3_i32 = arith.constant 3 : i32
    %199 = arith.index_cast %c3_i32 : i32 to index
    %c0_69 = arith.constant 0 : index
    %c0_70 = arith.constant 0 : index
    %200 = vector.load %arg23[%199, %c0_69, %c0_70] : memref<8x8x32xf32, #tpu.memory_space<vmem>>, vector<1x8x32xf32>
    %201 = vector.shape_cast %200 : vector<1x8x32xf32> to vector<8x32xf32>
    %202 = arith.index_cast %c3_i32 : i32 to index
    %c0_71 = arith.constant 0 : index
    %c0_72 = arith.constant 0 : index
    %203 = vector.load %arg24[%202, %c0_71, %c0_72] : memref<8x8x32xf32, #tpu.memory_space<vmem>>, vector<1x8x32xf32>
    %204 = vector.shape_cast %203 : vector<1x8x32xf32> to vector<8x32xf32>
    %205 = arith.addf %87, %201 : vector<8x32xf32>
    %206 = arith.maximumf %189, %205 : vector<8x32xf32>
    %207 = arith.subf %189, %206 : vector<8x32xf32>
    %208 = math.exp %207 : vector<8x32xf32>
    %209 = arith.subf %205, %206 : vector<8x32xf32>
    %210 = math.exp %209 : vector<8x32xf32>
    %211 = arith.mulf %208, %196 : vector<8x32xf32>
    %212 = arith.mulf %210, %204 : vector<8x32xf32>
    %213 = arith.addf %211, %212 : vector<8x32xf32>
    %214 = arith.mulf %208, %198 : vector<8x32xf32>
    %215 = arith.addf %214, %210 : vector<8x32xf32>
    %216 = tpu.reciprocal %215 : vector<8x32xf32> -> vector<8x32xf32>
    %217 = arith.mulf %213, %216 : vector<8x32xf32>
    %218 = arith.index_cast %c3_i32 : i32 to index
    %c0_73 = arith.constant 0 : index
    %c0_74 = arith.constant 0 : index
    %219 = vector.load %arg24[%218, %c0_73, %c0_74] : memref<8x8x32xf32, #tpu.memory_space<vmem>>, vector<1x8x32xf32>
    %220 = vector.shape_cast %219 : vector<1x8x32xf32> to vector<8x32xf32>
    %221 = vector.shape_cast %217 : vector<8x32xf32> to vector<1x8x32xf32>
    tpu.vector_store %arg24[%218, %c0_73, %c0_74], %221 {strides = array<i32>} : memref<8x8x32xf32, #tpu.memory_space<vmem>>, vector<1x8x32xf32>,
    %222 = arith.addf %189, %93 : vector<8x32xf32>
    %223 = arith.maximumf %222, %201 : vector<8x32xf32>
    %224 = arith.subf %222, %223 : vector<8x32xf32>
    %225 = math.exp %224 : vector<8x32xf32>
    %226 = arith.subf %201, %223 : vector<8x32xf32>
    %227 = math.exp %226 : vector<8x32xf32>
    %228 = arith.mulf %225, %196 : vector<8x32xf32>
    %229 = arith.mulf %227, %204 : vector<8x32xf32>
    %230 = arith.addf %228, %229 : vector<8x32xf32>
    %231 = arith.mulf %225, %198 : vector<8x32xf32>
    %232 = arith.addf %231, %227 : vector<8x32xf32>
    %c4_i32 = arith.constant 4 : i32
    %233 = arith.index_cast %c4_i32 : i32 to index
    %c0_75 = arith.constant 0 : index
    %c0_76 = arith.constant 0 : index
    %234 = vector.load %arg23[%233, %c0_75, %c0_76] : memref<8x8x32xf32, #tpu.memory_space<vmem>>, vector<1x8x32xf32>
    %235 = vector.shape_cast %234 : vector<1x8x32xf32> to vector<8x32xf32>
    %236 = arith.index_cast %c4_i32 : i32 to index
    %c0_77 = arith.constant 0 : index
    %c0_78 = arith.constant 0 : index
    %237 = vector.load %arg24[%236, %c0_77, %c0_78] : memref<8x8x32xf32, #tpu.memory_space<vmem>>, vector<1x8x32xf32>
    %238 = vector.shape_cast %237 : vector<1x8x32xf32> to vector<8x32xf32>
    %239 = arith.addf %87, %235 : vector<8x32xf32>
    %240 = arith.maximumf %223, %239 : vector<8x32xf32>
    %241 = arith.subf %223, %240 : vector<8x32xf32>
    %242 = math.exp %241 : vector<8x32xf32>
    %243 = arith.subf %239, %240 : vector<8x32xf32>
    %244 = math.exp %243 : vector<8x32xf32>
    %245 = arith.mulf %242, %230 : vector<8x32xf32>
    %246 = arith.mulf %244, %238 : vector<8x32xf32>
    %247 = arith.addf %245, %246 : vector<8x32xf32>
    %248 = arith.mulf %242, %232 : vector<8x32xf32>
    %249 = arith.addf %248, %244 : vector<8x32xf32>
    %250 = tpu.reciprocal %249 : vector<8x32xf32> -> vector<8x32xf32>
    %251 = arith.mulf %247, %250 : vector<8x32xf32>
    %252 = arith.index_cast %c4_i32 : i32 to index
    %c0_79 = arith.constant 0 : index
    %c0_80 = arith.constant 0 : index
    %253 = vector.load %arg24[%252, %c0_79, %c0_80] : memref<8x8x32xf32, #tpu.memory_space<vmem>>, vector<1x8x32xf32>
    %254 = vector.shape_cast %253 : vector<1x8x32xf32> to vector<8x32xf32>
    %255 = vector.shape_cast %251 : vector<8x32xf32> to vector<1x8x32xf32>
    tpu.vector_store %arg24[%252, %c0_79, %c0_80], %255 {strides = array<i32>} : memref<8x8x32xf32, #tpu.memory_space<vmem>>, vector<1x8x32xf32>,
    %256 = arith.addf %223, %93 : vector<8x32xf32>
    %257 = arith.maximumf %256, %235 : vector<8x32xf32>
    %258 = arith.subf %256, %257 : vector<8x32xf32>
    %259 = math.exp %258 : vector<8x32xf32>
    %260 = arith.subf %235, %257 : vector<8x32xf32>
    %261 = math.exp %260 : vector<8x32xf32>
    %262 = arith.mulf %259, %230 : vector<8x32xf32>
    %263 = arith.mulf %261, %238 : vector<8x32xf32>
    %264 = arith.addf %262, %263 : vector<8x32xf32>
    %265 = arith.mulf %259, %232 : vector<8x32xf32>
    %266 = arith.addf %265, %261 : vector<8x32xf32>
    %c5_i32 = arith.constant 5 : i32
    %267 = arith.index_cast %c5_i32 : i32 to index
    %c0_81 = arith.constant 0 : index
    %c0_82 = arith.constant 0 : index
    %268 = vector.load %arg23[%267, %c0_81, %c0_82] : memref<8x8x32xf32, #tpu.memory_space<vmem>>, vector<1x8x32xf32>
    %269 = vector.shape_cast %268 : vector<1x8x32xf32> to vector<8x32xf32>
    %270 = arith.index_cast %c5_i32 : i32 to index
    %c0_83 = arith.constant 0 : index
    %c0_84 = arith.constant 0 : index
    %271 = vector.load %arg24[%270, %c0_83, %c0_84] : memref<8x8x32xf32, #tpu.memory_space<vmem>>, vector<1x8x32xf32>
    %272 = vector.shape_cast %271 : vector<1x8x32xf32> to vector<8x32xf32>
    %273 = arith.addf %87, %269 : vector<8x32xf32>
    %274 = arith.maximumf %257, %273 : vector<8x32xf32>
    %275 = arith.subf %257, %274 : vector<8x32xf32>
    %276 = math.exp %275 : vector<8x32xf32>
    %277 = arith.subf %273, %274 : vector<8x32xf32>
    %278 = math.exp %277 : vector<8x32xf32>
    %279 = arith.mulf %276, %264 : vector<8x32xf32>
    %280 = arith.mulf %278, %272 : vector<8x32xf32>
    %281 = arith.addf %279, %280 : vector<8x32xf32>
    %282 = arith.mulf %276, %266 : vector<8x32xf32>
    %283 = arith.addf %282, %278 : vector<8x32xf32>
    %284 = tpu.reciprocal %283 : vector<8x32xf32> -> vector<8x32xf32>
    %285 = arith.mulf %281, %284 : vector<8x32xf32>
    %286 = arith.index_cast %c5_i32 : i32 to index
    %c0_85 = arith.constant 0 : index
    %c0_86 = arith.constant 0 : index
    %287 = vector.load %arg24[%286, %c0_85, %c0_86] : memref<8x8x32xf32, #tpu.memory_space<vmem>>, vector<1x8x32xf32>
    %288 = vector.shape_cast %287 : vector<1x8x32xf32> to vector<8x32xf32>
    %289 = vector.shape_cast %285 : vector<8x32xf32> to vector<1x8x32xf32>
    tpu.vector_store %arg24[%286, %c0_85, %c0_86], %289 {strides = array<i32>} : memref<8x8x32xf32, #tpu.memory_space<vmem>>, vector<1x8x32xf32>,
    %290 = arith.addf %257, %93 : vector<8x32xf32>
    %291 = arith.maximumf %290, %269 : vector<8x32xf32>
    %292 = arith.subf %290, %291 : vector<8x32xf32>
    %293 = math.exp %292 : vector<8x32xf32>
    %294 = arith.subf %269, %291 : vector<8x32xf32>
    %295 = math.exp %294 : vector<8x32xf32>
    %296 = arith.mulf %293, %264 : vector<8x32xf32>
    %297 = arith.mulf %295, %272 : vector<8x32xf32>
    %298 = arith.addf %296, %297 : vector<8x32xf32>
    %299 = arith.mulf %293, %266 : vector<8x32xf32>
    %300 = arith.addf %299, %295 : vector<8x32xf32>
    %c6_i32 = arith.constant 6 : i32
    %301 = arith.index_cast %c6_i32 : i32 to index
    %c0_87 = arith.constant 0 : index
    %c0_88 = arith.constant 0 : index
    %302 = vector.load %arg23[%301, %c0_87, %c0_88] : memref<8x8x32xf32, #tpu.memory_space<vmem>>, vector<1x8x32xf32>
    %303 = vector.shape_cast %302 : vector<1x8x32xf32> to vector<8x32xf32>
    %304 = arith.index_cast %c6_i32 : i32 to index
    %c0_89 = arith.constant 0 : index
    %c0_90 = arith.constant 0 : index
    %305 = vector.load %arg24[%304, %c0_89, %c0_90] : memref<8x8x32xf32, #tpu.memory_space<vmem>>, vector<1x8x32xf32>
    %306 = vector.shape_cast %305 : vector<1x8x32xf32> to vector<8x32xf32>
    %307 = arith.addf %87, %303 : vector<8x32xf32>
    %308 = arith.maximumf %291, %307 : vector<8x32xf32>
    %309 = arith.subf %291, %308 : vector<8x32xf32>
    %310 = math.exp %309 : vector<8x32xf32>
    %311 = arith.subf %307, %308 : vector<8x32xf32>
    %312 = math.exp %311 : vector<8x32xf32>
    %313 = arith.mulf %310, %298 : vector<8x32xf32>
    %314 = arith.mulf %312, %306 : vector<8x32xf32>
    %315 = arith.addf %313, %314 : vector<8x32xf32>
    %316 = arith.mulf %310, %300 : vector<8x32xf32>
    %317 = arith.addf %316, %312 : vector<8x32xf32>
    %318 = tpu.reciprocal %317 : vector<8x32xf32> -> vector<8x32xf32>
    %319 = arith.mulf %315, %318 : vector<8x32xf32>
    %320 = arith.index_cast %c6_i32 : i32 to index
    %c0_91 = arith.constant 0 : index
    %c0_92 = arith.constant 0 : index
    %321 = vector.load %arg24[%320, %c0_91, %c0_92] : memref<8x8x32xf32, #tpu.memory_space<vmem>>, vector<1x8x32xf32>
    %322 = vector.shape_cast %321 : vector<1x8x32xf32> to vector<8x32xf32>
    %323 = vector.shape_cast %319 : vector<8x32xf32> to vector<1x8x32xf32>
    tpu.vector_store %arg24[%320, %c0_91, %c0_92], %323 {strides = array<i32>} : memref<8x8x32xf32, #tpu.memory_space<vmem>>, vector<1x8x32xf32>,
    %324 = arith.addf %291, %93 : vector<8x32xf32>
    %325 = arith.maximumf %324, %303 : vector<8x32xf32>
    %326 = arith.subf %324, %325 : vector<8x32xf32>
    %327 = math.exp %326 : vector<8x32xf32>
    %328 = arith.subf %303, %325 : vector<8x32xf32>
    %329 = math.exp %328 : vector<8x32xf32>
    %330 = arith.mulf %327, %298 : vector<8x32xf32>
    %331 = arith.mulf %329, %306 : vector<8x32xf32>
    %332 = arith.addf %330, %331 : vector<8x32xf32>
    %333 = arith.mulf %327, %300 : vector<8x32xf32>
    %334 = arith.addf %333, %329 : vector<8x32xf32>
    %c7_i32 = arith.constant 7 : i32
    %335 = arith.index_cast %c7_i32 : i32 to index
    %c0_93 = arith.constant 0 : index
    %c0_94 = arith.constant 0 : index
    %336 = vector.load %arg23[%335, %c0_93, %c0_94] : memref<8x8x32xf32, #tpu.memory_space<vmem>>, vector<1x8x32xf32>
    %337 = vector.shape_cast %336 : vector<1x8x32xf32> to vector<8x32xf32>
    %338 = arith.index_cast %c7_i32 : i32 to index
    %c0_95 = arith.constant 0 : index
    %c0_96 = arith.constant 0 : index
    %339 = vector.load %arg24[%338, %c0_95, %c0_96] : memref<8x8x32xf32, #tpu.memory_space<vmem>>, vector<1x8x32xf32>
    %340 = vector.shape_cast %339 : vector<1x8x32xf32> to vector<8x32xf32>
    %341 = arith.addf %87, %337 : vector<8x32xf32>
    %342 = arith.maximumf %325, %341 : vector<8x32xf32>
    %343 = arith.subf %325, %342 : vector<8x32xf32>
    %344 = math.exp %343 : vector<8x32xf32>
    %345 = arith.subf %341, %342 : vector<8x32xf32>
    %346 = math.exp %345 : vector<8x32xf32>
    %347 = arith.mulf %344, %332 : vector<8x32xf32>
    %348 = arith.mulf %346, %340 : vector<8x32xf32>
    %349 = arith.addf %347, %348 : vector<8x32xf32>
    %350 = arith.mulf %344, %334 : vector<8x32xf32>
    %351 = arith.addf %350, %346 : vector<8x32xf32>
    %352 = tpu.reciprocal %351 : vector<8x32xf32> -> vector<8x32xf32>
    %353 = arith.mulf %349, %352 : vector<8x32xf32>
    %354 = arith.index_cast %c7_i32 : i32 to index
    %c0_97 = arith.constant 0 : index
    %c0_98 = arith.constant 0 : index
    %355 = vector.load %arg24[%354, %c0_97, %c0_98] : memref<8x8x32xf32, #tpu.memory_space<vmem>>, vector<1x8x32xf32>
    %356 = vector.shape_cast %355 : vector<1x8x32xf32> to vector<8x32xf32>
    %357 = vector.shape_cast %353 : vector<8x32xf32> to vector<1x8x32xf32>
    tpu.vector_store %arg24[%354, %c0_97, %c0_98], %357 {strides = array<i32>} : memref<8x8x32xf32, #tpu.memory_space<vmem>>, vector<1x8x32xf32>,
    %358 = arith.addf %325, %93 : vector<8x32xf32>
    %359 = arith.maximumf %358, %337 : vector<8x32xf32>
    %360 = arith.subf %358, %359 : vector<8x32xf32>
    %361 = math.exp %360 : vector<8x32xf32>
    %362 = arith.subf %337, %359 : vector<8x32xf32>
    %363 = math.exp %362 : vector<8x32xf32>
    %364 = arith.mulf %361, %332 : vector<8x32xf32>
    %365 = arith.mulf %363, %340 : vector<8x32xf32>
    %366 = arith.addf %364, %365 : vector<8x32xf32>
    %367 = arith.mulf %361, %334 : vector<8x32xf32>
    %368 = arith.addf %367, %363 : vector<8x32xf32>
    %c8_i32_99 = arith.constant 8 : i32
    %c0_100 = arith.constant 0 : index
    %c0_101 = arith.constant 0 : index
    %c0_102 = arith.constant 0 : index
    %369 = vector.load %arg24[%c0_100, %c0_101, %c0_102] : memref<8x8x32xf32, #tpu.memory_space<vmem>>, vector<8x8x32xf32>
    %370 = vector.shape_cast %369 : vector<8x8x32xf32> to vector<64x32xf32>
    %371 = arith.mulf %80, %370 : vector<64x32xf32>
    %c0_103 = arith.constant 0 : index
    %c0_104 = arith.constant 0 : index
    %372 = vector.load %arg16[%c0_103, %c0_104] : memref<32x32xbf16, #tpu.memory_space<vmem>>, vector<32x32xbf16>
    %373 = arith.truncf %371 : vector<64x32xf32> to vector<64x32xbf16>
    %cst_105 = arith.constant dense<0.000000e+00> : vector<64x32xf32>
    %374 = tpu.matmul %373, %372, %cst_105 {dimension_numbers = #tpu.dot_dimension_numbers<[1], [0], [0], [1], [0, 0, 1, 1], [], []>} : vector<64x32xbf16>, vector<32x32xbf16>, vector<64x32xf32> -> vector<64x32xf32>
    %375 = arith.addf %26, %374 : vector<64x32xf32>
    %c0_106 = arith.constant 0 : index
    %c0_107 = arith.constant 0 : index
    %376 = vector.load %arg6[%c0_106, %c0_107] : memref<1x32xf32, #tpu.memory_space<vmem>>, vector<1x32xf32>
    %c0_108 = arith.constant 0 : index
    %c0_109 = arith.constant 0 : index
    %377 = vector.load %arg7[%c0_108, %c0_109] : memref<1x32xf32, #tpu.memory_space<vmem>>, vector<1x32xf32>
    %cst_110 = arith.constant dense<0.000000e+00> : vector<64xf32>
    %378 = vector.multi_reduction <add>, %375, %cst_110 [1] : vector<64x32xf32> to vector<64xf32>
    %379 = vector.shape_cast %378 : vector<64xf32> to vector<64x1xf32>
    %cst_111 = arith.constant 3.200000e+01 : f32
    %380 = vector.broadcast %cst_111 : f32 to vector<64x1xf32>
    %381 = arith.divf %379, %380 : vector<64x1xf32>
    %382 = vector.broadcast %381 : vector<64x1xf32> to vector<64x32xf32>
    %383 = arith.subf %375, %382 : vector<64x32xf32>
    %384 = arith.mulf %383, %383 : vector<64x32xf32>
    %cst_112 = arith.constant dense<0.000000e+00> : vector<64xf32>
    %385 = vector.multi_reduction <add>, %384, %cst_112 [1] : vector<64x32xf32> to vector<64xf32>
    %386 = vector.shape_cast %385 : vector<64xf32> to vector<64x1xf32>
    %cst_113 = arith.constant 3.200000e+01 : f32
    %387 = vector.broadcast %cst_113 : f32 to vector<64x1xf32>
    %388 = arith.divf %386, %387 : vector<64x1xf32>
    %cst_114 = arith.constant 9.99999974E-6 : f32
    %389 = vector.broadcast %cst_114 : f32 to vector<64x1xf32>
    %390 = arith.addf %388, %389 : vector<64x1xf32>
    %391 = math.rsqrt %390 : vector<64x1xf32>
    %392 = vector.broadcast %391 : vector<64x1xf32> to vector<64x32xf32>
    %393 = arith.mulf %383, %392 : vector<64x32xf32>
    %394 = vector.broadcast %376 : vector<1x32xf32> to vector<64x32xf32>
    %395 = arith.mulf %393, %394 : vector<64x32xf32>
    %396 = vector.broadcast %377 : vector<1x32xf32> to vector<64x32xf32>
    %397 = arith.addf %395, %396 : vector<64x32xf32>
    %c8_i32_115 = arith.constant 8 : i32
    %398 = tpu.dynamic_rotate %397 by %c8_i32_115 dim 0 : vector<64x32xf32>, i32 -> vector<64x32xf32>
    %cst_116 = arith.constant 0.000000e+00 : f32
    %399 = vector.shape_cast %4 : vector<64x1xi1> to vector<64x1xi1>
    %400 = vector.broadcast %399 : vector<64x1xi1> to vector<64x32xi1>
    %401 = vector.broadcast %cst_116 : f32 to vector<64x32xf32>
    %402 = arith.select %400, %401, %398 : vector<64x32xi1>, vector<64x32xf32>
    %403 = arith.subf %397, %402 : vector<64x32xf32>
    %c0_117 = arith.constant 0 : index
    %c0_118 = arith.constant 0 : index
    %404 = vector.load %arg17[%c0_117, %c0_118] : memref<1x32xf32, #tpu.memory_space<vmem>>, vector<1x32xf32>
    %405 = vector.broadcast %404 : vector<1x32xf32> to vector<64x32xf32>
    %406 = arith.mulf %403, %405 : vector<64x32xf32>
    %407 = arith.addf %402, %406 : vector<64x32xf32>
    %c0_119 = arith.constant 0 : index
    %c0_120 = arith.constant 0 : index
    %408 = vector.load %arg18[%c0_119, %c0_120] : memref<1x32xf32, #tpu.memory_space<vmem>>, vector<1x32xf32>
    %409 = vector.broadcast %408 : vector<1x32xf32> to vector<64x32xf32>
    %410 = arith.mulf %403, %409 : vector<64x32xf32>
    %411 = arith.addf %402, %410 : vector<64x32xf32>
    %c0_121 = arith.constant 0 : index
    %c0_122 = arith.constant 0 : index
    %412 = vector.load %arg19[%c0_121, %c0_122] : memref<32x128xbf16, #tpu.memory_space<vmem>>, vector<32x128xbf16>
    %413 = arith.truncf %407 : vector<64x32xf32> to vector<64x32xbf16>
    %cst_123 = arith.constant dense<0.000000e+00> : vector<64x128xf32>
    %414 = tpu.matmul %413, %412, %cst_123 {dimension_numbers = #tpu.dot_dimension_numbers<[1], [0], [0], [1], [0, 0, 1, 1], [], []>} : vector<64x32xbf16>, vector<32x128xbf16>, vector<64x128xf32> -> vector<64x128xf32>
    %cst_124 = arith.constant 0.000000e+00 : f32
    %415 = vector.broadcast %cst_124 : f32 to vector<64x128xf32>
    %416 = arith.maximumf %414, %415 : vector<64x128xf32>
    %417 = arith.mulf %416, %416 : vector<64x128xf32>
    %c0_125 = arith.constant 0 : index
    %c0_126 = arith.constant 0 : index
    %418 = vector.load %arg20[%c0_125, %c0_126] : memref<128x32xbf16, #tpu.memory_space<vmem>>, vector<128x32xbf16>
    %419 = arith.truncf %417 : vector<64x128xf32> to vector<64x128xbf16>
    %cst_127 = arith.constant dense<0.000000e+00> : vector<64x32xf32>
    %420 = tpu.matmul %419, %418, %cst_127 {dimension_numbers = #tpu.dot_dimension_numbers<[1], [0], [0], [1], [0, 0, 1, 1], [], []>} : vector<64x128xbf16>, vector<128x32xbf16>, vector<64x32xf32> -> vector<64x32xf32>
    %c0_128 = arith.constant 0 : index
    %c0_129 = arith.constant 0 : index
    %421 = vector.load %arg21[%c0_128, %c0_129] : memref<32x32xbf16, #tpu.memory_space<vmem>>, vector<32x32xbf16>
    %422 = arith.truncf %411 : vector<64x32xf32> to vector<64x32xbf16>
    %cst_130 = arith.constant dense<0.000000e+00> : vector<64x32xf32>
    %423 = tpu.matmul %422, %421, %cst_130 {dimension_numbers = #tpu.dot_dimension_numbers<[1], [0], [0], [1], [0, 0, 1, 1], [], []>} : vector<64x32xbf16>, vector<32x32xbf16>, vector<64x32xf32> -> vector<64x32xf32>
    %424 = arith.negf %423 : vector<64x32xf32>
    %425 = math.exp %424 : vector<64x32xf32>
    %cst_131 = arith.constant 1.000000e+00 : f32
    %426 = vector.broadcast %cst_131 : f32 to vector<64x32xf32>
    %427 = arith.addf %426, %425 : vector<64x32xf32>
    %428 = arith.divf %426, %427 : vector<64x32xf32>
    %429 = arith.mulf %428, %420 : vector<64x32xf32>
    %430 = arith.addf %375, %429 : vector<64x32xf32>
    %431 = vector.shape_cast %430 : vector<64x32xf32> to vector<8x8x32xf32>
    %c0_132 = arith.constant 0 : index
    %c0_133 = arith.constant 0 : index
    %c0_134 = arith.constant 0 : index
    %432 = vector.load %arg22[%c0_132, %c0_133, %c0_134] : memref<8x8x32xf32, #tpu.memory_space<vmem>>, vector<8x8x32xf32>
    tpu.vector_store %arg22[%c0_132, %c0_133, %c0_134], %431 {strides = array<i32>} : memref<8x8x32xf32, #tpu.memory_space<vmem>>, vector<8x8x32xf32>,
    return
  }
  func.func @transform_0(%arg0: i32) -> (i32, i32, i32) {
    %c0_i32 = arith.constant 0 : i32
    %c0_i32_0 = arith.constant 0 : i32
    %c0_i32_1 = arith.constant 0 : i32
    return %c0_i32, %arg0, %c0_i32_0 : i32, i32, i32
  }
  func.func @transform_1(%arg0: i32) -> (i32, i32) {
    %c0_i32 = arith.constant 0 : i32
    %c0_i32_0 = arith.constant 0 : i32
    %c0_i32_1 = arith.constant 0 : i32
    return %c0_i32, %c0_i32_0 : i32, i32
  }
  func.func @transform_2(%arg0: i32) -> (i32, i32) {
    %c0_i32 = arith.constant 0 : i32
    %c0_i32_0 = arith.constant 0 : i32
    %c0_i32_1 = arith.constant 0 : i32
    return %c0_i32, %c0_i32_0 : i32, i32
  }
  func.func @transform_3(%arg0: i32) -> (i32, i32) {
    %c0_i32 = arith.constant 0 : i32
    %c0_i32_0 = arith.constant 0 : i32
    %c0_i32_1 = arith.constant 0 : i32
    return %c0_i32, %c0_i32_0 : i32, i32
  }
  func.func @transform_4(%arg0: i32) -> (i32, i32) {
    %c0_i32 = arith.constant 0 : i32
    %c0_i32_0 = arith.constant 0 : i32
    %c0_i32_1 = arith.constant 0 : i32
    return %c0_i32, %c0_i32_0 : i32, i32
  }
  func.func @transform_5(%arg0: i32) -> (i32, i32) {
    %c0_i32 = arith.constant 0 : i32
    %c0_i32_0 = arith.constant 0 : i32
    %c0_i32_1 = arith.constant 0 : i32
    return %c0_i32, %c0_i32_0 : i32, i32
  }
  func.func @transform_6(%arg0: i32) -> (i32, i32) {
    %c0_i32 = arith.constant 0 : i32
    %c0_i32_0 = arith.constant 0 : i32
    %c0_i32_1 = arith.constant 0 : i32
    return %c0_i32, %c0_i32_0 : i32, i32
  }
  func.func @transform_7(%arg0: i32) -> (i32, i32) {
    %c0_i32 = arith.constant 0 : i32
    %c0_i32_0 = arith.constant 0 : i32
    %c0_i32_1 = arith.constant 0 : i32
    return %c0_i32, %c0_i32_0 : i32, i32
  }
  func.func @transform_8(%arg0: i32) -> (i32, i32) {
    %c0_i32 = arith.constant 0 : i32
    %c0_i32_0 = arith.constant 0 : i32
    %c0_i32_1 = arith.constant 0 : i32
    return %c0_i32, %c0_i32_0 : i32, i32
  }
  func.func @transform_9(%arg0: i32) -> (i32, i32) {
    %c0_i32 = arith.constant 0 : i32
    %c0_i32_0 = arith.constant 0 : i32
    %c0_i32_1 = arith.constant 0 : i32
    return %c0_i32, %c0_i32_0 : i32, i32
  }
  func.func @transform_10(%arg0: i32) -> (i32, i32) {
    %c0_i32 = arith.constant 0 : i32
    %c0_i32_0 = arith.constant 0 : i32
    %c0_i32_1 = arith.constant 0 : i32
    return %c0_i32, %c0_i32_0 : i32, i32
  }
  func.func @transform_11(%arg0: i32) -> (i32, i32) {
    %c0_i32 = arith.constant 0 : i32
    %c0_i32_0 = arith.constant 0 : i32
    %c0_i32_1 = arith.constant 0 : i32
    return %c0_i32, %c0_i32_0 : i32, i32
  }
  func.func @transform_12(%arg0: i32) -> (i32, i32) {
    %c0_i32 = arith.constant 0 : i32
    %c0_i32_0 = arith.constant 0 : i32
    %c0_i32_1 = arith.constant 0 : i32
    return %c0_i32, %c0_i32_0 : i32, i32
  }
  func.func @transform_13(%arg0: i32) -> (i32, i32) {
    %c0_i32 = arith.constant 0 : i32
    %c0_i32_0 = arith.constant 0 : i32
    %c0_i32_1 = arith.constant 0 : i32
    return %c0_i32, %c0_i32_0 : i32, i32
  }
  func.func @transform_14(%arg0: i32) -> (i32, i32) {
    %c0_i32 = arith.constant 0 : i32
    %c0_i32_0 = arith.constant 0 : i32
    %c0_i32_1 = arith.constant 0 : i32
    return %c0_i32, %c0_i32_0 : i32, i32
  }
  func.func @transform_15(%arg0: i32) -> (i32, i32) {
    %c0_i32 = arith.constant 0 : i32
    %c0_i32_0 = arith.constant 0 : i32
    %c0_i32_1 = arith.constant 0 : i32
    return %c0_i32, %c0_i32_0 : i32, i32
  }
  func.func @transform_16(%arg0: i32) -> (i32, i32) {
    %c0_i32 = arith.constant 0 : i32
    %c0_i32_0 = arith.constant 0 : i32
    %c0_i32_1 = arith.constant 0 : i32
    return %c0_i32, %c0_i32_0 : i32, i32
  }
  func.func @transform_17(%arg0: i32) -> (i32, i32) {
    %c0_i32 = arith.constant 0 : i32
    %c0_i32_0 = arith.constant 0 : i32
    %c0_i32_1 = arith.constant 0 : i32
    return %c0_i32, %c0_i32_0 : i32, i32
  }
  func.func @transform_18(%arg0: i32) -> (i32, i32) {
    %c0_i32 = arith.constant 0 : i32
    %c0_i32_0 = arith.constant 0 : i32
    %c0_i32_1 = arith.constant 0 : i32
    return %c0_i32, %c0_i32_0 : i32, i32
  }
  func.func @transform_19(%arg0: i32) -> (i32, i32) {
    %c0_i32 = arith.constant 0 : i32
    %c0_i32_0 = arith.constant 0 : i32
    %c0_i32_1 = arith.constant 0 : i32
    return %c0_i32, %c0_i32_0 : i32, i32
  }
  func.func @transform_20(%arg0: i32) -> (i32, i32) {
    %c0_i32 = arith.constant 0 : i32
    %c0_i32_0 = arith.constant 0 : i32
    %c0_i32_1 = arith.constant 0 : i32
    return %c0_i32, %c0_i32_0 : i32, i32
  }
  func.func @transform_21(%arg0: i32) -> (i32, i32, i32) {
    %c0_i32 = arith.constant 0 : i32
    %c0_i32_0 = arith.constant 0 : i32
    %c0_i32_1 = arith.constant 0 : i32
    return %c0_i32, %arg0, %c0_i32_0 : i32, i32, i32
  }
}

</mosaic_0001>

<llo_original>
// kernel: tpu_custom_call.1
$region0: #{tpu_custom_call.1}
  #allocation0 [shape = 'u32[]', space=smem, size = 0x4, offset = 0x4, fixed_abs, tag = 'smem constant byte address 0x4 - core index']
  #allocation1 [shape = 'u32[144,128]{1,0:T(1,128)}', space=vmem, size = 0x12000, scoped, tag = 'internal scratch']
  #allocation2 [shape = 'f32[8,8,32]{2,1,0:T(8,128)}', space=vmem, size = 0x8000, scoped, tag = 'scratch operand']
  #allocation3 [shape = 'f32[8,8,32]{2,1,0:T(8,128)}', space=vmem, size = 0x8000, scoped, tag = 'scratch operand']
  %s0 = inlined_call_operand.hbm [shape: f32[8,16,32], index: 0, kind: input, shape index: {}]
  %s1 = inlined_call_operand.vmem [shape: f32[1,32], index: 1, kind: input, shape index: {}]
  %s2 = inlined_call_operand.vmem [shape: f32[1,32], index: 2, kind: input, shape index: {}]
  %s3 = inlined_call_operand.hbm [shape: f32[1,32], index: 3, kind: input, shape index: {}]
  %s4 = inlined_call_operand.hbm [shape: f32[1,32], index: 4, kind: input, shape index: {}]
  %s5 = inlined_call_operand.hbm [shape: f32[1,32], index: 5, kind: input, shape index: {}]
  %s6 = inlined_call_operand.hbm [shape: f32[1,32], index: 6, kind: input, shape index: {}]
  %s7 = inlined_call_operand.hbm [shape: f32[1,32], index: 7, kind: input, shape index: {}]
  %s8 = inlined_call_operand.hbm [shape: f32[1,32], index: 8, kind: input, shape index: {}]
  %s9 = inlined_call_operand.hbm [shape: f32[1,32], index: 9, kind: input, shape index: {}]
  %s10 = inlined_call_operand.vmem [shape: f32[1,32], index: 10, kind: input, shape index: {}]
  %s11 = inlined_call_operand.vmem [shape: f32[1,32], index: 11, kind: input, shape index: {}]
  %s12 = inlined_call_operand.vmem [shape: bf16[32,32], index: 12, kind: input, shape index: {}]
  %s13 = inlined_call_operand.vmem [shape: bf16[32,32], index: 13, kind: input, shape index: {}]
  %s14 = inlined_call_operand.vmem [shape: bf16[32,32], index: 14, kind: input, shape index: {}]
  %s15 = inlined_call_operand.vmem [shape: bf16[32,32], index: 15, kind: input, shape index: {}]
  %s16 = inlined_call_operand.vmem [shape: f32[1,32], index: 16, kind: input, shape index: {}]
  %s17 = inlined_call_operand.vmem [shape: f32[1,32], index: 17, kind: input, shape index: {}]
  %s18 = inlined_call_operand.vmem [shape: bf16[32,128], index: 18, kind: input, shape index: {}]
  %s19 = inlined_call_operand.vmem [shape: bf16[128,32], index: 19, kind: input, shape index: {}]
  %s20 = inlined_call_operand.vmem [shape: bf16[32,32], index: 20, kind: input, shape index: {}]
  %s21 = inlined_call_operand.hbm [shape: f32[8,16,32], index: 21, kind: output, shape index: {}]
  %s22 = sld [smem:[#allocation0]]
  $region149: #{tpu_custom_call.1} parent=0
    _
  %s24 = ssub.s32 1, %s22
  %s25 = scalar_select 0, %s24, %s22
  $region1: #{tpu_custom_call.1} parent=0
    #allocation4 [shape = 'u8[65536]{0}', space=vmem, size = 0x10000, scoped, tag = 'input window, operand 0']
    #allocation5 [shape = 's32[2]{0}', space=sflag, size = 0x8, scoped, tag = 'scoped memory for tpu_custom_call.1']
    #allocation6 [shape = 's32[2]{0}', space=sflag, size = 0x8, scoped, tag = 'scoped memory for tpu_custom_call.1']
    #allocation7 [shape = 'u8[512]{0}', space=vmem, size = 0x400, scoped, tag = 'input window, operand 3, single buffered']
    #allocation8 [shape = 's32[1]{0}', space=sflag, size = 0x4, scoped, tag = 'scoped memory for tpu_custom_call.1']
    #allocation9 [shape = 'u8[512]{0}', space=vmem, size = 0x400, scoped, tag = 'input window, operand 4, single buffered']
    #allocation10 [shape = 'u8[512]{0}', space=vmem, size = 0x400, scoped, tag = 'input window, operand 5, single buffered']
    #allocation11 [shape = 's32[1]{0}', space=sflag, size = 0x4, scoped, tag = 'scoped memory for tpu_custom_call.1']
    #allocation12 [shape = 'u8[512]{0}', space=vmem, size = 0x400, scoped, tag = 'input window, operand 6, single buffered']
    #allocation13 [shape = 'u8[512]{0}', space=vmem, size = 0x400, scoped, tag = 'input window, operand 7, single buffered']
    #allocation14 [shape = 's32[1]{0}', space=sflag, size = 0x4, scoped, tag = 'scoped memory for tpu_custom_call.1']
    #allocation15 [shape = 'u8[512]{0}', space=vmem, size = 0x400, scoped, tag = 'input window, operand 8, single buffered']
    #allocation16 [shape = 'u8[512]{0}', space=vmem, size = 0x400, scoped, tag = 'input window, operand 9, single buffered']
    #allocation17 [shape = 's32[1]{0}', space=sflag, size = 0x4, scoped, tag = 'scoped memory for tpu_custom_call.1']
    #allocation18 [shape = 'u8[65536]{0}', space=vmem, size = 0x10000, scoped, tag = 'output window, operand 0']
    %26 = vsyncpa [#allocation5], 0
    %s27 = scalar_lea.sflag [#allocation5], 1
    %28 = vsyncpa %s27, 0
    %29 = vsyncpa [#allocation8], 0
    %30 = vsyncpa [#allocation11], 0
    %31 = vsyncpa [#allocation14], 0
    %32 = vsyncpa [#allocation17], 0
    %33 = vsyncpa [#allocation6], 0
    %s34 = scalar_lea.sflag [#allocation6], 1
    %35 = vsyncpa %s34, 0
    loop: start=0, step=1, limit=4
    $region2: #{tpu_custom_call.1} parent=1 // loop_pre_header
      _
    $region3: #{tpu_custom_call.1} parent=1 // loop_header
      %s37 = sphi 0, %s41
      %p38 = scmp.ge.s32.totalorder %s37, 4
      %s47 = sphi 0, %s49
      %s50 = sphi 0, %s47
      %s51 = sphi 0, %s50
      %s67 = sphi 0, %s51
      %s71 = sphi 0, %s71
      %s73 = sphi 0, %s71
      %s74 = sphi 0, %s73
      %s88 = sphi 0, %s74
      %s92 = sphi 0, %s92
      %s94 = sphi 0, %s92
      %s95 = sphi 0, %s94
      %s109 = sphi 0, %s95
      %s113 = sphi 0, %s113
      %s115 = sphi 0, %s113
      %s116 = sphi 0, %s115
      %s130 = sphi 0, %s116
      %s134 = sphi 0, %s134
      %s136 = sphi 0, %s134
      %s137 = sphi 0, %s136
      %s151 = sphi 0, %s137
      %s155 = sphi 0, %s155
      %s157 = sphi 0, %s155
      %s158 = sphi 0, %s157
      %s172 = sphi 0, %s158
      %s176 = sphi 0, %s176
      %s178 = sphi 0, %s176
      %s179 = sphi 0, %s178
      %s193 = sphi 0, %s179
      %s197 = sphi 0, %s197
      %s199 = sphi 0, %s197
      %s200 = sphi 0, %s199
      %s214 = sphi 0, %s200
      %s218 = sphi 0, %s218
      %s220 = sphi 0, %s218
      %s221 = sphi 0, %s220
      %s235 = sphi 0, %s221
      %s239 = sphi 0, %s239
      %s241 = sphi 0, %s239
      %s242 = sphi 0, %s241
      %s256 = sphi 0, %s242
      %s260 = sphi 0, %s260
      %s262 = sphi 0, %s260
      %s263 = sphi 0, %s262
      %s277 = sphi 0, %s263
      %s281 = sphi 0, %s281
      %s283 = sphi 0, %s281
      %s284 = sphi 0, %s283
      %s298 = sphi 0, %s284
      %s302 = sphi 0, %s302
      %s304 = sphi 0, %s302
      %s305 = sphi 0, %s304
      %s319 = sphi 0, %s305
      %s323 = sphi 0, %s323
      %s325 = sphi 0, %s323
      %s326 = sphi 0, %s325
      %s340 = sphi 0, %s326
      %s344 = sphi 0, %s344
      %s346 = sphi 0, %s344
      %s347 = sphi 0, %s346
      %s361 = sphi 0, %s347
      %s365 = sphi 0, %s365
      %s367 = sphi 0, %s365
      %s368 = sphi 0, %s367
      %s382 = sphi 0, %s368
      %s386 = sphi 0, %s386
      %s388 = sphi 0, %s386
      %s389 = sphi 0, %s388
      %s403 = sphi 0, %s389
      %s407 = sphi 0, %s407
      %s409 = sphi 0, %s407
      %s410 = sphi 0, %s409
      %s424 = sphi 0, %s410
      %s428 = sphi 0, %s428
      %s430 = sphi 0, %s428
      %s431 = sphi 0, %s430
      %s445 = sphi 0, %s431
      %s449 = sphi 0, %s449
      %s451 = sphi 0, %s449
      %s452 = sphi 0, %s451
      %s466 = sphi 0, %s452
      %s470 = sphi 0, %s470
      %s472 = sphi 0, %s470
      %s473 = sphi 0, %s472
      %s487 = sphi 0, %s473
      %s493 = sphi 0, %s495
      %s496 = sphi 0, %s493
      %s497 = sphi 0, %s496
      %s513 = sphi 0, %s497
    $region4: #{tpu_custom_call.1} parent=1 // loop_header_branch
      %40 = sbr.rel (%p38) target = $region8
    $region5: #{tpu_custom_call.1} parent=1 // loop_body
      %s42 = ssub.s32 %s37, 1
      %s43 = ssub.s32 %s37, 2
      %s44 = sadd.s32 %s37, 1
      %s45 = ssub.s32 %s37, %s44
      %p46 = scmp.eq.s32.totalorder %s45, 0
      %s48 = sadd.s32 %s47, 1
      %s49 = scalar_select %p46, %s47, %s48
      %p52 = pneg %p46
      %p53 = scmp.eq.s32.totalorder %s37, 1
      %p54 = por %p52, %p53
      %p55 = scmp.ne.s32.totalorder %s47, %s50
      %p56 = scmp.eq.s32.totalorder %s37, 0
      %p57 = por %p55, %p56
      %p58 = scmp.ne.s32.totalorder %s47, %s50
      %p59 = scmp.eq.s32.totalorder %s42, 1
      %p60 = por %p58, %p59
      %p61 = scmp.ne.s32.totalorder %s50, %s51
      %p62 = scmp.eq.s32.totalorder %s42, 0
      %p63 = por %p61, %p62
      %p64 = scmp.ne.s32.totalorder %s50, %s51
      %p65 = scmp.eq.s32.totalorder %s43, 1
      %p66 = por %p64, %p65
      %p68 = scmp.ne.s32.totalorder %s51, %s67
      %p69 = scmp.eq.s32.totalorder %s43, 0
      %p70 = por %p68, %p69
      %s72 = sadd.s32 %s71, 1
      %p75 = scmp.eq.s32.totalorder %s37, 1
      %p76 = scmp.ne.s32.totalorder %s71, %s73
      %p77 = scmp.eq.s32.totalorder %s37, 0
      %p78 = por %p76, %p77
      %p79 = scmp.ne.s32.totalorder %s71, %s73
      %p80 = scmp.eq.s32.totalorder %s42, 1
      %p81 = por %p79, %p80
      %p82 = scmp.ne.s32.totalorder %s73, %s74
      %p83 = scmp.eq.s32.totalorder %s42, 0
      %p84 = por %p82, %p83
      %p85 = scmp.ne.s32.totalorder %s73, %s74
      %p86 = scmp.eq.s32.totalorder %s43, 1
      %p87 = por %p85, %p86
      %p89 = scmp.ne.s32.totalorder %s74, %s88
      %p90 = scmp.eq.s32.totalorder %s43, 0
      %p91 = por %p89, %p90
      %s93 = sadd.s32 %s92, 1
      %p96 = scmp.eq.s32.totalorder %s37, 1
      %p97 = scmp.ne.s32.totalorder %s92, %s94
      %p98 = scmp.eq.s32.totalorder %s37, 0
      %p99 = por %p97, %p98
      %p100 = scmp.ne.s32.totalorder %s92, %s94
      %p101 = scmp.eq.s32.totalorder %s42, 1
      %p102 = por %p100, %p101
      %p103 = scmp.ne.s32.totalorder %s94, %s95
      %p104 = scmp.eq.s32.totalorder %s42, 0
      %p105 = por %p103, %p104
      %p106 = scmp.ne.s32.totalorder %s94, %s95
      %p107 = scmp.eq.s32.totalorder %s43, 1
      %p108 = por %p106, %p107
      %p110 = scmp.ne.s32.totalorder %s95, %s109
      %p111 = scmp.eq.s32.totalorder %s43, 0
      %p112 = por %p110, %p111
      %s114 = sadd.s32 %s113, 1
      %p117 = scmp.eq.s32.totalorder %s37, 1
      %p118 = scmp.ne.s32.totalorder %s113, %s115
      %p119 = scmp.eq.s32.totalorder %s37, 0
      %p120 = por %p118, %p119
      %p121 = scmp.ne.s32.totalorder %s113, %s115
      %p122 = scmp.eq.s32.totalorder %s42, 1
      %p123 = por %p121, %p122
      %p124 = scmp.ne.s32.totalorder %s115, %s116
      %p125 = scmp.eq.s32.totalorder %s42, 0
      %p126 = por %p124, %p125
      %p127 = scmp.ne.s32.totalorder %s115, %s116
      %p128 = scmp.eq.s32.totalorder %s43, 1
      %p129 = por %p127, %p128
      %p131 = scmp.ne.s32.totalorder %s116, %s130
      %p132 = scmp.eq.s32.totalorder %s43, 0
      %p133 = por %p131, %p132
      %s135 = sadd.s32 %s134, 1
      %p138 = scmp.eq.s32.totalorder %s37, 1
      %p139 = scmp.ne.s32.totalorder %s134, %s136
      %p140 = scmp.eq.s32.totalorder %s37, 0
      %p141 = por %p139, %p140
      %p142 = scmp.ne.s32.totalorder %s134, %s136
      %p143 = scmp.eq.s32.totalorder %s42, 1
      %p144 = por %p142, %p143
      %p145 = scmp.ne.s32.totalorder %s136, %s137
      %p146 = scmp.eq.s32.totalorder %s42, 0
      %p147 = por %p145, %p146
      %p148 = scmp.ne.s32.totalorder %s136, %s137
      %p149 = scmp.eq.s32.totalorder %s43, 1
      %p150 = por %p148, %p149
      %p152 = scmp.ne.s32.totalorder %s137, %s151
      %p153 = scmp.eq.s32.totalorder %s43, 0
      %p154 = por %p152, %p153
      %s156 = sadd.s32 %s155, 1
      %p159 = scmp.eq.s32.totalorder %s37, 1
      %p160 = scmp.ne.s32.totalorder %s155, %s157
      %p161 = scmp.eq.s32.totalorder %s37, 0
      %p162 = por %p160, %p161
      %p163 = scmp.ne.s32.totalorder %s155, %s157
      %p164 = scmp.eq.s32.totalorder %s42, 1
      %p165 = por %p163, %p164
      %p166 = scmp.ne.s32.totalorder %s157, %s158
      %p167 = scmp.eq.s32.totalorder %s42, 0
      %p168 = por %p166, %p167
      %p169 = scmp.ne.s32.totalorder %s157, %s158
      %p170 = scmp.eq.s32.totalorder %s43, 1
      %p171 = por %p169, %p170
      %p173 = scmp.ne.s32.totalorder %s158, %s172
      %p174 = scmp.eq.s32.totalorder %s43, 0
      %p175 = por %p173, %p174
      %s177 = sadd.s32 %s176, 1
      %p180 = scmp.eq.s32.totalorder %s37, 1
      %p181 = scmp.ne.s32.totalorder %s176, %s178
      %p182 = scmp.eq.s32.totalorder %s37, 0
      %p183 = por %p181, %p182
      %p184 = scmp.ne.s32.totalorder %s176, %s178
      %p185 = scmp.eq.s32.totalorder %s42, 1
      %p186 = por %p184, %p185
      %p187 = scmp.ne.s32.totalorder %s178, %s179
      %p188 = scmp.eq.s32.totalorder %s42, 0
      %p189 = por %p187, %p188
      %p190 = scmp.ne.s32.totalorder %s178, %s179
      %p191 = scmp.eq.s32.totalorder %s43, 1
      %p192 = por %p190, %p191
      %p194 = scmp.ne.s32.totalorder %s179, %s193
      %p195 = scmp.eq.s32.totalorder %s43, 0
      %p196 = por %p194, %p195
      %s198 = sadd.s32 %s197, 1
      %p201 = scmp.eq.s32.totalorder %s37, 1
      %p202 = scmp.ne.s32.totalorder %s197, %s199
      %p203 = scmp.eq.s32.totalorder %s37, 0
      %p204 = por %p202, %p203
      %p205 = scmp.ne.s32.totalorder %s197, %s199
      %p206 = scmp.eq.s32.totalorder %s42, 1
      %p207 = por %p205, %p206
      %p208 = scmp.ne.s32.totalorder %s199, %s200
      %p209 = scmp.eq.s32.totalorder %s42, 0
      %p210 = por %p208, %p209
      %p211 = scmp.ne.s32.totalorder %s199, %s200
      %p212 = scmp.eq.s32.totalorder %s43, 1
      %p213 = por %p211, %p212
      %p215 = scmp.ne.s32.totalorder %s200, %s214
      %p216 = scmp.eq.s32.totalorder %s43, 0
      %p217 = por %p215, %p216
      %s219 = sadd.s32 %s218, 1
      %p222 = scmp.eq.s32.totalorder %s37, 1
      %p223 = scmp.ne.s32.totalorder %s218, %s220
      %p224 = scmp.eq.s32.totalorder %s37, 0
      %p225 = por %p223, %p224
      %p226 = scmp.ne.s32.totalorder %s218, %s220
      %p227 = scmp.eq.s32.totalorder %s42, 1
      %p228 = por %p226, %p227
      %p229 = scmp.ne.s32.totalorder %s220, %s221
      %p230 = scmp.eq.s32.totalorder %s42, 0
      %p231 = por %p229, %p230
      %p232 = scmp.ne.s32.totalorder %s220, %s221
      %p233 = scmp.eq.s32.totalorder %s43, 1
      %p234 = por %p232, %p233
      %p236 = scmp.ne.s32.totalorder %s221, %s235
      %p237 = scmp.eq.s32.totalorder %s43, 0
      %p238 = por %p236, %p237
      %s240 = sadd.s32 %s239, 1
      %p243 = scmp.eq.s32.totalorder %s37, 1
      %p244 = scmp.ne.s32.totalorder %s239, %s241
      %p245 = scmp.eq.s32.totalorder %s37, 0
      %p246 = por %p244, %p245
      %p247 = scmp.ne.s32.totalorder %s239, %s241
      %p248 = scmp.eq.s32.totalorder %s42, 1
      %p249 = por %p247, %p248
      %p250 = scmp.ne.s32.totalorder %s241, %s242
      %p251 = scmp.eq.s32.totalorder %s42, 0
      %p252 = por %p250, %p251
      %p253 = scmp.ne.s32.totalorder %s241, %s242
      %p254 = scmp.eq.s32.totalorder %s43, 1
      %p255 = por %p253, %p254
      %p257 = scmp.ne.s32.totalorder %s242, %s256
      %p258 = scmp.eq.s32.totalorder %s43, 0
      %p259 = por %p257, %p258
      %s261 = sadd.s32 %s260, 1
      %p264 = scmp.eq.s32.totalorder %s37, 1
      %p265 = scmp.ne.s32.totalorder %s260, %s262
      %p266 = scmp.eq.s32.totalorder %s37, 0
      %p267 = por %p265, %p266
      %p268 = scmp.ne.s32.totalorder %s260, %s262
      %p269 = scmp.eq.s32.totalorder %s42, 1
      %p270 = por %p268, %p269
      %p271 = scmp.ne.s32.totalorder %s262, %s263
      %p272 = scmp.eq.s32.totalorder %s42, 0
      %p273 = por %p271, %p272
      %p274 = scmp.ne.s32.totalorder %s262, %s263
      %p275 = scmp.eq.s32.totalorder %s43, 1
      %p276 = por %p274, %p275
      %p278 = scmp.ne.s32.totalorder %s263, %s277
      %p279 = scmp.eq.s32.totalorder %s43, 0
      %p280 = por %p278, %p279
      %s282 = sadd.s32 %s281, 1
      %p285 = scmp.eq.s32.totalorder %s37, 1
      %p286 = scmp.ne.s32.totalorder %s281, %s283
      %p287 = scmp.eq.s32.totalorder %s37, 0
      %p288 = por %p286, %p287
      %p289 = scmp.ne.s32.totalorder %s281, %s283
      %p290 = scmp.eq.s32.totalorder %s42, 1
      %p291 = por %p289, %p290
      %p292 = scmp.ne.s32.totalorder %s283, %s284
      %p293 = scmp.eq.s32.totalorder %s42, 0
      %p294 = por %p292, %p293
      %p295 = scmp.ne.s32.totalorder %s283, %s284
      %p296 = scmp.eq.s32.totalorder %s43, 1
      %p297 = por %p295, %p296
      %p299 = scmp.ne.s32.totalorder %s284, %s298
      %p300 = scmp.eq.s32.totalorder %s43, 0
      %p301 = por %p299, %p300
      %s303 = sadd.s32 %s302, 1
      %p306 = scmp.eq.s32.totalorder %s37, 1
      %p307 = scmp.ne.s32.totalorder %s302, %s304
      %p308 = scmp.eq.s32.totalorder %s37, 0
      %p309 = por %p307, %p308
      %p310 = scmp.ne.s32.totalorder %s302, %s304
      %p311 = scmp.eq.s32.totalorder %s42, 1
      %p312 = por %p310, %p311
      %p313 = scmp.ne.s32.totalorder %s304, %s305
      %p314 = scmp.eq.s32.totalorder %s42, 0
      %p315 = por %p313, %p314
      %p316 = scmp.ne.s32.totalorder %s304, %s305
      %p317 = scmp.eq.s32.totalorder %s43, 1
      %p318 = por %p316, %p317
      %p320 = scmp.ne.s32.totalorder %s305, %s319
      %p321 = scmp.eq.s32.totalorder %s43, 0
      %p322 = por %p320, %p321
      %s324 = sadd.s32 %s323, 1
      %p327 = scmp.eq.s32.totalorder %s37, 1
      %p328 = scmp.ne.s32.totalorder %s323, %s325
      %p329 = scmp.eq.s32.totalorder %s37, 0
      %p330 = por %p328, %p329
      %p331 = scmp.ne.s32.totalorder %s323, %s325
      %p332 = scmp.eq.s32.totalorder %s42, 1
      %p333 = por %p331, %p332
      %p334 = scmp.ne.s32.totalorder %s325, %s326
      %p335 = scmp.eq.s32.totalorder %s42, 0
      %p336 = por %p334, %p335
      %p337 = scmp.ne.s32.totalorder %s325, %s326
      %p338 = scmp.eq.s32.totalorder %s43, 1
      %p339 = por %p337, %p338
      %p341 = scmp.ne.s32.totalorder %s326, %s340
      %p342 = scmp.eq.s32.totalorder %s43, 0
      %p343 = por %p341, %p342
      %s345 = sadd.s32 %s344, 1
      %p348 = scmp.eq.s32.totalorder %s37, 1
      %p349 = scmp.ne.s32.totalorder %s344, %s346
      %p350 = scmp.eq.s32.totalorder %s37, 0
      %p351 = por %p349, %p350
      %p352 = scmp.ne.s32.totalorder %s344, %s346
      %p353 = scmp.eq.s32.totalorder %s42, 1
      %p354 = por %p352, %p353
      %p355 = scmp.ne.s32.totalorder %s346, %s347
      %p356 = scmp.eq.s32.totalorder %s42, 0
      %p357 = por %p355, %p356
      %p358 = scmp.ne.s32.totalorder %s346, %s347
      %p359 = scmp.eq.s32.totalorder %s43, 1
      %p360 = por %p358, %p359
      %p362 = scmp.ne.s32.totalorder %s347, %s361
      %p363 = scmp.eq.s32.totalorder %s43, 0
      %p364 = por %p362, %p363
      %s366 = sadd.s32 %s365, 1
      %p369 = scmp.eq.s32.totalorder %s37, 1
      %p370 = scmp.ne.s32.totalorder %s365, %s367
      %p371 = scmp.eq.s32.totalorder %s37, 0
      %p372 = por %p370, %p371
      %p373 = scmp.ne.s32.totalorder %s365, %s367
      %p374 = scmp.eq.s32.totalorder %s42, 1
      %p375 = por %p373, %p374
      %p376 = scmp.ne.s32.totalorder %s367, %s368
      %p377 = scmp.eq.s32.totalorder %s42, 0
      %p378 = por %p376, %p377
      %p379 = scmp.ne.s32.totalorder %s367, %s368
      %p380 = scmp.eq.s32.totalorder %s43, 1
      %p381 = por %p379, %p380
      %p383 = scmp.ne.s32.totalorder %s368, %s382
      %p384 = scmp.eq.s32.totalorder %s43, 0
      %p385 = por %p383, %p384
      %s387 = sadd.s32 %s386, 1
      %p390 = scmp.eq.s32.totalorder %s37, 1
      %p391 = scmp.ne.s32.totalorder %s386, %s388
      %p392 = scmp.eq.s32.totalorder %s37, 0
      %p393 = por %p391, %p392
      %p394 = scmp.ne.s32.totalorder %s386, %s388
      %p395 = scmp.eq.s32.totalorder %s42, 1
      %p396 = por %p394, %p395
      %p397 = scmp.ne.s32.totalorder %s388, %s389
      %p398 = scmp.eq.s32.totalorder %s42, 0
      %p399 = por %p397, %p398
      %p400 = scmp.ne.s32.totalorder %s388, %s389
      %p401 = scmp.eq.s32.totalorder %s43, 1
      %p402 = por %p400, %p401
      %p404 = scmp.ne.s32.totalorder %s389, %s403
      %p405 = scmp.eq.s32.totalorder %s43, 0
      %p406 = por %p404, %p405
      %s408 = sadd.s32 %s407, 1
      %p411 = scmp.eq.s32.totalorder %s37, 1
      %p412 = scmp.ne.s32.totalorder %s407, %s409
      %p413 = scmp.eq.s32.totalorder %s37, 0
      %p414 = por %p412, %p413
      %p415 = scmp.ne.s32.totalorder %s407, %s409
      %p416 = scmp.eq.s32.totalorder %s42, 1
      %p417 = por %p415, %p416
      %p418 = scmp.ne.s32.totalorder %s409, %s410
      %p419 = scmp.eq.s32.totalorder %s42, 0
      %p420 = por %p418, %p419
      %p421 = scmp.ne.s32.totalorder %s409, %s410
      %p422 = scmp.eq.s32.totalorder %s43, 1
      %p423 = por %p421, %p422
      %p425 = scmp.ne.s32.totalorder %s410, %s424
      %p426 = scmp.eq.s32.totalorder %s43, 0
      %p427 = por %p425, %p426
      %s429 = sadd.s32 %s428, 1
      %p432 = scmp.eq.s32.totalorder %s37, 1
      %p433 = scmp.ne.s32.totalorder %s428, %s430
      %p434 = scmp.eq.s32.totalorder %s37, 0
      %p435 = por %p433, %p434
      %p436 = scmp.ne.s32.totalorder %s428, %s430
      %p437 = scmp.eq.s32.totalorder %s42, 1
      %p438 = por %p436, %p437
      %p439 = scmp.ne.s32.totalorder %s430, %s431
      %p440 = scmp.eq.s32.totalorder %s42, 0
      %p441 = por %p439, %p440
      %p442 = scmp.ne.s32.totalorder %s430, %s431
      %p443 = scmp.eq.s32.totalorder %s43, 1
      %p444 = por %p442, %p443
      %p446 = scmp.ne.s32.totalorder %s431, %s445
      %p447 = scmp.eq.s32.totalorder %s43, 0
      %p448 = por %p446, %p447
      %s450 = sadd.s32 %s449, 1
      %p453 = scmp.eq.s32.totalorder %s37, 1
      %p454 = scmp.ne.s32.totalorder %s449, %s451
      %p455 = scmp.eq.s32.totalorder %s37, 0
      %p456 = por %p454, %p455
      %p457 = scmp.ne.s32.totalorder %s449, %s451
      %p458 = scmp.eq.s32.totalorder %s42, 1
      %p459 = por %p457, %p458
      %p460 = scmp.ne.s32.totalorder %s451, %s452
      %p461 = scmp.eq.s32.totalorder %s42, 0
      %p462 = por %p460, %p461
      %p463 = scmp.ne.s32.totalorder %s451, %s452
      %p464 = scmp.eq.s32.totalorder %s43, 1
      %p465 = por %p463, %p464
      %p467 = scmp.ne.s32.totalorder %s452, %s466
      %p468 = scmp.eq.s32.totalorder %s43, 0
      %p469 = por %p467, %p468
      %s471 = sadd.s32 %s470, 1
      %p474 = scmp.eq.s32.totalorder %s37, 1
      %p475 = scmp.ne.s32.totalorder %s470, %s472
      %p476 = scmp.eq.s32.totalorder %s37, 0
      %p477 = por %p475, %p476
      %p478 = scmp.ne.s32.totalorder %s470, %s472
      %p479 = scmp.eq.s32.totalorder %s42, 1
      %p480 = por %p478, %p479
      %p481 = scmp.ne.s32.totalorder %s472, %s473
      %p482 = scmp.eq.s32.totalorder %s42, 0
      %p483 = por %p481, %p482
      %p484 = scmp.ne.s32.totalorder %s472, %s473
      %p485 = scmp.eq.s32.totalorder %s43, 1
      %p486 = por %p484, %p485
      %p488 = scmp.ne.s32.totalorder %s473, %s487
      %p489 = scmp.eq.s32.totalorder %s43, 0
      %p490 = por %p488, %p489
      %s491 = ssub.s32 %s37, %s44
      %p492 = scmp.eq.s32.totalorder %s491, 0
      %s494 = sadd.s32 %s493, 1
      %s495 = scalar_select %p492, %s493, %s494
      %p498 = pneg %p492
      %p499 = scmp.eq.s32.totalorder %s37, 1
      %p500 = por %p498, %p499
      %p501 = scmp.ne.s32.totalorder %s493, %s496
      %p502 = scmp.eq.s32.totalorder %s37, 0
      %p503 = por %p501, %p502
      %p504 = scmp.ne.s32.totalorder %s493, %s496
      %p505 = scmp.eq.s32.totalorder %s42, 1
      %p506 = por %p504, %p505
      %p507 = scmp.ne.s32.totalorder %s496, %s497
      %p508 = scmp.eq.s32.totalorder %s42, 0
      %p509 = por %p507, %p508
      %p510 = scmp.ne.s32.totalorder %s496, %s497
      %p511 = scmp.eq.s32.totalorder %s43, 1
      %p512 = por %p510, %p511
      %p514 = scmp.ne.s32.totalorder %s497, %s513
      %p515 = scmp.eq.s32.totalorder %s43, 0
      %p516 = por %p514, %p515
      %p517 = scmp.le.s32.totalorder 1, %s37
      %p518 = scmp.lt.s32.totalorder %s37, 3
      %p519 = pnand %p517, %p518
      %p520 = pneg %p519
      // Predicated region
      $region9: #{tpu_custom_call.1} parent=5 // pred_check
        _
      $region10: #{tpu_custom_call.1} parent=5 // pred_check_branch
        %522 = sbr.rel (%p519) target = $region12
      $region11: #{tpu_custom_call.1} parent=5 // pred_region
        %s523 = ssub.s32 %s37, 1
        // Predicated region
        $region13: #{tpu_custom_call.1} parent=11 // pred_check
          %p524 = pneg %p84
        $region14: #{tpu_custom_call.1} parent=11 // pred_check_branch
          %526 = sbr.rel (%p524) target = $region16
        $region15: #{tpu_custom_call.1} parent=11 // pred_region
          _
        $region16: #{tpu_custom_call.1} parent=11 // pred_fallthru
          _
        // Predicated region
        $region17: #{tpu_custom_call.1} parent=11 // pred_check
          %p527 = pneg %p105
        $region18: #{tpu_custom_call.1} parent=11 // pred_check_branch
          %529 = sbr.rel (%p527) target = $region20
        $region19: #{tpu_custom_call.1} parent=11 // pred_region
          _
        $region20: #{tpu_custom_call.1} parent=11 // pred_fallthru
          _
        // Predicated region
        $region21: #{tpu_custom_call.1} parent=11 // pred_check
          %p530 = pneg %p126
        $region22: #{tpu_custom_call.1} parent=11 // pred_check_branch
          %532 = sbr.rel (%p530) target = $region24
        $region23: #{tpu_custom_call.1} parent=11 // pred_region
          %s534 = ssub.s32 16, 16
          %535 = vsyncadd [#allocation8], %s534
          %s537 = sshll.u32 [#allocation7], 4
          %s538 = int_to_ptr.vmem [resolvable:$true] %s537
          %540 = dma.hbm_to_vmem [thread:$0]  %s3, 16, %s538, [#allocation8]
        $region24: #{tpu_custom_call.1} parent=11 // pred_fallthru
          _
        // Predicated region
        $region25: #{tpu_custom_call.1} parent=11 // pred_check
          %p541 = pneg %p147
        $region26: #{tpu_custom_call.1} parent=11 // pred_check_branch
          %543 = sbr.rel (%p541) target = $region28
        $region27: #{tpu_custom_call.1} parent=11 // pred_region
          %s545 = ssub.s32 16, 16
          %546 = vsyncadd [#allocation8], %s545
          %s548 = sshll.u32 [#allocation9], 4
          %s549 = int_to_ptr.vmem [resolvable:$true] %s548
          %551 = dma.hbm_to_vmem [thread:$0]  %s4, 16, %s549, [#allocation8]
        $region28: #{tpu_custom_call.1} parent=11 // pred_fallthru
          _
        // Predicated region
        $region29: #{tpu_custom_call.1} parent=11 // pred_check
          %p552 = pneg %p168
        $region30: #{tpu_custom_call.1} parent=11 // pred_check_branch
          %554 = sbr.rel (%p552) target = $region32
        $region31: #{tpu_custom_call.1} parent=11 // pred_region
          %s556 = ssub.s32 16, 16
          %557 = vsyncadd [#allocation11], %s556
          %s559 = sshll.u32 [#allocation10], 4
          %s560 = int_to_ptr.vmem [resolvable:$true] %s559
          %562 = dma.hbm_to_vmem [thread:$0]  %s5, 16, %s560, [#allocation11]
        $region32: #{tpu_custom_call.1} parent=11 // pred_fallthru
          _
        // Predicated region
        $region33: #{tpu_custom_call.1} parent=11 // pred_check
          %p563 = pneg %p189
        $region34: #{tpu_custom_call.1} parent=11 // pred_check_branch
          %565 = sbr.rel (%p563) target = $region36
        $region35: #{tpu_custom_call.1} parent=11 // pred_region
          %s567 = ssub.s32 16, 16
          %568 = vsyncadd [#allocation11], %s567
          %s570 = sshll.u32 [#allocation12], 4
          %s571 = int_to_ptr.vmem [resolvable:$true] %s570
          %573 = dma.hbm_to_vmem [thread:$0]  %s6, 16, %s571, [#allocation11]
        $region36: #{tpu_custom_call.1} parent=11 // pred_fallthru
          _
        // Predicated region
        $region37: #{tpu_custom_call.1} parent=11 // pred_check
          %p574 = pneg %p210
        $region38: #{tpu_custom_call.1} parent=11 // pred_check_branch
          %576 = sbr.rel (%p574) target = $region40
        $region39: #{tpu_custom_call.1} parent=11 // pred_region
          %s578 = ssub.s32 16, 16
          %579 = vsyncadd [#allocation14], %s578
          %s581 = sshll.u32 [#allocation13], 4
          %s582 = int_to_ptr.vmem [resolvable:$true] %s581
          %584 = dma.hbm_to_vmem [thread:$0]  %s7, 16, %s582, [#allocation14]
        $region40: #{tpu_custom_call.1} parent=11 // pred_fallthru
          _
        // Predicated region
        $region41: #{tpu_custom_call.1} parent=11 // pred_check
          %p585 = pneg %p231
        $region42: #{tpu_custom_call.1} parent=11 // pred_check_branch
          %587 = sbr.rel (%p585) target = $region44
        $region43: #{tpu_custom_call.1} parent=11 // pred_region
          %s589 = ssub.s32 16, 16
          %590 = vsyncadd [#allocation14], %s589
          %s592 = sshll.u32 [#allocation15], 4
          %s593 = int_to_ptr.vmem [resolvable:$true] %s592
          %595 = dma.hbm_to_vmem [thread:$0]  %s8, 16, %s593, [#allocation14]
        $region44: #{tpu_custom_call.1} parent=11 // pred_fallthru
          _
        // Predicated region
        $region45: #{tpu_custom_call.1} parent=11 // pred_check
          %p596 = pneg %p252
        $region46: #{tpu_custom_call.1} parent=11 // pred_check_branch
          %598 = sbr.rel (%p596) target = $region48
        $region47: #{tpu_custom_call.1} parent=11 // pred_region
          %s600 = ssub.s32 16, 16
          %601 = vsyncadd [#allocation17], %s600
          %s603 = sshll.u32 [#allocation16], 4
          %s604 = int_to_ptr.vmem [resolvable:$true] %s603
          %606 = dma.hbm_to_vmem [thread:$0]  %s9, 16, %s604, [#allocation17]
        $region48: #{tpu_custom_call.1} parent=11 // pred_fallthru
          _
        // Predicated region
        $region49: #{tpu_custom_call.1} parent=11 // pred_check
          %p607 = pneg %p273
        $region50: #{tpu_custom_call.1} parent=11 // pred_check_branch
          %609 = sbr.rel (%p607) target = $region52
        $region51: #{tpu_custom_call.1} parent=11 // pred_region
          _
        $region52: #{tpu_custom_call.1} parent=11 // pred_fallthru
          _
        // Predicated region
        $region53: #{tpu_custom_call.1} parent=11 // pred_check
          %p610 = pneg %p294
        $region54: #{tpu_custom_call.1} parent=11 // pred_check_branch
          %612 = sbr.rel (%p610) target = $region56
        $region55: #{tpu_custom_call.1} parent=11 // pred_region
          _
        $region56: #{tpu_custom_call.1} parent=11 // pred_fallthru
          _
        // Predicated region
        $region57: #{tpu_custom_call.1} parent=11 // pred_check
          %p613 = pneg %p315
        $region58: #{tpu_custom_call.1} parent=11 // pred_check_branch
          %615 = sbr.rel (%p613) target = $region60
        $region59: #{tpu_custom_call.1} parent=11 // pred_region
          _
        $region60: #{tpu_custom_call.1} parent=11 // pred_fallthru
          _
        // Predicated region
        $region61: #{tpu_custom_call.1} parent=11 // pred_check
          %p616 = pneg %p336
        $region62: #{tpu_custom_call.1} parent=11 // pred_check_branch
          %618 = sbr.rel (%p616) target = $region64
        $region63: #{tpu_custom_call.1} parent=11 // pred_region
          _
        $region64: #{tpu_custom_call.1} parent=11 // pred_fallthru
          _
        // Predicated region
        $region65: #{tpu_custom_call.1} parent=11 // pred_check
          %p619 = pneg %p357
        $region66: #{tpu_custom_call.1} parent=11 // pred_check_branch
          %621 = sbr.rel (%p619) target = $region68
        $region67: #{tpu_custom_call.1} parent=11 // pred_region
          _
        $region68: #{tpu_custom_call.1} parent=11 // pred_fallthru
          _
        // Predicated region
        $region69: #{tpu_custom_call.1} parent=11 // pred_check
          %p622 = pneg %p378
        $region70: #{tpu_custom_call.1} parent=11 // pred_check_branch
          %624 = sbr.rel (%p622) target = $region72
        $region71: #{tpu_custom_call.1} parent=11 // pred_region
          _
        $region72: #{tpu_custom_call.1} parent=11 // pred_fallthru
          _
        // Predicated region
        $region73: #{tpu_custom_call.1} parent=11 // pred_check
          %p625 = pneg %p399
        $region74: #{tpu_custom_call.1} parent=11 // pred_check_branch
          %627 = sbr.rel (%p625) target = $region76
        $region75: #{tpu_custom_call.1} parent=11 // pred_region
          _
        $region76: #{tpu_custom_call.1} parent=11 // pred_fallthru
          _
        // Predicated region
        $region77: #{tpu_custom_call.1} parent=11 // pred_check
          %p628 = pneg %p420
        $region78: #{tpu_custom_call.1} parent=11 // pred_check_branch
          %630 = sbr.rel (%p628) target = $region80
        $region79: #{tpu_custom_call.1} parent=11 // pred_region
          _
        $region80: #{tpu_custom_call.1} parent=11 // pred_fallthru
          _
        // Predicated region
        $region81: #{tpu_custom_call.1} parent=11 // pred_check
          %p631 = pneg %p441
        $region82: #{tpu_custom_call.1} parent=11 // pred_check_branch
          %633 = sbr.rel (%p631) target = $region84
        $region83: #{tpu_custom_call.1} parent=11 // pred_region
          _
        $region84: #{tpu_custom_call.1} parent=11 // pred_fallthru
          _
        // Predicated region
        $region85: #{tpu_custom_call.1} parent=11 // pred_check
          %p634 = pneg %p462
        $region86: #{tpu_custom_call.1} parent=11 // pred_check_branch
          %636 = sbr.rel (%p634) target = $region88
        $region87: #{tpu_custom_call.1} parent=11 // pred_region
          _
        $region88: #{tpu_custom_call.1} parent=11 // pred_fallthru
          _
        // Predicated region
        $region89: #{tpu_custom_call.1} parent=11 // pred_check
          %p637 = pneg %p483
        $region90: #{tpu_custom_call.1} parent=11 // pred_check_branch
          %639 = sbr.rel (%p637) target = $region92
        $region91: #{tpu_custom_call.1} parent=11 // pred_region
          _
        $region92: #{tpu_custom_call.1} parent=11 // pred_fallthru
          _
      $region12: #{tpu_custom_call.1} parent=5 // pred_fallthru
        _
      %p640 = scmp.lt.s32.totalorder %s37, 2
      // Predicated region
      $region93: #{tpu_custom_call.1} parent=5 // pred_check
        %p641 = pneg %p640
      $region94: #{tpu_custom_call.1} parent=5 // pred_check_branch
        %643 = sbr.rel (%p641) target = $region96
      $region95: #{tpu_custom_call.1} parent=5 // pred_region
        // Predicated region
        $region97: #{tpu_custom_call.1} parent=95 // pred_check
          %p644 = pneg %p57
        $region98: #{tpu_custom_call.1} parent=95 // pred_check_branch
          %646 = sbr.rel (%p644) target = $region100
        $region99: #{tpu_custom_call.1} parent=95 // pred_region
          %s647 = sand.u32 %s47, 1
          %s648 = scalar_lea.sflag [#allocation5], %s647
          %s649 = sand.u32 %s47, 1
          %s650 = smul.addr %s649, 64
          %s651 = scalar_lea.vmem [#allocation4], %s650
          %s653 = ssub.s32 1024, 1024
          %654 = vsyncadd %s648, %s653
          %s655 = smul.addr %s37, 128
          %s656 = scalar_lea.hbm %s0, %s655
          %s657 = sshll.u32 %s651, 4
          %s658 = int_to_ptr.vmem [resolvable:$true] %s657
          %663 = dma.hbm_to_vmem [thread:$0]  %s656, 1024, %s658, %s648, 256, 128, 8
        $region100: #{tpu_custom_call.1} parent=95 // pred_fallthru
          _
      $region96: #{tpu_custom_call.1} parent=5 // pred_fallthru
        _
      %p664 = scmp.le.s32.totalorder 1, %s37
      %p665 = scmp.lt.s32.totalorder %s37, 3
      %p666 = pnand %p664, %p665
      %p667 = pneg %p666
      // Predicated region
      $region101: #{tpu_custom_call.1} parent=5 // pred_check
        _
      $region102: #{tpu_custom_call.1} parent=5 // pred_check_branch
        %669 = sbr.rel (%p666) target = $region104
      $region103: #{tpu_custom_call.1} parent=5 // pred_region
        %s670 = ssub.s32 %s37, 1
        %s671 = sand.u32 %s50, 1
        %s672 = scalar_lea.sflag [#allocation5], %s671
        %s673 = sand.u32 %s50, 1
        %s674 = smul.addr %s673, 64
        %s675 = scalar_lea.vmem [#allocation4], %s674
        // Predicated region
        $region105: #{tpu_custom_call.1} parent=103 // pred_check
          %p676 = pneg %p63
        $region106: #{tpu_custom_call.1} parent=103 // pred_check_branch
          %678 = sbr.rel (%p676) target = $region108
        $region107: #{tpu_custom_call.1} parent=103 // pred_region
          %679 = dma.done %s672, 1024
        $region108: #{tpu_custom_call.1} parent=103 // pred_fallthru
          _
        // Predicated region
        $region109: #{tpu_custom_call.1} parent=103 // pred_check
          %p680 = pneg %p126
        $region110: #{tpu_custom_call.1} parent=103 // pred_check_branch
          %682 = sbr.rel (%p680) target = $region112
        $region111: #{tpu_custom_call.1} parent=103 // pred_region
          %683 = dma.done [#allocation8], 16
        $region112: #{tpu_custom_call.1} parent=103 // pred_fallthru
          _
        // Predicated region
        $region113: #{tpu_custom_call.1} parent=103 // pred_check
          %p684 = pneg %p147
        $region114: #{tpu_custom_call.1} parent=103 // pred_check_branch
          %686 = sbr.rel (%p684) target = $region116
        $region115: #{tpu_custom_call.1} parent=103 // pred_region
          %687 = dma.done [#allocation8], 16
        $region116: #{tpu_custom_call.1} parent=103 // pred_fallthru
          _
        // Predicated region
        $region117: #{tpu_custom_call.1} parent=103 // pred_check
          %p688 = pneg %p168
        $region118: #{tpu_custom_call.1} parent=103 // pred_check_branch
          %690 = sbr.rel (%p688) target = $region120
        $region119: #{tpu_custom_call.1} parent=103 // pred_region
          %691 = dma.done [#allocation11], 16
        $region120: #{tpu_custom_call.1} parent=103 // pred_fallthru
          _
        // Predicated region
        $region121: #{tpu_custom_call.1} parent=103 // pred_check
          %p692 = pneg %p189
        $region122: #{tpu_custom_call.1} parent=103 // pred_check_branch
          %694 = sbr.rel (%p692) target = $region124
        $region123: #{tpu_custom_call.1} parent=103 // pred_region
          %695 = dma.done [#allocation11], 16
        $region124: #{tpu_custom_call.1} parent=103 // pred_fallthru
          _
        // Predicated region
        $region125: #{tpu_custom_call.1} parent=103 // pred_check
          %p696 = pneg %p210
        $region126: #{tpu_custom_call.1} parent=103 // pred_check_branch
          %698 = sbr.rel (%p696) target = $region128
        $region127: #{tpu_custom_call.1} parent=103 // pred_region
          %699 = dma.done [#allocation14], 16
        $region128: #{tpu_custom_call.1} parent=103 // pred_fallthru
          _
        // Predicated region
        $region129: #{tpu_custom_call.1} parent=103 // pred_check
          %p700 = pneg %p231
        $region130: #{tpu_custom_call.1} parent=103 // pred_check_branch
          %702 = sbr.rel (%p700) target = $region132
        $region131: #{tpu_custom_call.1} parent=103 // pred_region
          %703 = dma.done [#allocation14], 16
        $region132: #{tpu_custom_call.1} parent=103 // pred_fallthru
          _
        // Predicated region
        $region133: #{tpu_custom_call.1} parent=103 // pred_check
          %p704 = pneg %p252
        $region134: #{tpu_custom_call.1} parent=103 // pred_check_branch
          %706 = sbr.rel (%p704) target = $region136
        $region135: #{tpu_custom_call.1} parent=103 // pred_region
          %707 = dma.done [#allocation17], 16
        $region136: #{tpu_custom_call.1} parent=103 // pred_fallthru
          _
        %s708 = sand.u32 %s50, 1
        %s709 = scalar_lea.sflag [#allocation5], %s708
        %s710 = sand.u32 %s50, 1
        %s711 = smul.addr %s710, 64
        %s712 = scalar_lea.vmem [#allocation4], %s711
        %p713 = pneg %p63
        %p714 = pneg %p60
        %p715 = pneg %p84
        %p716 = pneg %p81
        %p717 = pneg %p105
        %p718 = pneg %p102
        %p719 = pneg %p126
        %p720 = pneg %p123
        %p721 = pneg %p147
        %p722 = pneg %p144
        %p723 = pneg %p168
        %p724 = pneg %p165
        %p725 = pneg %p189
        %p726 = pneg %p186
        %p727 = pneg %p210
        %p728 = pneg %p207
        %p729 = pneg %p231
        %p730 = pneg %p228
        %p731 = pneg %p252
        %p732 = pneg %p249
        %p733 = pneg %p273
        %p734 = pneg %p270
        %p735 = pneg %p294
        %p736 = pneg %p291
        %p737 = pneg %p315
        %p738 = pneg %p312
        %p739 = pneg %p336
        %p740 = pneg %p333
        %p741 = pneg %p357
        %p742 = pneg %p354
        %p743 = pneg %p378
        %p744 = pneg %p375
        %p745 = pneg %p399
        %p746 = pneg %p396
        %p747 = pneg %p420
        %p748 = pneg %p417
        %p749 = pneg %p441
        %p750 = pneg %p438
        %p751 = pneg %p462
        %p752 = pneg %p459
        %p753 = pneg %p483
        %p754 = pneg %p480
        %p755 = pneg %p509
        %p756 = pneg %p506
        %s757 = sand.u32 %s496, 1
        %s758 = scalar_lea.sflag [#allocation6], %s757
        %s759 = sand.u32 %s496, 1
        %s760 = smul.addr %s759, 64
        %s761 = scalar_lea.vmem [#allocation18], %s760
        %v763 = vld [vmem:[%s675] sm:$0xff]
        %v764 = vld [vmem:[%s675 + $0x8] sm:$0xff]
        %v765 = vld [vmem:[%s675 + $0x10] sm:$0xff]
        %v766 = vld [vmem:[%s675 + $0x18] sm:$0xff]
        %v767 = vld [vmem:[%s675 + $0x20] sm:$0xff]
        %v768 = vld [vmem:[%s675 + $0x28] sm:$0xff]
        %v769 = vld [vmem:[%s675 + $0x30] sm:$0xff]
        %v770 = vld [vmem:[%s675 + $0x38] sm:$0xff]
        %v771 = vlaneseq
        %v772 = vshrl.u32 %v771, 7
        %v773 = vadd.s32 %v772, 8
        %v774 = vadd.s32 %v772, 16
        %v775 = vadd.s32 %v772, 24
        %v776 = vadd.s32 %v772, 32
        %v777 = vadd.s32 %v772, 40
        %v778 = vadd.s32 %v772, 48
        %v779 = vadd.s32 %v772, 56
        %vm780 = vcmp.lt.s32.totalorder %v772, 8
        %vm781 = vcmp.lt.s32.totalorder %v773, 8
        %vm782 = vcmp.lt.s32.totalorder %v774, 8
        %vm783 = vcmp.lt.s32.totalorder %v775, 8
        %vm784 = vcmp.lt.s32.totalorder %v776, 8
        %vm785 = vcmp.lt.s32.totalorder %v777, 8
        %vm786 = vcmp.lt.s32.totalorder %v778, 8
        %vm787 = vcmp.lt.s32.totalorder %v779, 8
        %v788 = vld [vmem:[%s1] sm:$0x1]
        %v789 = vld [vmem:[%s2] sm:$0x1]
        %vm790 = vcmask 261120
        %v791 = vsel %vm790, %v763, 0.0
        %792 = vadd.xlane.f32.xlu0 %v791
        %v793 = vpop.xlane.xlu0 %792
        %v794 = vsel %vm790, %v764, 0.0
        %795 = vadd.xlane.f32.xlu0 %v794
        %v796 = vpop.xlane.xlu0 %795
        %v797 = vsel %vm790, %v765, 0.0
        %798 = vadd.xlane.f32.xlu0 %v797
        %v799 = vpop.xlane.xlu0 %798
        %v800 = vsel %vm790, %v766, 0.0
        %801 = vadd.xlane.f32.xlu0 %v800
        %v802 = vpop.xlane.xlu0 %801
        %v803 = vsel %vm790, %v767, 0.0
        %804 = vadd.xlane.f32.xlu0 %v803
        %v805 = vpop.xlane.xlu0 %804
        %v806 = vsel %vm790, %v768, 0.0
        %807 = vadd.xlane.f32.xlu0 %v806
        %v808 = vpop.xlane.xlu0 %807
        %v809 = vsel %vm790, %v769, 0.0
        %810 = vadd.xlane.f32.xlu0 %v809
        %v811 = vpop.xlane.xlu0 %810
        %v812 = vsel %vm790, %v770, 0.0
        %813 = vadd.xlane.f32.xlu0 %v812
        %v814 = vpop.xlane.xlu0 %813
        %v815 = vrcp.pop 32.0
        %v816 = vmul.f32 %v793, %v815
        %v817 = vmul.f32 %v796, %v815
        %v818 = vmul.f32 %v799, %v815
        %v819 = vmul.f32 %v802, %v815
        %v820 = vmul.f32 %v805, %v815
        %v821 = vmul.f32 %v808, %v815
        %v822 = vmul.f32 %v811, %v815
        %v823 = vmul.f32 %v814, %v815
        %v824 = vsub.f32 %v763, %v816
        %v825 = vsub.f32 %v764, %v817
        %v826 = vsub.f32 %v765, %v818
        %v827 = vsub.f32 %v766, %v819
        %v828 = vsub.f32 %v767, %v820
        %v829 = vsub.f32 %v768, %v821
        %v830 = vsub.f32 %v769, %v822
        %v831 = vsub.f32 %v770, %v823
        %v832 = vmul.f32 %v824, %v824
        %v833 = vmul.f32 %v825, %v825
        %v834 = vmul.f32 %v826, %v826
        %v835 = vmul.f32 %v827, %v827
        %v836 = vmul.f32 %v828, %v828
        %v837 = vmul.f32 %v829, %v829
        %v838 = vmul.f32 %v830, %v830
        %v839 = vmul.f32 %v831, %v831
        %v840 = vsel %vm790, %v832, 0.0
        %841 = vadd.xlane.f32.xlu0 %v840
        %v842 = vpop.xlane.xlu0 %841
        %v843 = vsel %vm790, %v833, 0.0
        %844 = vadd.xlane.f32.xlu0 %v843
        %v845 = vpop.xlane.xlu0 %844
        %v846 = vsel %vm790, %v834, 0.0
        %847 = vadd.xlane.f32.xlu0 %v846
        %v848 = vpop.xlane.xlu0 %847
        %v849 = vsel %vm790, %v835, 0.0
        %850 = vadd.xlane.f32.xlu0 %v849
        %v851 = vpop.xlane.xlu0 %850
        %v852 = vsel %vm790, %v836, 0.0
        %853 = vadd.xlane.f32.xlu0 %v852
        %v854 = vpop.xlane.xlu0 %853
        %v855 = vsel %vm790, %v837, 0.0
        %856 = vadd.xlane.f32.xlu0 %v855
        %v857 = vpop.xlane.xlu0 %856
        %v858 = vsel %vm790, %v838, 0.0
        %859 = vadd.xlane.f32.xlu0 %v858
        %v860 = vpop.xlane.xlu0 %859
        %v861 = vsel %vm790, %v839, 0.0
        %862 = vadd.xlane.f32.xlu0 %v861
        %v863 = vpop.xlane.xlu0 %862
        %v864 = vmul.f32 %v842, %v815
        %v865 = vmul.f32 %v845, %v815
        %v866 = vmul.f32 %v848, %v815
        %v867 = vmul.f32 %v851, %v815
        %v868 = vmul.f32 %v854, %v815
        %v869 = vmul.f32 %v857, %v815
        %v870 = vmul.f32 %v860, %v815
        %v871 = vmul.f32 %v863, %v815
        %v872 = vadd.f32 %v864, 1e-05
        %v873 = vadd.f32 %v865, 1e-05
        %v874 = vadd.f32 %v866, 1e-05
        %v875 = vadd.f32 %v867, 1e-05
        %v876 = vadd.f32 %v868, 1e-05
        %v877 = vadd.f32 %v869, 1e-05
        %v878 = vadd.f32 %v870, 1e-05
        %v879 = vadd.f32 %v871, 1e-05
        %v880 = vrsqrt.pop %v872
        %v881 = vrsqrt.pop %v873
        %v882 = vrsqrt.pop %v874
        %v883 = vrsqrt.pop %v875
        %v884 = vrsqrt.pop %v876
        %v885 = vrsqrt.pop %v877
        %v886 = vrsqrt.pop %v878
        %v887 = vrsqrt.pop %v879
        %v888 = vmul.f32 %v824, %v880
        %v889 = vmul.f32 %v825, %v881
        %v890 = vmul.f32 %v826, %v882
        %v891 = vmul.f32 %v827, %v883
        %v892 = vmul.f32 %v828, %v884
        %v893 = vmul.f32 %v829, %v885
        %v894 = vmul.f32 %v830, %v886
        %v895 = vmul.f32 %v831, %v887
        %v897 = vlaneseq
        %v898 = vshrl.u32 %v897, 7
        %v899 = vsub.s32 0, %v898
        %v900 = vrot.slane %v788, %v899
        %v902 = vmul.f32 %v888, %v900
        %v903 = vmul.f32 %v889, %v900
        %v904 = vmul.f32 %v890, %v900
        %v905 = vmul.f32 %v891, %v900
        %v906 = vmul.f32 %v892, %v900
        %v907 = vmul.f32 %v893, %v900
        %v908 = vmul.f32 %v894, %v900
        %v909 = vmul.f32 %v895, %v900
        %v911 = vlaneseq
        %v912 = vshrl.u32 %v911, 7
        %v913 = vsub.s32 0, %v912
        %v914 = vrot.slane %v789, %v913
        %v916 = vadd.f32 %v902, %v914
        %v917 = vadd.f32 %v903, %v914
        %v918 = vadd.f32 %v904, %v914
        %v919 = vadd.f32 %v905, %v914
        %v920 = vadd.f32 %v906, %v914
        %v921 = vadd.f32 %v907, %v914
        %v922 = vadd.f32 %v908, %v914
        %v923 = vadd.f32 %v909, %v914
        %v924 = vld [vmem:[#allocation7] sm:$0x1]
        %v925 = vld [vmem:[#allocation9] sm:$0x1]
        %v926 = vsel %vm790, %v916, 0.0
        %927 = vadd.xlane.f32.xlu0 %v926
        %v928 = vpop.xlane.xlu0 %927
        %v929 = vsel %vm790, %v917, 0.0
        %930 = vadd.xlane.f32.xlu0 %v929
        %v931 = vpop.xlane.xlu0 %930
        %v932 = vsel %vm790, %v918, 0.0
        %933 = vadd.xlane.f32.xlu0 %v932
        %v934 = vpop.xlane.xlu0 %933
        %v935 = vsel %vm790, %v919, 0.0
        %936 = vadd.xlane.f32.xlu0 %v935
        %v937 = vpop.xlane.xlu0 %936
        %v938 = vsel %vm790, %v920, 0.0
        %939 = vadd.xlane.f32.xlu0 %v938
        %v940 = vpop.xlane.xlu0 %939
        %v941 = vsel %vm790, %v921, 0.0
        %942 = vadd.xlane.f32.xlu0 %v941
        %v943 = vpop.xlane.xlu0 %942
        %v944 = vsel %vm790, %v922, 0.0
        %945 = vadd.xlane.f32.xlu0 %v944
        %v946 = vpop.xlane.xlu0 %945
        %v947 = vsel %vm790, %v923, 0.0
        %948 = vadd.xlane.f32.xlu0 %v947
        %v949 = vpop.xlane.xlu0 %948
        %v950 = vmul.f32 %v928, %v815
        %v951 = vmul.f32 %v931, %v815
        %v952 = vmul.f32 %v934, %v815
        %v953 = vmul.f32 %v937, %v815
        %v954 = vmul.f32 %v940, %v815
        %v955 = vmul.f32 %v943, %v815
        %v956 = vmul.f32 %v946, %v815
        %v957 = vmul.f32 %v949, %v815
        %v958 = vsub.f32 %v916, %v950
        %v959 = vsub.f32 %v917, %v951
        %v960 = vsub.f32 %v918, %v952
        %v961 = vsub.f32 %v919, %v953
        %v962 = vsub.f32 %v920, %v954
        %v963 = vsub.f32 %v921, %v955
        %v964 = vsub.f32 %v922, %v956
        %v965 = vsub.f32 %v923, %v957
        %v966 = vmul.f32 %v958, %v958
        %v967 = vmul.f32 %v959, %v959
        %v968 = vmul.f32 %v960, %v960
        %v969 = vmul.f32 %v961, %v961
        %v970 = vmul.f32 %v962, %v962
        %v971 = vmul.f32 %v963, %v963
        %v972 = vmul.f32 %v964, %v964
        %v973 = vmul.f32 %v965, %v965
        %v974 = vsel %vm790, %v966, 0.0
        %975 = vadd.xlane.f32.xlu0 %v974
        %v976 = vpop.xlane.xlu0 %975
        %v977 = vsel %vm790, %v967, 0.0
        %978 = vadd.xlane.f32.xlu0 %v977
        %v979 = vpop.xlane.xlu0 %978
        %v980 = vsel %vm790, %v968, 0.0
        %981 = vadd.xlane.f32.xlu0 %v980
        %v982 = vpop.xlane.xlu0 %981
        %v983 = vsel %vm790, %v969, 0.0
        %984 = vadd.xlane.f32.xlu0 %v983
        %v985 = vpop.xlane.xlu0 %984
        %v986 = vsel %vm790, %v970, 0.0
        %987 = vadd.xlane.f32.xlu0 %v986
        %v988 = vpop.xlane.xlu0 %987
        %v989 = vsel %vm790, %v971, 0.0
        %990 = vadd.xlane.f32.xlu0 %v989
        %v991 = vpop.xlane.xlu0 %990
        %v992 = vsel %vm790, %v972, 0.0
        %993 = vadd.xlane.f32.xlu0 %v992
        %v994 = vpop.xlane.xlu0 %993
        %v995 = vsel %vm790, %v973, 0.0
        %996 = vadd.xlane.f32.xlu0 %v995
        %v997 = vpop.xlane.xlu0 %996
        %v998 = vmul.f32 %v976, %v815
        %v999 = vmul.f32 %v979, %v815
        %v1000 = vmul.f32 %v982, %v815
        %v1001 = vmul.f32 %v985, %v815
        %v1002 = vmul.f32 %v988, %v815
        %v1003 = vmul.f32 %v991, %v815
        %v1004 = vmul.f32 %v994, %v815
        %v1005 = vmul.f32 %v997, %v815
        %v1006 = vadd.f32 %v998, 1e-05
        %v1007 = vadd.f32 %v999, 1e-05
        %v1008 = vadd.f32 %v1000, 1e-05
        %v1009 = vadd.f32 %v1001, 1e-05
        %v1010 = vadd.f32 %v1002, 1e-05
        %v1011 = vadd.f32 %v1003, 1e-05
        %v1012 = vadd.f32 %v1004, 1e-05
        %v1013 = vadd.f32 %v1005, 1e-05
        %v1014 = vrsqrt.pop %v1006
        %v1015 = vrsqrt.pop %v1007
        %v1016 = vrsqrt.pop %v1008
        %v1017 = vrsqrt.pop %v1009
        %v1018 = vrsqrt.pop %v1010
        %v1019 = vrsqrt.pop %v1011
        %v1020 = vrsqrt.pop %v1012
        %v1021 = vrsqrt.pop %v1013
        %v1022 = vmul.f32 %v958, %v1014
        %v1023 = vmul.f32 %v959, %v1015
        %v1024 = vmul.f32 %v960, %v1016
        %v1025 = vmul.f32 %v961, %v1017
        %v1026 = vmul.f32 %v962, %v1018
        %v1027 = vmul.f32 %v963, %v1019
        %v1028 = vmul.f32 %v964, %v1020
        %v1029 = vmul.f32 %v965, %v1021
        %v1031 = vlaneseq
        %v1032 = vshrl.u32 %v1031, 7
        %v1033 = vsub.s32 0, %v1032
        %v1034 = vrot.slane %v924, %v1033
        %v1036 = vmul.f32 %v1022, %v1034
        %v1037 = vmul.f32 %v1023, %v1034
        %v1038 = vmul.f32 %v1024, %v1034
        %v1039 = vmul.f32 %v1025, %v1034
        %v1040 = vmul.f32 %v1026, %v1034
        %v1041 = vmul.f32 %v1027, %v1034
        %v1042 = vmul.f32 %v1028, %v1034
        %v1043 = vmul.f32 %v1029, %v1034
        %v1045 = vlaneseq
        %v1046 = vshrl.u32 %v1045, 7
        %v1047 = vsub.s32 0, %v1046
        %v1048 = vrot.slane %v925, %v1047
        %v1050 = vadd.f32 %v1036, %v1048
        %v1051 = vadd.f32 %v1037, %v1048
        %v1052 = vadd.f32 %v1038, %v1048
        %v1053 = vadd.f32 %v1039, %v1048
        %v1054 = vadd.f32 %v1040, %v1048
        %v1055 = vadd.f32 %v1041, %v1048
        %v1056 = vadd.f32 %v1042, %v1048
        %v1057 = vadd.f32 %v1043, %v1048
        %v1058 = vsel %vm780, 1, 0
        %v1059 = vsel %vm781, 1, 0
        %v1060 = vsel %vm782, 1, 0
        %v1061 = vsel %vm783, 1, 0
        %v1062 = vsel %vm784, 1, 0
        %v1063 = vsel %vm785, 1, 0
        %v1064 = vsel %vm786, 1, 0
        %v1065 = vsel %vm787, 1, 0
        %vm1066 = vcmp.eq.s32.totalorder %v1058, 1
        %vm1067 = vcmp.eq.s32.totalorder %v1059, 1
        %vm1068 = vcmp.eq.s32.totalorder %v1060, 1
        %vm1069 = vcmp.eq.s32.totalorder %v1061, 1
        %vm1070 = vcmp.eq.s32.totalorder %v1062, 1
        %vm1071 = vcmp.eq.s32.totalorder %v1063, 1
        %vm1072 = vcmp.eq.s32.totalorder %v1064, 1
        %vm1073 = vcmp.eq.s32.totalorder %v1065, 1
        %v1074 = vsel %vm1066, 0.0, %v1057
        %v1075 = vsel %vm1067, 0.0, %v1050
        %v1076 = vsel %vm1068, 0.0, %v1051
        %v1077 = vsel %vm1069, 0.0, %v1052
        %v1078 = vsel %vm1070, 0.0, %v1053
        %v1079 = vsel %vm1071, 0.0, %v1054
        %v1080 = vsel %vm1072, 0.0, %v1055
        %v1081 = vsel %vm1073, 0.0, %v1056
        %v1082 = vsub.f32 %v1050, %v1074
        %v1083 = vsub.f32 %v1051, %v1075
        %v1084 = vsub.f32 %v1052, %v1076
        %v1085 = vsub.f32 %v1053, %v1077
        %v1086 = vsub.f32 %v1054, %v1078
        %v1087 = vsub.f32 %v1055, %v1079
        %v1088 = vsub.f32 %v1056, %v1080
        %v1089 = vsub.f32 %v1057, %v1081
        %v1090 = vld [vmem:[#allocation13] sm:$0x1]
        %v1092 = vlaneseq
        %v1093 = vshrl.u32 %v1092, 7
        %v1094 = vsub.s32 0, %v1093
        %v1095 = vrot.slane %v1090, %v1094
        %v1097 = vmul.f32 %v1082, %v1095
        %v1098 = vmul.f32 %v1083, %v1095
        %v1099 = vmul.f32 %v1084, %v1095
        %v1100 = vmul.f32 %v1085, %v1095
        %v1101 = vmul.f32 %v1086, %v1095
        %v1102 = vmul.f32 %v1087, %v1095
        %v1103 = vmul.f32 %v1088, %v1095
        %v1104 = vmul.f32 %v1089, %v1095
        %v1105 = vadd.f32 %v1074, %v1097
        %v1106 = vadd.f32 %v1075, %v1098
        %v1107 = vadd.f32 %v1076, %v1099
        %v1108 = vadd.f32 %v1077, %v1100
        %v1109 = vadd.f32 %v1078, %v1101
        %v1110 = vadd.f32 %v1079, %v1102
        %v1111 = vadd.f32 %v1080, %v1103
        %v1112 = vadd.f32 %v1081, %v1104
        %v1113 = vld [vmem:[#allocation15] sm:$0x1]
        %v1115 = vlaneseq
        %v1116 = vshrl.u32 %v1115, 7
        %v1117 = vsub.s32 0, %v1116
        %v1118 = vrot.slane %v1113, %v1117
        %v1120 = vmul.f32 %v1082, %v1118
        %v1121 = vmul.f32 %v1083, %v1118
        %v1122 = vmul.f32 %v1084, %v1118
        %v1123 = vmul.f32 %v1085, %v1118
        %v1124 = vmul.f32 %v1086, %v1118
        %v1125 = vmul.f32 %v1087, %v1118
        %v1126 = vmul.f32 %v1088, %v1118
        %v1127 = vmul.f32 %v1089, %v1118
        %v1128 = vadd.f32 %v1074, %v1120
        %v1129 = vadd.f32 %v1075, %v1121
        %v1130 = vadd.f32 %v1076, %v1122
        %v1131 = vadd.f32 %v1077, %v1123
        %v1132 = vadd.f32 %v1078, %v1124
        %v1133 = vadd.f32 %v1079, %v1125
        %v1134 = vadd.f32 %v1080, %v1126
        %v1135 = vadd.f32 %v1081, %v1127
        %v1136 = vld [vmem:[#allocation16] sm:$0x1]
        %v1138 = vlaneseq
        %v1139 = vshrl.u32 %v1138, 7
        %v1140 = vsub.s32 0, %v1139
        %v1141 = vrot.slane %v1136, %v1140
        %v1143 = vmul.f32 %v1082, %v1141
        %v1144 = vmul.f32 %v1083, %v1141
        %v1145 = vmul.f32 %v1084, %v1141
        %v1146 = vmul.f32 %v1085, %v1141
        %v1147 = vmul.f32 %v1086, %v1141
        %v1148 = vmul.f32 %v1087, %v1141
        %v1149 = vmul.f32 %v1088, %v1141
        %v1150 = vmul.f32 %v1089, %v1141
        %v1151 = vadd.f32 %v1074, %v1143
        %v1152 = vadd.f32 %v1075, %v1144
        %v1153 = vadd.f32 %v1076, %v1145
        %v1154 = vadd.f32 %v1077, %v1146
        %v1155 = vadd.f32 %v1078, %v1147
        %v1156 = vadd.f32 %v1079, %v1148
        %v1157 = vadd.f32 %v1080, %v1149
        %v1158 = vadd.f32 %v1081, %v1150
        %v1159 = vld [vmem:[%s12] sm:$0xf]
        %v1160 = vld [vmem:[%s12 + $0x4] sm:$0xf]
        %v1161 = vld [vmem:[%s12 + $0x8] sm:$0xf]
        %v1162 = vld [vmem:[%s12 + $0xc] sm:$0xf]
        %v1163 = vpack.c.bf16 %v1106, %v1105
        %v1164 = vpack.c.bf16 %v1108, %v1107
        %v1165 = vpack.c.bf16 %v1110, %v1109
        %v1166 = vpack.c.bf16 %v1112, %v1111
        %v1171 = vunpack.c.l.b16 %v1159
        %v1172 = vunpack.c.l.b16 %v1160
        %v1173 = vunpack.c.l.b16 %v1161
        %v1174 = vunpack.c.l.b16 %v1162
        %v1175 = vpack.c.b16 %v1172, %v1171
        %v1176 = vpack.c.b16 %v1174, %v1173
        %v1180 = vsel %vm790, %v1163, 0
        %v1183 = vsel %vm790, %v1164, 0
        %v1186 = vsel %vm790, %v1165, 0
        %v1189 = vsel %vm790, %v1166, 0
        %1191 = vmatprep.subr.bf16.mxu0 0
        %1192 = vmatpush1.bf16.msra.mxu0 %v1175
        %1193 = vmatprep.subr.bf16.mxu0 0
        %1194 = vmatpush1.bf16.msra.mxu0 %v1176
        %1195 = vmatprep.subr.bf16.mxu0 0
        %1196 = vmatpush1.bf16.msra.mxu0 0
        %1197 = vmatprep.subr.bf16.mxu0 0
        %1198 = vmatpush1.bf16.msra.mxu0 0
        %1199 = vmatprep.subr.bf16.mxu0 0
        %1200 = vmatpush1.bf16.msra.mxu0 0
        %1201 = vmatprep.subr.bf16.mxu0 0
        %1202 = vmatpush1.bf16.msra.mxu0 0
        %1203 = vmatprep.subr.bf16.mxu0 0
        %1204 = vmatpush1.bf16.msra.mxu0 0
        %1205 = vmatprep.subr.bf16.mxu0 0
        %1206 = vmatpush1.bf16.msra.mxu0 0
        %1207 = vmatprep.subr.bf16.mxu0 0
        %1208 = vmatpush1.bf16.msra.mxu0 0
        %1209 = vmatprep.subr.bf16.mxu0 0
        %1210 = vmatpush1.bf16.msra.mxu0 0
        %1211 = vmatprep.subr.bf16.mxu0 0
        %1212 = vmatpush1.bf16.msra.mxu0 0
        %1213 = vmatprep.subr.bf16.mxu0 0
        %1214 = vmatpush1.bf16.msra.mxu0 0
        %1215 = vmatprep.subr.bf16.mxu0 0
        %1216 = vmatpush1.bf16.msra.mxu0 0
        %1217 = vmatprep.subr.bf16.mxu0 0
        %1218 = vmatpush1.bf16.msra.mxu0 0
        %1219 = vmatprep.subr.bf16.mxu0 0
        %1220 = vmatpush1.bf16.msra.mxu0 0
        %1221 = vmatprep.subr.bf16.mxu0 0
        %1222 = vmatpush1.bf16.msra.mxu0 0
        %1223 = vmatprep.mubr.bf16.mxu0 0
        %1224 = vmatmul.mubr.bf16.gmra.mrb[0].mxu0 %v1180
        %v1225 = vpop.f32.mrb[0].mxu0
        %v1226 = vadd.f32 0.0, %v1225
        %v1227 = vpop.f32.mrb[0].mxu0
        %v1228 = vpop.f32.mrb[0].mxu0
        %v1229 = vadd.f32 0.0, %v1228
        %v1230 = vpop.f32.mrb[0].mxu0
        %1231 = vmatprep.mubr.bf16.mxu0 0
        %1232 = vmatmul.mubr.bf16.gmra.mrb[0].mxu0 %v1183
        %v1233 = vpop.f32.mrb[0].mxu0
        %v1234 = vadd.f32 0.0, %v1233
        %v1235 = vpop.f32.mrb[0].mxu0
        %v1236 = vpop.f32.mrb[0].mxu0
        %v1237 = vadd.f32 0.0, %v1236
        %v1238 = vpop.f32.mrb[0].mxu0
        %1239 = vmatprep.mubr.bf16.mxu0 0
        %1240 = vmatmul.mubr.bf16.gmra.mrb[0].mxu0 %v1186
        %v1241 = vpop.f32.mrb[0].mxu0
        %v1242 = vadd.f32 0.0, %v1241
        %v1243 = vpop.f32.mrb[0].mxu0
        %v1244 = vpop.f32.mrb[0].mxu0
        %v1245 = vadd.f32 0.0, %v1244
        %v1246 = vpop.f32.mrb[0].mxu0
        %1247 = vmatprep.mubr.bf16.mxu0 0
        %1248 = vmatmul.mubr.bf16.gmra.mrb[0].mxu0 %v1189
        %v1249 = vpop.f32.mrb[0].mxu0
        %v1250 = vadd.f32 0.0, %v1249
        %v1251 = vpop.f32.mrb[0].mxu0
        %v1252 = vpop.f32.mrb[0].mxu0
        %v1253 = vadd.f32 0.0, %v1252
        %v1254 = vpop.f32.mrb[0].mxu0
        %1255 = vdwg.mxu0
        %v1256 = vld [vmem:[%s13] sm:$0xf]
        %v1257 = vld [vmem:[%s13 + $0x4] sm:$0xf]
        %v1258 = vld [vmem:[%s13 + $0x8] sm:$0xf]
        %v1259 = vld [vmem:[%s13 + $0xc] sm:$0xf]
        %v1260 = vpack.c.bf16 %v1129, %v1128
        %v1261 = vpack.c.bf16 %v1131, %v1130
        %v1262 = vpack.c.bf16 %v1133, %v1132
        %v1263 = vpack.c.bf16 %v1135, %v1134
        %v1268 = vunpack.c.l.b16 %v1256
        %v1269 = vunpack.c.l.b16 %v1257
        %v1270 = vunpack.c.l.b16 %v1258
        %v1271 = vunpack.c.l.b16 %v1259
        %v1272 = vpack.c.b16 %v1269, %v1268
        %v1273 = vpack.c.b16 %v1271, %v1270
        %v1277 = vsel %vm790, %v1260, 0
        %v1280 = vsel %vm790, %v1261, 0
        %v1283 = vsel %vm790, %v1262, 0
        %v1286 = vsel %vm790, %v1263, 0
        %1288 = vmatprep.subr.bf16.mxu0 0
        %1289 = vmatpush1.bf16.msra.mxu0 %v1272
        %1290 = vmatprep.subr.bf16.mxu0 0
        %1291 = vmatpush1.bf16.msra.mxu0 %v1273
        %1292 = vmatprep.subr.bf16.mxu0 0
        %1293 = vmatpush1.bf16.msra.mxu0 0
        %1294 = vmatprep.subr.bf16.mxu0 0
        %1295 = vmatpush1.bf16.msra.mxu0 0
        %1296 = vmatprep.subr.bf16.mxu0 0
        %1297 = vmatpush1.bf16.msra.mxu0 0
        %1298 = vmatprep.subr.bf16.mxu0 0
        %1299 = vmatpush1.bf16.msra.mxu0 0
        %1300 = vmatprep.subr.bf16.mxu0 0
        %1301 = vmatpush1.bf16.msra.mxu0 0
        %1302 = vmatprep.subr.bf16.mxu0 0
        %1303 = vmatpush1.bf16.msra.mxu0 0
        %1304 = vmatprep.subr.bf16.mxu0 0
        %1305 = vmatpush1.bf16.msra.mxu0 0
        %1306 = vmatprep.subr.bf16.mxu0 0
        %1307 = vmatpush1.bf16.msra.mxu0 0
        %1308 = vmatprep.subr.bf16.mxu0 0
        %1309 = vmatpush1.bf16.msra.mxu0 0
        %1310 = vmatprep.subr.bf16.mxu0 0
        %1311 = vmatpush1.bf16.msra.mxu0 0
        %1312 = vmatprep.subr.bf16.mxu0 0
        %1313 = vmatpush1.bf16.msra.mxu0 0
        %1314 = vmatprep.subr.bf16.mxu0 0
        %1315 = vmatpush1.bf16.msra.mxu0 0
        %1316 = vmatprep.subr.bf16.mxu0 0
        %1317 = vmatpush1.bf16.msra.mxu0 0
        %1318 = vmatprep.subr.bf16.mxu0 0
        %1319 = vmatpush1.bf16.msra.mxu0 0
        %1320 = vmatprep.mubr.bf16.mxu0 0
        %1321 = vmatmul.mubr.bf16.gmra.mrb[0].mxu0 %v1277
        %v1322 = vpop.f32.mrb[0].mxu0
        %v1323 = vadd.f32 0.0, %v1322
        %v1324 = vpop.f32.mrb[0].mxu0
        %v1325 = vpop.f32.mrb[0].mxu0
        %v1326 = vadd.f32 0.0, %v1325
        %v1327 = vpop.f32.mrb[0].mxu0
        %1328 = vmatprep.mubr.bf16.mxu0 0
        %1329 = vmatmul.mubr.bf16.gmra.mrb[0].mxu0 %v1280
        %v1330 = vpop.f32.mrb[0].mxu0
        %v1331 = vadd.f32 0.0, %v1330
        %v1332 = vpop.f32.mrb[0].mxu0
        %v1333 = vpop.f32.mrb[0].mxu0
        %v1334 = vadd.f32 0.0, %v1333
        %v1335 = vpop.f32.mrb[0].mxu0
        %1336 = vmatprep.mubr.bf16.mxu0 0
        %1337 = vmatmul.mubr.bf16.gmra.mrb[0].mxu0 %v1283
        %v1338 = vpop.f32.mrb[0].mxu0
        %v1339 = vadd.f32 0.0, %v1338
        %v1340 = vpop.f32.mrb[0].mxu0
        %v1341 = vpop.f32.mrb[0].mxu0
        %v1342 = vadd.f32 0.0, %v1341
        %v1343 = vpop.f32.mrb[0].mxu0
        %1344 = vmatprep.mubr.bf16.mxu0 0
        %1345 = vmatmul.mubr.bf16.gmra.mrb[0].mxu0 %v1286
        %v1346 = vpop.f32.mrb[0].mxu0
        %v1347 = vadd.f32 0.0, %v1346
        %v1348 = vpop.f32.mrb[0].mxu0
        %v1349 = vpop.f32.mrb[0].mxu0
        %v1350 = vadd.f32 0.0, %v1349
        %v1351 = vpop.f32.mrb[0].mxu0
        %1352 = vdwg.mxu0
        %v1353 = vld [vmem:[%s14] sm:$0xf]
        %v1354 = vld [vmem:[%s14 + $0x4] sm:$0xf]
        %v1355 = vld [vmem:[%s14 + $0x8] sm:$0xf]
        %v1356 = vld [vmem:[%s14 + $0xc] sm:$0xf]
        %v1357 = vpack.c.bf16 %v1152, %v1151
        %v1358 = vpack.c.bf16 %v1154, %v1153
        %v1359 = vpack.c.bf16 %v1156, %v1155
        %v1360 = vpack.c.bf16 %v1158, %v1157
        %v1365 = vunpack.c.l.b16 %v1353
        %v1366 = vunpack.c.l.b16 %v1354
        %v1367 = vunpack.c.l.b16 %v1355
        %v1368 = vunpack.c.l.b16 %v1356
        %v1369 = vpack.c.b16 %v1366, %v1365
        %v1370 = vpack.c.b16 %v1368, %v1367
        %v1374 = vsel %vm790, %v1357, 0
        %v1377 = vsel %vm790, %v1358, 0
        %v1380 = vsel %vm790, %v1359, 0
        %v1383 = vsel %vm790, %v1360, 0
        %1385 = vmatprep.subr.bf16.mxu0 0
        %1386 = vmatpush1.bf16.msra.mxu0 %v1369
        %1387 = vmatprep.subr.bf16.mxu0 0
        %1388 = vmatpush1.bf16.msra.mxu0 %v1370
        %1389 = vmatprep.subr.bf16.mxu0 0
        %1390 = vmatpush1.bf16.msra.mxu0 0
        %1391 = vmatprep.subr.bf16.mxu0 0
        %1392 = vmatpush1.bf16.msra.mxu0 0
        %1393 = vmatprep.subr.bf16.mxu0 0
        %1394 = vmatpush1.bf16.msra.mxu0 0
        %1395 = vmatprep.subr.bf16.mxu0 0
        %1396 = vmatpush1.bf16.msra.mxu0 0
        %1397 = vmatprep.subr.bf16.mxu0 0
        %1398 = vmatpush1.bf16.msra.mxu0 0
        %1399 = vmatprep.subr.bf16.mxu0 0
        %1400 = vmatpush1.bf16.msra.mxu0 0
        %1401 = vmatprep.subr.bf16.mxu0 0
        %1402 = vmatpush1.bf16.msra.mxu0 0
        %1403 = vmatprep.subr.bf16.mxu0 0
        %1404 = vmatpush1.bf16.msra.mxu0 0
        %1405 = vmatprep.subr.bf16.mxu0 0
        %1406 = vmatpush1.bf16.msra.mxu0 0
        %1407 = vmatprep.subr.bf16.mxu0 0
        %1408 = vmatpush1.bf16.msra.mxu0 0
        %1409 = vmatprep.subr.bf16.mxu0 0
        %1410 = vmatpush1.bf16.msra.mxu0 0
        %1411 = vmatprep.subr.bf16.mxu0 0
        %1412 = vmatpush1.bf16.msra.mxu0 0
        %1413 = vmatprep.subr.bf16.mxu0 0
        %1414 = vmatpush1.bf16.msra.mxu0 0
        %1415 = vmatprep.subr.bf16.mxu0 0
        %1416 = vmatpush1.bf16.msra.mxu0 0
        %1417 = vmatprep.mubr.bf16.mxu0 0
        %1418 = vmatmul.mubr.bf16.gmra.mrb[0].mxu0 %v1374
        %v1419 = vpop.f32.mrb[0].mxu0
        %v1420 = vadd.f32 0.0, %v1419
        %v1421 = vpop.f32.mrb[0].mxu0
        %v1422 = vpop.f32.mrb[0].mxu0
        %v1423 = vadd.f32 0.0, %v1422
        %v1424 = vpop.f32.mrb[0].mxu0
        %1425 = vmatprep.mubr.bf16.mxu0 0
        %1426 = vmatmul.mubr.bf16.gmra.mrb[0].mxu0 %v1377
        %v1427 = vpop.f32.mrb[0].mxu0
        %v1428 = vadd.f32 0.0, %v1427
        %v1429 = vpop.f32.mrb[0].mxu0
        %v1430 = vpop.f32.mrb[0].mxu0
        %v1431 = vadd.f32 0.0, %v1430
        %v1432 = vpop.f32.mrb[0].mxu0
        %1433 = vmatprep.mubr.bf16.mxu0 0
        %1434 = vmatmul.mubr.bf16.gmra.mrb[0].mxu0 %v1380
        %v1435 = vpop.f32.mrb[0].mxu0
        %v1436 = vadd.f32 0.0, %v1435
        %v1437 = vpop.f32.mrb[0].mxu0
        %v1438 = vpop.f32.mrb[0].mxu0
        %v1439 = vadd.f32 0.0, %v1438
        %v1440 = vpop.f32.mrb[0].mxu0
        %1441 = vmatprep.mubr.bf16.mxu0 0
        %1442 = vmatmul.mubr.bf16.gmra.mrb[0].mxu0 %v1383
        %v1443 = vpop.f32.mrb[0].mxu0
        %v1444 = vadd.f32 0.0, %v1443
        %v1445 = vpop.f32.mrb[0].mxu0
        %v1446 = vpop.f32.mrb[0].mxu0
        %v1447 = vadd.f32 0.0, %v1446
        %v1448 = vpop.f32.mrb[0].mxu0
        %1449 = vdwg.mxu0
        %v1450 = vxor.u32 %v1420, 2147483648
        %v1451 = vxor.u32 %v1423, 2147483648
        %v1452 = vxor.u32 %v1428, 2147483648
        %v1453 = vxor.u32 %v1431, 2147483648
        %v1454 = vxor.u32 %v1436, 2147483648
        %v1455 = vxor.u32 %v1439, 2147483648
        %v1456 = vxor.u32 %v1444, 2147483648
        %v1457 = vxor.u32 %v1447, 2147483648
        %v1458 = vmul.f32 %v1450, 1.442695
        %v1459 = vpow.pop %v1458
        %v1460 = vmul.f32 %v1451, 1.442695
        %v1461 = vpow.pop %v1460
        %v1462 = vmul.f32 %v1452, 1.442695
        %v1463 = vpow.pop %v1462
        %v1464 = vmul.f32 %v1453, 1.442695
        %v1465 = vpow.pop %v1464
        %v1466 = vmul.f32 %v1454, 1.442695
        %v1467 = vpow.pop %v1466
        %v1468 = vmul.f32 %v1455, 1.442695
        %v1469 = vpow.pop %v1468
        %v1470 = vmul.f32 %v1456, 1.442695
        %v1471 = vpow.pop %v1470
        %v1472 = vmul.f32 %v1457, 1.442695
        %v1473 = vpow.pop %v1472
        %v1474 = vadd.f32 %v1459, 1.0
        %v1475 = vadd.f32 %v1461, 1.0
        %v1476 = vadd.f32 %v1463, 1.0
        %v1477 = vadd.f32 %v1465, 1.0
        %v1478 = vadd.f32 %v1467, 1.0
        %v1479 = vadd.f32 %v1469, 1.0
        %v1480 = vadd.f32 %v1471, 1.0
        %v1481 = vadd.f32 %v1473, 1.0
        %v1482 = vrcp.pop %v1474
        %v1483 = vmul.f32 1.0, %v1482
        %v1484 = vrcp.pop %v1475
        %v1485 = vmul.f32 1.0, %v1484
        %v1486 = vrcp.pop %v1476
        %v1487 = vmul.f32 1.0, %v1486
        %v1488 = vrcp.pop %v1477
        %v1489 = vmul.f32 1.0, %v1488
        %v1490 = vrcp.pop %v1478
        %v1491 = vmul.f32 1.0, %v1490
        %v1492 = vrcp.pop %v1479
        %v1493 = vmul.f32 1.0, %v1492
        %v1494 = vrcp.pop %v1480
        %v1495 = vmul.f32 1.0, %v1494
        %v1496 = vrcp.pop %v1481
        %v1497 = vmul.f32 1.0, %v1496
        %1498 = vst.msk [vmem:[#allocation2] sm:$0xff] %vm790, %v1226
        %1499 = vst.msk [vmem:[#allocation2 + $0x8] sm:$0xff] %vm790, %v1229
        %1500 = vst.msk [vmem:[#allocation2 + $0x10] sm:$0xff] %vm790, %v1234
        %1501 = vst.msk [vmem:[#allocation2 + $0x18] sm:$0xff] %vm790, %v1237
        %1502 = vst.msk [vmem:[#allocation2 + $0x20] sm:$0xff] %vm790, %v1242
        %1503 = vst.msk [vmem:[#allocation2 + $0x28] sm:$0xff] %vm790, %v1245
        %1504 = vst.msk [vmem:[#allocation2 + $0x30] sm:$0xff] %vm790, %v1250
        %1505 = vst.msk [vmem:[#allocation2 + $0x38] sm:$0xff] %vm790, %v1253
        %1506 = vst.msk [vmem:[#allocation3] sm:$0xff] %vm790, %v1323
        %1507 = vst.msk [vmem:[#allocation3 + $0x8] sm:$0xff] %vm790, %v1326
        %1508 = vst.msk [vmem:[#allocation3 + $0x10] sm:$0xff] %vm790, %v1331
        %1509 = vst.msk [vmem:[#allocation3 + $0x18] sm:$0xff] %vm790, %v1334
        %1510 = vst.msk [vmem:[#allocation3 + $0x20] sm:$0xff] %vm790, %v1339
        %1511 = vst.msk [vmem:[#allocation3 + $0x28] sm:$0xff] %vm790, %v1342
        %1512 = vst.msk [vmem:[#allocation3 + $0x30] sm:$0xff] %vm790, %v1347
        %1513 = vst.msk [vmem:[#allocation3 + $0x38] sm:$0xff] %vm790, %v1350
        %v1514 = vld [vmem:[%s11] sm:$0x1]
        %v1516 = vlaneseq
        %v1517 = vshrl.u32 %v1516, 7
        %v1518 = vsub.s32 0, %v1517
        %v1519 = vrot.slane %v1514, %v1518
        %v1521 = vld [vmem:[%s10] sm:$0x1]
        %v1522 = vmul.f32 %v1521, 1.442695
        %v1523 = vpow.pop %v1522
        %v1524 = vsub.f32 0.0, %v1523
        %v1526 = vlaneseq
        %v1527 = vshrl.u32 %v1526, 7
        %v1528 = vsub.s32 0, %v1527
        %v1529 = vrot.slane %v1524, %v1528
        %v1531 = vld [vmem:[#allocation2] sm:$0xff]
        %v1532 = vld [vmem:[#allocation3] sm:$0xff]
        %v1533 = vadd.f32 %v1519, %v1531
        %v1534 = vmax.f32 %v1533, -1e+38
        %v1535 = vsub.f32 -1e+38, %v1534
        %v1536 = vmul.f32 %v1535, 1.442695
        %v1537 = vpow.pop %v1536
        %v1538 = vsub.f32 %v1533, %v1534
        %v1539 = vmul.f32 %v1538, 1.442695
        %v1540 = vpow.pop %v1539
        %v1541 = vmul.f32 %v1537, 0.0
        %v1542 = vmul.f32 %v1540, %v1532
        %v1543 = vadd.f32 %v1541, %v1542
        %v1544 = vadd.f32 %v1541, %v1540
        %v1545 = vrcp.pop %v1544
        %v1546 = vmul.f32 %v1543, %v1545
        %1547 = vst.msk [vmem:[#allocation3] sm:$0xff] %vm790, %v1546
        %v1548 = vadd.f32 %v1529, -1e+38
        %v1549 = vmax.f32 %v1548, %v1531
        %v1550 = vsub.f32 %v1548, %v1549
        %v1551 = vmul.f32 %v1550, 1.442695
        %v1552 = vpow.pop %v1551
        %v1553 = vsub.f32 %v1531, %v1549
        %v1554 = vmul.f32 %v1553, 1.442695
        %v1555 = vpow.pop %v1554
        %v1556 = vmul.f32 %v1552, 0.0
        %v1557 = vmul.f32 %v1555, %v1532
        %v1558 = vadd.f32 %v1556, %v1557
        %v1559 = vadd.f32 %v1556, %v1555
        %s1560 = scalar_lea.vmem [#allocation2], 8
        %v1561 = vld [vmem:[%s1560] sm:$0xff]
        %s1562 = scalar_lea.vmem [#allocation3], 8
        %v1563 = vld [vmem:[%s1562] sm:$0xff]
        %v1564 = vadd.f32 %v1519, %v1561
        %v1565 = vmax.f32 %v1549, %v1564
        %v1566 = vsub.f32 %v1549, %v1565
        %v1567 = vmul.f32 %v1566, 1.442695
        %v1568 = vpow.pop %v1567
        %v1569 = vsub.f32 %v1564, %v1565
        %v1570 = vmul.f32 %v1569, 1.442695
        %v1571 = vpow.pop %v1570
        %v1572 = vmul.f32 %v1568, %v1558
        %v1573 = vmul.f32 %v1571, %v1563
        %v1574 = vadd.f32 %v1572, %v1573
        %v1575 = vmul.f32 %v1568, %v1559
        %v1576 = vadd.f32 %v1575, %v1571
        %v1577 = vrcp.pop %v1576
        %v1578 = vmul.f32 %v1574, %v1577
        %1579 = vst.msk [vmem:[%s1562] sm:$0xff] %vm790, %v1578
        %v1580 = vadd.f32 %v1549, %v1529
        %v1581 = vmax.f32 %v1580, %v1561
        %v1582 = vsub.f32 %v1580, %v1581
        %v1583 = vmul.f32 %v1582, 1.442695
        %v1584 = vpow.pop %v1583
        %v1585 = vsub.f32 %v1561, %v1581
        %v1586 = vmul.f32 %v1585, 1.442695
        %v1587 = vpow.pop %v1586
        %v1588 = vmul.f32 %v1584, %v1558
        %v1589 = vmul.f32 %v1587, %v1563
        %v1590 = vadd.f32 %v1588, %v1589
        %v1591 = vmul.f32 %v1584, %v1559
        %v1592 = vadd.f32 %v1591, %v1587
        %s1593 = scalar_lea.vmem [#allocation2], 16
        %v1594 = vld [vmem:[%s1593] sm:$0xff]
        %s1595 = scalar_lea.vmem [#allocation3], 16
        %v1596 = vld [vmem:[%s1595] sm:$0xff]
        %v1597 = vadd.f32 %v1519, %v1594
        %v1598 = vmax.f32 %v1581, %v1597
        %v1599 = vsub.f32 %v1581, %v1598
        %v1600 = vmul.f32 %v1599, 1.442695
        %v1601 = vpow.pop %v1600
        %v1602 = vsub.f32 %v1597, %v1598
        %v1603 = vmul.f32 %v1602, 1.442695
        %v1604 = vpow.pop %v1603
        %v1605 = vmul.f32 %v1601, %v1590
        %v1606 = vmul.f32 %v1604, %v1596
        %v1607 = vadd.f32 %v1605, %v1606
        %v1608 = vmul.f32 %v1601, %v1592
        %v1609 = vadd.f32 %v1608, %v1604
        %v1610 = vrcp.pop %v1609
        %v1611 = vmul.f32 %v1607, %v1610
        %1612 = vst.msk [vmem:[%s1595] sm:$0xff] %vm790, %v1611
        %v1613 = vadd.f32 %v1581, %v1529
        %v1614 = vmax.f32 %v1613, %v1594
        %v1615 = vsub.f32 %v1613, %v1614
        %v1616 = vmul.f32 %v1615, 1.442695
        %v1617 = vpow.pop %v1616
        %v1618 = vsub.f32 %v1594, %v1614
        %v1619 = vmul.f32 %v1618, 1.442695
        %v1620 = vpow.pop %v1619
        %v1621 = vmul.f32 %v1617, %v1590
        %v1622 = vmul.f32 %v1620, %v1596
        %v1623 = vadd.f32 %v1621, %v1622
        %v1624 = vmul.f32 %v1617, %v1592
        %v1625 = vadd.f32 %v1624, %v1620
        %s1626 = scalar_lea.vmem [#allocation2], 24
        %v1627 = vld [vmem:[%s1626] sm:$0xff]
        %s1628 = scalar_lea.vmem [#allocation3], 24
        %v1629 = vld [vmem:[%s1628] sm:$0xff]
        %v1630 = vadd.f32 %v1519, %v1627
        %v1631 = vmax.f32 %v1614, %v1630
        %v1632 = vsub.f32 %v1614, %v1631
        %v1633 = vmul.f32 %v1632, 1.442695
        %v1634 = vpow.pop %v1633
        %v1635 = vsub.f32 %v1630, %v1631
        %v1636 = vmul.f32 %v1635, 1.442695
        %v1637 = vpow.pop %v1636
        %v1638 = vmul.f32 %v1634, %v1623
        %v1639 = vmul.f32 %v1637, %v1629
        %v1640 = vadd.f32 %v1638, %v1639
        %v1641 = vmul.f32 %v1634, %v1625
        %v1642 = vadd.f32 %v1641, %v1637
        %v1643 = vrcp.pop %v1642
        %v1644 = vmul.f32 %v1640, %v1643
        %1645 = vst.msk [vmem:[%s1628] sm:$0xff] %vm790, %v1644
        %v1646 = vadd.f32 %v1614, %v1529
        %v1647 = vmax.f32 %v1646, %v1627
        %v1648 = vsub.f32 %v1646, %v1647
        %v1649 = vmul.f32 %v1648, 1.442695
        %v1650 = vpow.pop %v1649
        %v1651 = vsub.f32 %v1627, %v1647
        %v1652 = vmul.f32 %v1651, 1.442695
        %v1653 = vpow.pop %v1652
        %v1654 = vmul.f32 %v1650, %v1623
        %v1655 = vmul.f32 %v1653, %v1629
        %v1656 = vadd.f32 %v1654, %v1655
        %v1657 = vmul.f32 %v1650, %v1625
        %v1658 = vadd.f32 %v1657, %v1653
        %s1659 = scalar_lea.vmem [#allocation2], 32
        %v1660 = vld [vmem:[%s1659] sm:$0xff]
        %s1661 = scalar_lea.vmem [#allocation3], 32
        %v1662 = vld [vmem:[%s1661] sm:$0xff]
        %v1663 = vadd.f32 %v1519, %v1660
        %v1664 = vmax.f32 %v1647, %v1663
        %v1665 = vsub.f32 %v1647, %v1664
        %v1666 = vmul.f32 %v1665, 1.442695
        %v1667 = vpow.pop %v1666
        %v1668 = vsub.f32 %v1663, %v1664
        %v1669 = vmul.f32 %v1668, 1.442695
        %v1670 = vpow.pop %v1669
        %v1671 = vmul.f32 %v1667, %v1656
        %v1672 = vmul.f32 %v1670, %v1662
        %v1673 = vadd.f32 %v1671, %v1672
        %v1674 = vmul.f32 %v1667, %v1658
        %v1675 = vadd.f32 %v1674, %v1670
        %v1676 = vrcp.pop %v1675
        %v1677 = vmul.f32 %v1673, %v1676
        %1678 = vst.msk [vmem:[%s1661] sm:$0xff] %vm790, %v1677
        %v1679 = vadd.f32 %v1647, %v1529
        %v1680 = vmax.f32 %v1679, %v1660
        %v1681 = vsub.f32 %v1679, %v1680
        %v1682 = vmul.f32 %v1681, 1.442695
        %v1683 = vpow.pop %v1682
        %v1684 = vsub.f32 %v1660, %v1680
        %v1685 = vmul.f32 %v1684, 1.442695
        %v1686 = vpow.pop %v1685
        %v1687 = vmul.f32 %v1683, %v1656
        %v1688 = vmul.f32 %v1686, %v1662
        %v1689 = vadd.f32 %v1687, %v1688
        %v1690 = vmul.f32 %v1683, %v1658
        %v1691 = vadd.f32 %v1690, %v1686
        %s1692 = scalar_lea.vmem [#allocation2], 40
        %v1693 = vld [vmem:[%s1692] sm:$0xff]
        %s1694 = scalar_lea.vmem [#allocation3], 40
        %v1695 = vld [vmem:[%s1694] sm:$0xff]
        %v1696 = vadd.f32 %v1519, %v1693
        %v1697 = vmax.f32 %v1680, %v1696
        %v1698 = vsub.f32 %v1680, %v1697
        %v1699 = vmul.f32 %v1698, 1.442695
        %v1700 = vpow.pop %v1699
        %v1701 = vsub.f32 %v1696, %v1697
        %v1702 = vmul.f32 %v1701, 1.442695
        %v1703 = vpow.pop %v1702
        %v1704 = vmul.f32 %v1700, %v1689
        %v1705 = vmul.f32 %v1703, %v1695
        %v1706 = vadd.f32 %v1704, %v1705
        %v1707 = vmul.f32 %v1700, %v1691
        %v1708 = vadd.f32 %v1707, %v1703
        %v1709 = vrcp.pop %v1708
        %v1710 = vmul.f32 %v1706, %v1709
        %1711 = vst.msk [vmem:[%s1694] sm:$0xff] %vm790, %v1710
        %v1712 = vadd.f32 %v1680, %v1529
        %v1713 = vmax.f32 %v1712, %v1693
        %v1714 = vsub.f32 %v1712, %v1713
        %v1715 = vmul.f32 %v1714, 1.442695
        %v1716 = vpow.pop %v1715
        %v1717 = vsub.f32 %v1693, %v1713
        %v1718 = vmul.f32 %v1717, 1.442695
        %v1719 = vpow.pop %v1718
        %v1720 = vmul.f32 %v1716, %v1689
        %v1721 = vmul.f32 %v1719, %v1695
        %v1722 = vadd.f32 %v1720, %v1721
        %v1723 = vmul.f32 %v1716, %v1691
        %v1724 = vadd.f32 %v1723, %v1719
        %s1725 = scalar_lea.vmem [#allocation2], 48
        %v1726 = vld [vmem:[%s1725] sm:$0xff]
        %s1727 = scalar_lea.vmem [#allocation3], 48
        %v1728 = vld [vmem:[%s1727] sm:$0xff]
        %v1729 = vadd.f32 %v1519, %v1726
        %v1730 = vmax.f32 %v1713, %v1729
        %v1731 = vsub.f32 %v1713, %v1730
        %v1732 = vmul.f32 %v1731, 1.442695
        %v1733 = vpow.pop %v1732
        %v1734 = vsub.f32 %v1729, %v1730
        %v1735 = vmul.f32 %v1734, 1.442695
        %v1736 = vpow.pop %v1735
        %v1737 = vmul.f32 %v1733, %v1722
        %v1738 = vmul.f32 %v1736, %v1728
        %v1739 = vadd.f32 %v1737, %v1738
        %v1740 = vmul.f32 %v1733, %v1724
        %v1741 = vadd.f32 %v1740, %v1736
        %v1742 = vrcp.pop %v1741
        %v1743 = vmul.f32 %v1739, %v1742
        %1744 = vst.msk [vmem:[%s1727] sm:$0xff] %vm790, %v1743
        %v1745 = vadd.f32 %v1713, %v1529
        %v1746 = vmax.f32 %v1745, %v1726
        %v1747 = vsub.f32 %v1745, %v1746
        %v1748 = vmul.f32 %v1747, 1.442695
        %v1749 = vpow.pop %v1748
        %v1750 = vsub.f32 %v1726, %v1746
        %v1751 = vmul.f32 %v1750, 1.442695
        %v1752 = vpow.pop %v1751
        %v1753 = vmul.f32 %v1749, %v1722
        %v1754 = vmul.f32 %v1752, %v1728
        %v1755 = vadd.f32 %v1753, %v1754
        %v1756 = vmul.f32 %v1749, %v1724
        %v1757 = vadd.f32 %v1756, %v1752
        %s1758 = scalar_lea.vmem [#allocation2], 56
        %v1759 = vld [vmem:[%s1758] sm:$0xff]
        %s1760 = scalar_lea.vmem [#allocation3], 56
        %v1761 = vld [vmem:[%s1760] sm:$0xff]
        %v1762 = vadd.f32 %v1519, %v1759
        %v1763 = vmax.f32 %v1746, %v1762
        %v1764 = vsub.f32 %v1746, %v1763
        %v1765 = vmul.f32 %v1764, 1.442695
        %v1766 = vpow.pop %v1765
        %v1767 = vsub.f32 %v1762, %v1763
        %v1768 = vmul.f32 %v1767, 1.442695
        %v1769 = vpow.pop %v1768
        %v1770 = vmul.f32 %v1766, %v1755
        %v1771 = vmul.f32 %v1769, %v1761
        %v1772 = vadd.f32 %v1770, %v1771
        %v1773 = vmul.f32 %v1766, %v1757
        %v1774 = vadd.f32 %v1773, %v1769
        %v1775 = vrcp.pop %v1774
        %v1776 = vmul.f32 %v1772, %v1775
        %1777 = vst.msk [vmem:[%s1760] sm:$0xff] %vm790, %v1776
        %v1778 = vld [vmem:[#allocation3] sm:$0xff]
        %v1779 = vld [vmem:[#allocation3 + $0x8] sm:$0xff]
        %v1780 = vld [vmem:[#allocation3 + $0x10] sm:$0xff]
        %v1781 = vld [vmem:[#allocation3 + $0x18] sm:$0xff]
        %v1782 = vld [vmem:[#allocation3 + $0x20] sm:$0xff]
        %v1783 = vld [vmem:[#allocation3 + $0x28] sm:$0xff]
        %v1784 = vld [vmem:[#allocation3 + $0x30] sm:$0xff]
        %v1785 = vld [vmem:[#allocation3 + $0x38] sm:$0xff]
        %v1786 = vmul.f32 %v1483, %v1778
        %v1787 = vmul.f32 %v1485, %v1779
        %v1788 = vmul.f32 %v1487, %v1780
        %v1789 = vmul.f32 %v1489, %v1781
        %v1790 = vmul.f32 %v1491, %v1782
        %v1791 = vmul.f32 %v1493, %v1783
        %v1792 = vmul.f32 %v1495, %v1784
        %v1793 = vmul.f32 %v1497, %v1785
        %v1794 = vld [vmem:[%s15] sm:$0xf]
        %v1795 = vld [vmem:[%s15 + $0x4] sm:$0xf]
        %v1796 = vld [vmem:[%s15 + $0x8] sm:$0xf]
        %v1797 = vld [vmem:[%s15 + $0xc] sm:$0xf]
        %v1798 = vpack.c.bf16 %v1787, %v1786
        %v1799 = vpack.c.bf16 %v1789, %v1788
        %v1800 = vpack.c.bf16 %v1791, %v1790
        %v1801 = vpack.c.bf16 %v1793, %v1792
        %v1806 = vunpack.c.l.b16 %v1794
        %v1807 = vunpack.c.l.b16 %v1795
        %v1808 = vunpack.c.l.b16 %v1796
        %v1809 = vunpack.c.l.b16 %v1797
        %v1810 = vpack.c.b16 %v1807, %v1806
        %v1811 = vpack.c.b16 %v1809, %v1808
        %v1815 = vsel %vm790, %v1798, 0
        %v1818 = vsel %vm790, %v1799, 0
        %v1821 = vsel %vm790, %v1800, 0
        %v1824 = vsel %vm790, %v1801, 0
        %1826 = vmatprep.subr.bf16.mxu0 0
        %1827 = vmatpush1.bf16.msra.mxu0 %v1810
        %1828 = vmatprep.subr.bf16.mxu0 0
        %1829 = vmatpush1.bf16.msra.mxu0 %v1811
        %1830 = vmatprep.subr.bf16.mxu0 0
        %1831 = vmatpush1.bf16.msra.mxu0 0
        %1832 = vmatprep.subr.bf16.mxu0 0
        %1833 = vmatpush1.bf16.msra.mxu0 0
        %1834 = vmatprep.subr.bf16.mxu0 0
        %1835 = vmatpush1.bf16.msra.mxu0 0
        %1836 = vmatprep.subr.bf16.mxu0 0
        %1837 = vmatpush1.bf16.msra.mxu0 0
        %1838 = vmatprep.subr.bf16.mxu0 0
        %1839 = vmatpush1.bf16.msra.mxu0 0
        %1840 = vmatprep.subr.bf16.mxu0 0
        %1841 = vmatpush1.bf16.msra.mxu0 0
        %1842 = vmatprep.subr.bf16.mxu0 0
        %1843 = vmatpush1.bf16.msra.mxu0 0
        %1844 = vmatprep.subr.bf16.mxu0 0
        %1845 = vmatpush1.bf16.msra.mxu0 0
        %1846 = vmatprep.subr.bf16.mxu0 0
        %1847 = vmatpush1.bf16.msra.mxu0 0
        %1848 = vmatprep.subr.bf16.mxu0 0
        %1849 = vmatpush1.bf16.msra.mxu0 0
        %1850 = vmatprep.subr.bf16.mxu0 0
        %1851 = vmatpush1.bf16.msra.mxu0 0
        %1852 = vmatprep.subr.bf16.mxu0 0
        %1853 = vmatpush1.bf16.msra.mxu0 0
        %1854 = vmatprep.subr.bf16.mxu0 0
        %1855 = vmatpush1.bf16.msra.mxu0 0
        %1856 = vmatprep.subr.bf16.mxu0 0
        %1857 = vmatpush1.bf16.msra.mxu0 0
        %1858 = vmatprep.mubr.bf16.mxu0 0
        %1859 = vmatmul.mubr.bf16.gmra.mrb[0].mxu0 %v1815
        %v1860 = vpop.f32.mrb[0].mxu0
        %v1861 = vadd.f32 0.0, %v1860
        %v1862 = vpop.f32.mrb[0].mxu0
        %v1863 = vpop.f32.mrb[0].mxu0
        %v1864 = vadd.f32 0.0, %v1863
        %v1865 = vpop.f32.mrb[0].mxu0
        %1866 = vmatprep.mubr.bf16.mxu0 0
        %1867 = vmatmul.mubr.bf16.gmra.mrb[0].mxu0 %v1818
        %v1868 = vpop.f32.mrb[0].mxu0
        %v1869 = vadd.f32 0.0, %v1868
        %v1870 = vpop.f32.mrb[0].mxu0
        %v1871 = vpop.f32.mrb[0].mxu0
        %v1872 = vadd.f32 0.0, %v1871
        %v1873 = vpop.f32.mrb[0].mxu0
        %1874 = vmatprep.mubr.bf16.mxu0 0
        %1875 = vmatmul.mubr.bf16.gmra.mrb[0].mxu0 %v1821
        %v1876 = vpop.f32.mrb[0].mxu0
        %v1877 = vadd.f32 0.0, %v1876
        %v1878 = vpop.f32.mrb[0].mxu0
        %v1879 = vpop.f32.mrb[0].mxu0
        %v1880 = vadd.f32 0.0, %v1879
        %v1881 = vpop.f32.mrb[0].mxu0
        %1882 = vmatprep.mubr.bf16.mxu0 0
        %1883 = vmatmul.mubr.bf16.gmra.mrb[0].mxu0 %v1824
        %v1884 = vpop.f32.mrb[0].mxu0
        %v1885 = vadd.f32 0.0, %v1884
        %v1886 = vpop.f32.mrb[0].mxu0
        %v1887 = vpop.f32.mrb[0].mxu0
        %v1888 = vadd.f32 0.0, %v1887
        %v1889 = vpop.f32.mrb[0].mxu0
        %1890 = vdwg.mxu0
        %v1891 = vadd.f32 %v916, %v1861
        %v1892 = vadd.f32 %v917, %v1864
        %v1893 = vadd.f32 %v918, %v1869
        %v1894 = vadd.f32 %v919, %v1872
        %v1895 = vadd.f32 %v920, %v1877
        %v1896 = vadd.f32 %v921, %v1880
        %v1897 = vadd.f32 %v922, %v1885
        %v1898 = vadd.f32 %v923, %v1888
        %v1899 = vld [vmem:[#allocation10] sm:$0x1]
        %v1900 = vld [vmem:[#allocation12] sm:$0x1]
        %v1901 = vsel %vm790, %v1891, 0.0
        %1902 = vadd.xlane.f32.xlu0 %v1901
        %v1903 = vpop.xlane.xlu0 %1902
        %v1904 = vsel %vm790, %v1892, 0.0
        %1905 = vadd.xlane.f32.xlu0 %v1904
        %v1906 = vpop.xlane.xlu0 %1905
        %v1907 = vsel %vm790, %v1893, 0.0
        %1908 = vadd.xlane.f32.xlu0 %v1907
        %v1909 = vpop.xlane.xlu0 %1908
        %v1910 = vsel %vm790, %v1894, 0.0
        %1911 = vadd.xlane.f32.xlu0 %v1910
        %v1912 = vpop.xlane.xlu0 %1911
        %v1913 = vsel %vm790, %v1895, 0.0
        %1914 = vadd.xlane.f32.xlu0 %v1913
        %v1915 = vpop.xlane.xlu0 %1914
        %v1916 = vsel %vm790, %v1896, 0.0
        %1917 = vadd.xlane.f32.xlu0 %v1916
        %v1918 = vpop.xlane.xlu0 %1917
        %v1919 = vsel %vm790, %v1897, 0.0
        %1920 = vadd.xlane.f32.xlu0 %v1919
        %v1921 = vpop.xlane.xlu0 %1920
        %v1922 = vsel %vm790, %v1898, 0.0
        %1923 = vadd.xlane.f32.xlu0 %v1922
        %v1924 = vpop.xlane.xlu0 %1923
        %v1925 = vmul.f32 %v1903, %v815
        %v1926 = vmul.f32 %v1906, %v815
        %v1927 = vmul.f32 %v1909, %v815
        %v1928 = vmul.f32 %v1912, %v815
        %v1929 = vmul.f32 %v1915, %v815
        %v1930 = vmul.f32 %v1918, %v815
        %v1931 = vmul.f32 %v1921, %v815
        %v1932 = vmul.f32 %v1924, %v815
        %v1933 = vsub.f32 %v1891, %v1925
        %v1934 = vsub.f32 %v1892, %v1926
        %v1935 = vsub.f32 %v1893, %v1927
        %v1936 = vsub.f32 %v1894, %v1928
        %v1937 = vsub.f32 %v1895, %v1929
        %v1938 = vsub.f32 %v1896, %v1930
        %v1939 = vsub.f32 %v1897, %v1931
        %v1940 = vsub.f32 %v1898, %v1932
        %v1941 = vmul.f32 %v1933, %v1933
        %v1942 = vmul.f32 %v1934, %v1934
        %v1943 = vmul.f32 %v1935, %v1935
        %v1944 = vmul.f32 %v1936, %v1936
        %v1945 = vmul.f32 %v1937, %v1937
        %v1946 = vmul.f32 %v1938, %v1938
        %v1947 = vmul.f32 %v1939, %v1939
        %v1948 = vmul.f32 %v1940, %v1940
        %v1949 = vsel %vm790, %v1941, 0.0
        %1950 = vadd.xlane.f32.xlu0 %v1949
        %v1951 = vpop.xlane.xlu0 %1950
        %v1952 = vsel %vm790, %v1942, 0.0
        %1953 = vadd.xlane.f32.xlu0 %v1952
        %v1954 = vpop.xlane.xlu0 %1953
        %v1955 = vsel %vm790, %v1943, 0.0
        %1956 = vadd.xlane.f32.xlu0 %v1955
        %v1957 = vpop.xlane.xlu0 %1956
        %v1958 = vsel %vm790, %v1944, 0.0
        %1959 = vadd.xlane.f32.xlu0 %v1958
        %v1960 = vpop.xlane.xlu0 %1959
        %v1961 = vsel %vm790, %v1945, 0.0
        %1962 = vadd.xlane.f32.xlu0 %v1961
        %v1963 = vpop.xlane.xlu0 %1962
        %v1964 = vsel %vm790, %v1946, 0.0
        %1965 = vadd.xlane.f32.xlu0 %v1964
        %v1966 = vpop.xlane.xlu0 %1965
        %v1967 = vsel %vm790, %v1947, 0.0
        %1968 = vadd.xlane.f32.xlu0 %v1967
        %v1969 = vpop.xlane.xlu0 %1968
        %v1970 = vsel %vm790, %v1948, 0.0
        %1971 = vadd.xlane.f32.xlu0 %v1970
        %v1972 = vpop.xlane.xlu0 %1971
        %v1973 = vmul.f32 %v1951, %v815
        %v1974 = vmul.f32 %v1954, %v815
        %v1975 = vmul.f32 %v1957, %v815
        %v1976 = vmul.f32 %v1960, %v815
        %v1977 = vmul.f32 %v1963, %v815
        %v1978 = vmul.f32 %v1966, %v815
        %v1979 = vmul.f32 %v1969, %v815
        %v1980 = vmul.f32 %v1972, %v815
        %v1981 = vadd.f32 %v1973, 1e-05
        %v1982 = vadd.f32 %v1974, 1e-05
        %v1983 = vadd.f32 %v1975, 1e-05
        %v1984 = vadd.f32 %v1976, 1e-05
        %v1985 = vadd.f32 %v1977, 1e-05
        %v1986 = vadd.f32 %v1978, 1e-05
        %v1987 = vadd.f32 %v1979, 1e-05
        %v1988 = vadd.f32 %v1980, 1e-05
        %v1989 = vrsqrt.pop %v1981
        %v1990 = vrsqrt.pop %v1982
        %v1991 = vrsqrt.pop %v1983
        %v1992 = vrsqrt.pop %v1984
        %v1993 = vrsqrt.pop %v1985
        %v1994 = vrsqrt.pop %v1986
        %v1995 = vrsqrt.pop %v1987
        %v1996 = vrsqrt.pop %v1988
        %v1997 = vmul.f32 %v1933, %v1989
        %v1998 = vmul.f32 %v1934, %v1990
        %v1999 = vmul.f32 %v1935, %v1991
        %v2000 = vmul.f32 %v1936, %v1992
        %v2001 = vmul.f32 %v1937, %v1993
        %v2002 = vmul.f32 %v1938, %v1994
        %v2003 = vmul.f32 %v1939, %v1995
        %v2004 = vmul.f32 %v1940, %v1996
        %v2006 = vlaneseq
        %v2007 = vshrl.u32 %v2006, 7
        %v2008 = vsub.s32 0, %v2007
        %v2009 = vrot.slane %v1899, %v2008
        %v2011 = vmul.f32 %v1997, %v2009
        %v2012 = vmul.f32 %v1998, %v2009
        %v2013 = vmul.f32 %v1999, %v2009
        %v2014 = vmul.f32 %v2000, %v2009
        %v2015 = vmul.f32 %v2001, %v2009
        %v2016 = vmul.f32 %v2002, %v2009
        %v2017 = vmul.f32 %v2003, %v2009
        %v2018 = vmul.f32 %v2004, %v2009
        %v2020 = vlaneseq
        %v2021 = vshrl.u32 %v2020, 7
        %v2022 = vsub.s32 0, %v2021
        %v2023 = vrot.slane %v1900, %v2022
        %v2025 = vadd.f32 %v2011, %v2023
        %v2026 = vadd.f32 %v2012, %v2023
        %v2027 = vadd.f32 %v2013, %v2023
        %v2028 = vadd.f32 %v2014, %v2023
        %v2029 = vadd.f32 %v2015, %v2023
        %v2030 = vadd.f32 %v2016, %v2023
        %v2031 = vadd.f32 %v2017, %v2023
        %v2032 = vadd.f32 %v2018, %v2023
        %v2033 = vsel %vm1066, 0.0, %v2032
        %v2034 = vsel %vm1067, 0.0, %v2025
        %v2035 = vsel %vm1068, 0.0, %v2026
        %v2036 = vsel %vm1069, 0.0, %v2027
        %v2037 = vsel %vm1070, 0.0, %v2028
        %v2038 = vsel %vm1071, 0.0, %v2029
        %v2039 = vsel %vm1072, 0.0, %v2030
        %v2040 = vsel %vm1073, 0.0, %v2031
        %v2041 = vsub.f32 %v2025, %v2033
        %v2042 = vsub.f32 %v2026, %v2034
        %v2043 = vsub.f32 %v2027, %v2035
        %v2044 = vsub.f32 %v2028, %v2036
        %v2045 = vsub.f32 %v2029, %v2037
        %v2046 = vsub.f32 %v2030, %v2038
        %v2047 = vsub.f32 %v2031, %v2039
        %v2048 = vsub.f32 %v2032, %v2040
        %v2049 = vld [vmem:[%s16] sm:$0x1]
        %v2051 = vlaneseq
        %v2052 = vshrl.u32 %v2051, 7
        %v2053 = vsub.s32 0, %v2052
        %v2054 = vrot.slane %v2049, %v2053
        %v2056 = vmul.f32 %v2041, %v2054
        %v2057 = vmul.f32 %v2042, %v2054
        %v2058 = vmul.f32 %v2043, %v2054
        %v2059 = vmul.f32 %v2044, %v2054
        %v2060 = vmul.f32 %v2045, %v2054
        %v2061 = vmul.f32 %v2046, %v2054
        %v2062 = vmul.f32 %v2047, %v2054
        %v2063 = vmul.f32 %v2048, %v2054
        %v2064 = vadd.f32 %v2033, %v2056
        %v2065 = vadd.f32 %v2034, %v2057
        %v2066 = vadd.f32 %v2035, %v2058
        %v2067 = vadd.f32 %v2036, %v2059
        %v2068 = vadd.f32 %v2037, %v2060
        %v2069 = vadd.f32 %v2038, %v2061
        %v2070 = vadd.f32 %v2039, %v2062
        %v2071 = vadd.f32 %v2040, %v2063
        %v2072 = vld [vmem:[%s17] sm:$0x1]
        %v2074 = vlaneseq
        %v2075 = vshrl.u32 %v2074, 7
        %v2076 = vsub.s32 0, %v2075
        %v2077 = vrot.slane %v2072, %v2076
        %v2079 = vmul.f32 %v2041, %v2077
        %v2080 = vmul.f32 %v2042, %v2077
        %v2081 = vmul.f32 %v2043, %v2077
        %v2082 = vmul.f32 %v2044, %v2077
        %v2083 = vmul.f32 %v2045, %v2077
        %v2084 = vmul.f32 %v2046, %v2077
        %v2085 = vmul.f32 %v2047, %v2077
        %v2086 = vmul.f32 %v2048, %v2077
        %v2087 = vadd.f32 %v2033, %v2079
        %v2088 = vadd.f32 %v2034, %v2080
        %v2089 = vadd.f32 %v2035, %v2081
        %v2090 = vadd.f32 %v2036, %v2082
        %v2091 = vadd.f32 %v2037, %v2083
        %v2092 = vadd.f32 %v2038, %v2084
        %v2093 = vadd.f32 %v2039, %v2085
        %v2094 = vadd.f32 %v2040, %v2086
        %v2095 = vld [vmem:[%s18] sm:$0xf]
        %v2096 = vld [vmem:[%s18 + $0x4] sm:$0xf]
        %v2097 = vld [vmem:[%s18 + $0x8] sm:$0xf]
        %v2098 = vld [vmem:[%s18 + $0xc] sm:$0xf]
        %v2099 = vpack.c.bf16 %v2065, %v2064
        %v2100 = vpack.c.bf16 %v2067, %v2066
        %v2101 = vpack.c.bf16 %v2069, %v2068
        %v2102 = vpack.c.bf16 %v2071, %v2070
        %v2107 = vunpack.c.l.b16 %v2095
        %v2108 = vunpack.c.l.b16 %v2096
        %v2109 = vunpack.c.l.b16 %v2097
        %v2110 = vunpack.c.l.b16 %v2098
        %v2111 = vpack.c.b16 %v2108, %v2107
        %v2112 = vpack.c.b16 %v2110, %v2109
        %v2116 = vsel %vm790, %v2099, 0
        %v2119 = vsel %vm790, %v2100, 0
        %v2122 = vsel %vm790, %v2101, 0
        %v2125 = vsel %vm790, %v2102, 0
        %2127 = vmatprep.subr.bf16.mxu0 0
        %2128 = vmatpush1.bf16.msra.mxu0 %v2111
        %2129 = vmatprep.subr.bf16.mxu0 0
        %2130 = vmatpush1.bf16.msra.mxu0 %v2112
        %2131 = vmatprep.subr.bf16.mxu0 0
        %2132 = vmatpush1.bf16.msra.mxu0 0
        %2133 = vmatprep.subr.bf16.mxu0 0
        %2134 = vmatpush1.bf16.msra.mxu0 0
        %2135 = vmatprep.subr.bf16.mxu0 0
        %2136 = vmatpush1.bf16.msra.mxu0 0
        %2137 = vmatprep.subr.bf16.mxu0 0
        %2138 = vmatpush1.bf16.msra.mxu0 0
        %2139 = vmatprep.subr.bf16.mxu0 0
        %2140 = vmatpush1.bf16.msra.mxu0 0
        %2141 = vmatprep.subr.bf16.mxu0 0
        %2142 = vmatpush1.bf16.msra.mxu0 0
        %2143 = vmatprep.subr.bf16.mxu0 0
        %2144 = vmatpush1.bf16.msra.mxu0 0
        %2145 = vmatprep.subr.bf16.mxu0 0
        %2146 = vmatpush1.bf16.msra.mxu0 0
        %2147 = vmatprep.subr.bf16.mxu0 0
        %2148 = vmatpush1.bf16.msra.mxu0 0
        %2149 = vmatprep.subr.bf16.mxu0 0
        %2150 = vmatpush1.bf16.msra.mxu0 0
        %2151 = vmatprep.subr.bf16.mxu0 0
        %2152 = vmatpush1.bf16.msra.mxu0 0
        %2153 = vmatprep.subr.bf16.mxu0 0
        %2154 = vmatpush1.bf16.msra.mxu0 0
        %2155 = vmatprep.subr.bf16.mxu0 0
        %2156 = vmatpush1.bf16.msra.mxu0 0
        %2157 = vmatprep.subr.bf16.mxu0 0
        %2158 = vmatpush1.bf16.msra.mxu0 0
        %2159 = vmatprep.mubr.bf16.mxu0 0
        %2160 = vmatmul.mubr.bf16.gmra.mrb[0].mxu0 %v2116
        %v2161 = vpop.f32.mrb[0].mxu0
        %v2162 = vadd.f32 0.0, %v2161
        %v2163 = vpop.f32.mrb[0].mxu0
        %v2164 = vpop.f32.mrb[0].mxu0
        %v2165 = vadd.f32 0.0, %v2164
        %v2166 = vpop.f32.mrb[0].mxu0
        %2167 = vmatprep.mubr.bf16.mxu0 0
        %2168 = vmatmul.mubr.bf16.gmra.mrb[0].mxu0 %v2119
        %v2169 = vpop.f32.mrb[0].mxu0
        %v2170 = vadd.f32 0.0, %v2169
        %v2171 = vpop.f32.mrb[0].mxu0
        %v2172 = vpop.f32.mrb[0].mxu0
        %v2173 = vadd.f32 0.0, %v2172
        %v2174 = vpop.f32.mrb[0].mxu0
        %2175 = vmatprep.mubr.bf16.mxu0 0
        %2176 = vmatmul.mubr.bf16.gmra.mrb[0].mxu0 %v2122
        %v2177 = vpop.f32.mrb[0].mxu0
        %v2178 = vadd.f32 0.0, %v2177
        %v2179 = vpop.f32.mrb[0].mxu0
        %v2180 = vpop.f32.mrb[0].mxu0
        %v2181 = vadd.f32 0.0, %v2180
        %v2182 = vpop.f32.mrb[0].mxu0
        %2183 = vmatprep.mubr.bf16.mxu0 0
        %2184 = vmatmul.mubr.bf16.gmra.mrb[0].mxu0 %v2125
        %v2185 = vpop.f32.mrb[0].mxu0
        %v2186 = vadd.f32 0.0, %v2185
        %v2187 = vpop.f32.mrb[0].mxu0
        %v2188 = vpop.f32.mrb[0].mxu0
        %v2189 = vadd.f32 0.0, %v2188
        %v2190 = vpop.f32.mrb[0].mxu0
        %2191 = vdwg.mxu0
        %v2192 = vmax.f32 %v2162, 0.0
        %v2193 = vmax.f32 %v2165, 0.0
        %v2194 = vmax.f32 %v2170, 0.0
        %v2195 = vmax.f32 %v2173, 0.0
        %v2196 = vmax.f32 %v2178, 0.0
        %v2197 = vmax.f32 %v2181, 0.0
        %v2198 = vmax.f32 %v2186, 0.0
        %v2199 = vmax.f32 %v2189, 0.0
        %v2200 = vmul.f32 %v2192, %v2192
        %v2201 = vmul.f32 %v2193, %v2193
        %v2202 = vmul.f32 %v2194, %v2194
        %v2203 = vmul.f32 %v2195, %v2195
        %v2204 = vmul.f32 %v2196, %v2196
        %v2205 = vmul.f32 %v2197, %v2197
        %v2206 = vmul.f32 %v2198, %v2198
        %v2207 = vmul.f32 %v2199, %v2199
        %v2208 = vld [vmem:[%s19] sm:$0xf]
        %v2209 = vld [vmem:[%s19 + $0x4] sm:$0xf]
        %v2210 = vld [vmem:[%s19 + $0x8] sm:$0xf]
        %v2211 = vld [vmem:[%s19 + $0xc] sm:$0xf]
        %v2212 = vld [vmem:[%s19 + $0x10] sm:$0xf]
        %v2213 = vld [vmem:[%s19 + $0x14] sm:$0xf]
        %v2214 = vld [vmem:[%s19 + $0x18] sm:$0xf]
        %v2215 = vld [vmem:[%s19 + $0x1c] sm:$0xf]
        %v2216 = vld [vmem:[%s19 + $0x20] sm:$0xf]
        %v2217 = vld [vmem:[%s19 + $0x24] sm:$0xf]
        %v2218 = vld [vmem:[%s19 + $0x28] sm:$0xf]
        %v2219 = vld [vmem:[%s19 + $0x2c] sm:$0xf]
        %v2220 = vld [vmem:[%s19 + $0x30] sm:$0xf]
        %v2221 = vld [vmem:[%s19 + $0x34] sm:$0xf]
        %v2222 = vld [vmem:[%s19 + $0x38] sm:$0xf]
        %v2223 = vld [vmem:[%s19 + $0x3c] sm:$0xf]
        %v2224 = vpack.c.bf16 %v2201, %v2200
        %v2225 = vpack.c.bf16 %v2203, %v2202
        %v2226 = vpack.c.bf16 %v2205, %v2204
        %v2227 = vpack.c.bf16 %v2207, %v2206
        %v2244 = vunpack.c.l.b16 %v2208
        %v2245 = vunpack.c.l.b16 %v2209
        %v2246 = vunpack.c.l.b16 %v2210
        %v2247 = vunpack.c.l.b16 %v2211
        %v2248 = vunpack.c.l.b16 %v2212
        %v2249 = vunpack.c.l.b16 %v2213
        %v2250 = vunpack.c.l.b16 %v2214
        %v2251 = vunpack.c.l.b16 %v2215
        %v2252 = vunpack.c.l.b16 %v2216
        %v2253 = vunpack.c.l.b16 %v2217
        %v2254 = vunpack.c.l.b16 %v2218
        %v2255 = vunpack.c.l.b16 %v2219
        %v2256 = vunpack.c.l.b16 %v2220
        %v2257 = vunpack.c.l.b16 %v2221
        %v2258 = vunpack.c.l.b16 %v2222
        %v2259 = vunpack.c.l.b16 %v2223
        %v2260 = vpack.c.b16 %v2245, %v2244
        %v2261 = vpack.c.b16 %v2247, %v2246
        %v2262 = vpack.c.b16 %v2249, %v2248
        %v2263 = vpack.c.b16 %v2251, %v2250
        %v2264 = vpack.c.b16 %v2253, %v2252
        %v2265 = vpack.c.b16 %v2255, %v2254
        %v2266 = vpack.c.b16 %v2257, %v2256
        %v2267 = vpack.c.b16 %v2259, %v2258
        %2276 = vmatprep.subr.bf16.mxu0 0
        %2277 = vmatpush1.bf16.msra.mxu0 %v2260
        %2278 = vmatprep.subr.bf16.mxu0 0
        %2279 = vmatpush1.bf16.msra.mxu0 %v2261
        %2280 = vmatprep.subr.bf16.mxu0 0
        %2281 = vmatpush1.bf16.msra.mxu0 %v2262
        %2282 = vmatprep.subr.bf16.mxu0 0
        %2283 = vmatpush1.bf16.msra.mxu0 %v2263
        %2284 = vmatprep.subr.bf16.mxu0 0
        %2285 = vmatpush1.bf16.msra.mxu0 %v2264
        %2286 = vmatprep.subr.bf16.mxu0 0
        %2287 = vmatpush1.bf16.msra.mxu0 %v2265
        %2288 = vmatprep.subr.bf16.mxu0 0
        %2289 = vmatpush1.bf16.msra.mxu0 %v2266
        %2290 = vmatprep.subr.bf16.mxu0 0
        %2291 = vmatpush1.bf16.msra.mxu0 %v2267
        %2292 = vmatprep.subr.bf16.mxu0 0
        %2293 = vmatpush1.bf16.msra.mxu0 0
        %2294 = vmatprep.subr.bf16.mxu0 0
        %2295 = vmatpush1.bf16.msra.mxu0 0
        %2296 = vmatprep.subr.bf16.mxu0 0
        %2297 = vmatpush1.bf16.msra.mxu0 0
        %2298 = vmatprep.subr.bf16.mxu0 0
        %2299 = vmatpush1.bf16.msra.mxu0 0
        %2300 = vmatprep.subr.bf16.mxu0 0
        %2301 = vmatpush1.bf16.msra.mxu0 0
        %2302 = vmatprep.subr.bf16.mxu0 0
        %2303 = vmatpush1.bf16.msra.mxu0 0
        %2304 = vmatprep.subr.bf16.mxu0 0
        %2305 = vmatpush1.bf16.msra.mxu0 0
        %2306 = vmatprep.subr.bf16.mxu0 0
        %2307 = vmatpush1.bf16.msra.mxu0 0
        %2308 = vmatprep.mubr.bf16.mxu0 0
        %2309 = vmatmul.mubr.bf16.gmra.mrb[0].mxu0 %v2224
        %v2310 = vpop.f32.mrb[0].mxu0
        %v2311 = vadd.f32 0.0, %v2310
        %v2312 = vpop.f32.mrb[0].mxu0
        %v2313 = vpop.f32.mrb[0].mxu0
        %v2314 = vadd.f32 0.0, %v2313
        %v2315 = vpop.f32.mrb[0].mxu0
        %2316 = vmatprep.mubr.bf16.mxu0 0
        %2317 = vmatmul.mubr.bf16.gmra.mrb[0].mxu0 %v2225
        %v2318 = vpop.f32.mrb[0].mxu0
        %v2319 = vadd.f32 0.0, %v2318
        %v2320 = vpop.f32.mrb[0].mxu0
        %v2321 = vpop.f32.mrb[0].mxu0
        %v2322 = vadd.f32 0.0, %v2321
        %v2323 = vpop.f32.mrb[0].mxu0
        %2324 = vmatprep.mubr.bf16.mxu0 0
        %2325 = vmatmul.mubr.bf16.gmra.mrb[0].mxu0 %v2226
        %v2326 = vpop.f32.mrb[0].mxu0
        %v2327 = vadd.f32 0.0, %v2326
        %v2328 = vpop.f32.mrb[0].mxu0
        %v2329 = vpop.f32.mrb[0].mxu0
        %v2330 = vadd.f32 0.0, %v2329
        %v2331 = vpop.f32.mrb[0].mxu0
        %2332 = vmatprep.mubr.bf16.mxu0 0
        %2333 = vmatmul.mubr.bf16.gmra.mrb[0].mxu0 %v2227
        %v2334 = vpop.f32.mrb[0].mxu0
        %v2335 = vadd.f32 0.0, %v2334
        %v2336 = vpop.f32.mrb[0].mxu0
        %v2337 = vpop.f32.mrb[0].mxu0
        %v2338 = vadd.f32 0.0, %v2337
        %v2339 = vpop.f32.mrb[0].mxu0
        %2340 = vdwg.mxu0
        %v2341 = vld [vmem:[%s20] sm:$0xf]
        %v2342 = vld [vmem:[%s20 + $0x4] sm:$0xf]
        %v2343 = vld [vmem:[%s20 + $0x8] sm:$0xf]
        %v2344 = vld [vmem:[%s20 + $0xc] sm:$0xf]
        %v2345 = vpack.c.bf16 %v2088, %v2087
        %v2346 = vpack.c.bf16 %v2090, %v2089
        %v2347 = vpack.c.bf16 %v2092, %v2091
        %v2348 = vpack.c.bf16 %v2094, %v2093
        %v2353 = vunpack.c.l.b16 %v2341
        %v2354 = vunpack.c.l.b16 %v2342
        %v2355 = vunpack.c.l.b16 %v2343
        %v2356 = vunpack.c.l.b16 %v2344
        %v2357 = vpack.c.b16 %v2354, %v2353
        %v2358 = vpack.c.b16 %v2356, %v2355
        %v2362 = vsel %vm790, %v2345, 0
        %v2365 = vsel %vm790, %v2346, 0
        %v2368 = vsel %vm790, %v2347, 0
        %v2371 = vsel %vm790, %v2348, 0
        %2373 = vmatprep.subr.bf16.mxu0 0
        %2374 = vmatpush1.bf16.msra.mxu0 %v2357
        %2375 = vmatprep.subr.bf16.mxu0 0
        %2376 = vmatpush1.bf16.msra.mxu0 %v2358
        %2377 = vmatprep.subr.bf16.mxu0 0
        %2378 = vmatpush1.bf16.msra.mxu0 0
        %2379 = vmatprep.subr.bf16.mxu0 0
        %2380 = vmatpush1.bf16.msra.mxu0 0
        %2381 = vmatprep.subr.bf16.mxu0 0
        %2382 = vmatpush1.bf16.msra.mxu0 0
        %2383 = vmatprep.subr.bf16.mxu0 0
        %2384 = vmatpush1.bf16.msra.mxu0 0
        %2385 = vmatprep.subr.bf16.mxu0 0
        %2386 = vmatpush1.bf16.msra.mxu0 0
        %2387 = vmatprep.subr.bf16.mxu0 0
        %2388 = vmatpush1.bf16.msra.mxu0 0
        %2389 = vmatprep.subr.bf16.mxu0 0
        %2390 = vmatpush1.bf16.msra.mxu0 0
        %2391 = vmatprep.subr.bf16.mxu0 0
        %2392 = vmatpush1.bf16.msra.mxu0 0
        %2393 = vmatprep.subr.bf16.mxu0 0
        %2394 = vmatpush1.bf16.msra.mxu0 0
        %2395 = vmatprep.subr.bf16.mxu0 0
        %2396 = vmatpush1.bf16.msra.mxu0 0
        %2397 = vmatprep.subr.bf16.mxu0 0
        %2398 = vmatpush1.bf16.msra.mxu0 0
        %2399 = vmatprep.subr.bf16.mxu0 0
        %2400 = vmatpush1.bf16.msra.mxu0 0
        %2401 = vmatprep.subr.bf16.mxu0 0
        %2402 = vmatpush1.bf16.msra.mxu0 0
        %2403 = vmatprep.subr.bf16.mxu0 0
        %2404 = vmatpush1.bf16.msra.mxu0 0
        %2405 = vmatprep.mubr.bf16.mxu0 0
        %2406 = vmatmul.mubr.bf16.gmra.mrb[0].mxu0 %v2362
        %v2407 = vpop.f32.mrb[0].mxu0
        %v2408 = vadd.f32 0.0, %v2407
        %v2409 = vpop.f32.mrb[0].mxu0
        %v2410 = vpop.f32.mrb[0].mxu0
        %v2411 = vadd.f32 0.0, %v2410
        %v2412 = vpop.f32.mrb[0].mxu0
        %2413 = vmatprep.mubr.bf16.mxu0 0
        %2414 = vmatmul.mubr.bf16.gmra.mrb[0].mxu0 %v2365
        %v2415 = vpop.f32.mrb[0].mxu0
        %v2416 = vadd.f32 0.0, %v2415
        %v2417 = vpop.f32.mrb[0].mxu0
        %v2418 = vpop.f32.mrb[0].mxu0
        %v2419 = vadd.f32 0.0, %v2418
        %v2420 = vpop.f32.mrb[0].mxu0
        %2421 = vmatprep.mubr.bf16.mxu0 0
        %2422 = vmatmul.mubr.bf16.gmra.mrb[0].mxu0 %v2368
        %v2423 = vpop.f32.mrb[0].mxu0
        %v2424 = vadd.f32 0.0, %v2423
        %v2425 = vpop.f32.mrb[0].mxu0
        %v2426 = vpop.f32.mrb[0].mxu0
        %v2427 = vadd.f32 0.0, %v2426
        %v2428 = vpop.f32.mrb[0].mxu0
        %2429 = vmatprep.mubr.bf16.mxu0 0
        %2430 = vmatmul.mubr.bf16.gmra.mrb[0].mxu0 %v2371
        %v2431 = vpop.f32.mrb[0].mxu0
        %v2432 = vadd.f32 0.0, %v2431
        %v2433 = vpop.f32.mrb[0].mxu0
        %v2434 = vpop.f32.mrb[0].mxu0
        %v2435 = vadd.f32 0.0, %v2434
        %v2436 = vpop.f32.mrb[0].mxu0
        %2437 = vdwg.mxu0
        %v2438 = vxor.u32 %v2408, 2147483648
        %v2439 = vxor.u32 %v2411, 2147483648
        %v2440 = vxor.u32 %v2416, 2147483648
        %v2441 = vxor.u32 %v2419, 2147483648
        %v2442 = vxor.u32 %v2424, 2147483648
        %v2443 = vxor.u32 %v2427, 2147483648
        %v2444 = vxor.u32 %v2432, 2147483648
        %v2445 = vxor.u32 %v2435, 2147483648
        %v2446 = vmul.f32 %v2438, 1.442695
        %v2447 = vpow.pop %v2446
        %v2448 = vmul.f32 %v2439, 1.442695
        %v2449 = vpow.pop %v2448
        %v2450 = vmul.f32 %v2440, 1.442695
        %v2451 = vpow.pop %v2450
        %v2452 = vmul.f32 %v2441, 1.442695
        %v2453 = vpow.pop %v2452
        %v2454 = vmul.f32 %v2442, 1.442695
        %v2455 = vpow.pop %v2454
        %v2456 = vmul.f32 %v2443, 1.442695
        %v2457 = vpow.pop %v2456
        %v2458 = vmul.f32 %v2444, 1.442695
        %v2459 = vpow.pop %v2458
        %v2460 = vmul.f32 %v2445, 1.442695
        %v2461 = vpow.pop %v2460
        %v2462 = vadd.f32 %v2447, 1.0
        %v2463 = vadd.f32 %v2449, 1.0
        %v2464 = vadd.f32 %v2451, 1.0
        %v2465 = vadd.f32 %v2453, 1.0
        %v2466 = vadd.f32 %v2455, 1.0
        %v2467 = vadd.f32 %v2457, 1.0
        %v2468 = vadd.f32 %v2459, 1.0
        %v2469 = vadd.f32 %v2461, 1.0
        %v2470 = vrcp.pop %v2462
        %v2471 = vmul.f32 1.0, %v2470
        %v2472 = vrcp.pop %v2463
        %v2473 = vmul.f32 1.0, %v2472
        %v2474 = vrcp.pop %v2464
        %v2475 = vmul.f32 1.0, %v2474
        %v2476 = vrcp.pop %v2465
        %v2477 = vmul.f32 1.0, %v2476
        %v2478 = vrcp.pop %v2466
        %v2479 = vmul.f32 1.0, %v2478
        %v2480 = vrcp.pop %v2467
        %v2481 = vmul.f32 1.0, %v2480
        %v2482 = vrcp.pop %v2468
        %v2483 = vmul.f32 1.0, %v2482
        %v2484 = vrcp.pop %v2469
        %v2485 = vmul.f32 1.0, %v2484
        %v2486 = vmul.f32 %v2471, %v2311
        %v2487 = vmul.f32 %v2473, %v2314
        %v2488 = vmul.f32 %v2475, %v2319
        %v2489 = vmul.f32 %v2477, %v2322
        %v2490 = vmul.f32 %v2479, %v2327
        %v2491 = vmul.f32 %v2481, %v2330
        %v2492 = vmul.f32 %v2483, %v2335
        %v2493 = vmul.f32 %v2485, %v2338
        %v2494 = vadd.f32 %v1891, %v2486
        %v2495 = vadd.f32 %v1892, %v2487
        %v2496 = vadd.f32 %v1893, %v2488
        %v2497 = vadd.f32 %v1894, %v2489
        %v2498 = vadd.f32 %v1895, %v2490
        %v2499 = vadd.f32 %v1896, %v2491
        %v2500 = vadd.f32 %v1897, %v2492
        %v2501 = vadd.f32 %v1898, %v2493
        %2502 = vst.msk [vmem:[%s761] sm:$0xff] %vm790, %v2494
        %2503 = vst.msk [vmem:[%s761 + $0x8] sm:$0xff] %vm790, %v2495
        %2504 = vst.msk [vmem:[%s761 + $0x10] sm:$0xff] %vm790, %v2496
        %2505 = vst.msk [vmem:[%s761 + $0x18] sm:$0xff] %vm790, %v2497
        %2506 = vst.msk [vmem:[%s761 + $0x20] sm:$0xff] %vm790, %v2498
        %2507 = vst.msk [vmem:[%s761 + $0x28] sm:$0xff] %vm790, %v2499
        %2508 = vst.msk [vmem:[%s761 + $0x30] sm:$0xff] %vm790, %v2500
        %2509 = vst.msk [vmem:[%s761 + $0x38] sm:$0xff] %vm790, %v2501
        %s2510 = sand.u32 %s496, 1
        %s2511 = scalar_lea.sflag [#allocation6], %s2510
        %s2512 = sand.u32 %s496, 1
        %s2513 = smul.addr %s2512, 64
        %s2514 = scalar_lea.vmem [#allocation18], %s2513
        // Predicated region
        $region137: #{tpu_custom_call.1} parent=103 // pred_check
          %p2515 = pneg %p506
        $region138: #{tpu_custom_call.1} parent=103 // pred_check_branch
          %2517 = sbr.rel (%p2515) target = $region140
        $region139: #{tpu_custom_call.1} parent=103 // pred_region
          %s2519 = ssub.s32 1024, 1024
          %2520 = vsyncadd %s2511, %s2519
          %s2521 = smul.addr %s42, 128
          %s2522 = scalar_lea.hbm %s21, %s2521
          %s2523 = sshll.u32 %s2514, 4
          %s2524 = int_to_ptr.vmem [resolvable:$true] %s2523
          %2529 = dma.vmem_to_hbm [thread:$0]  %s2524, 1024, %s2522, %s2511, 128, 256, 8
        $region140: #{tpu_custom_call.1} parent=103 // pred_fallthru
          _
      $region104: #{tpu_custom_call.1} parent=5 // pred_fallthru
        _
      %p2530 = scmp.le.s32.totalorder 2, %s37
      // Predicated region
      $region141: #{tpu_custom_call.1} parent=5 // pred_check
        %p2531 = pneg %p2530
      $region142: #{tpu_custom_call.1} parent=5 // pred_check_branch
        %2533 = sbr.rel (%p2531) target = $region144
      $region143: #{tpu_custom_call.1} parent=5 // pred_region
        %s2534 = ssub.s32 %s37, 2
        // Predicated region
        $region145: #{tpu_custom_call.1} parent=143 // pred_check
          %p2535 = pneg %p512
        $region146: #{tpu_custom_call.1} parent=143 // pred_check_branch
          %2537 = sbr.rel (%p2535) target = $region148
        $region147: #{tpu_custom_call.1} parent=143 // pred_region
          %s2538 = sand.u32 %s497, 1
          %s2539 = scalar_lea.sflag [#allocation6], %s2538
          %s2540 = sand.u32 %s497, 1
          %s2541 = smul.addr %s2540, 64
          %s2542 = scalar_lea.vmem [#allocation18], %s2541
          %2543 = dma.done %s2539, 1024
        $region148: #{tpu_custom_call.1} parent=143 // pred_fallthru
          _
      $region144: #{tpu_custom_call.1} parent=5 // pred_fallthru
        _
    $region6: #{tpu_custom_call.1} parent=1 // loop_footer
      %s41 = sadd.s32 1, %s37
    $region7: #{tpu_custom_call.1} parent=1 // loop_footer_branch
      %36 = sbr.rel target = $region3
    $region8: #{tpu_custom_call.1} parent=1 // loop_exit
      _
    %2544 = vsyncpa [#allocation5], 1
    %s2545 = scalar_lea.sflag [#allocation5], 1
    %2546 = vsyncpa %s2545, 1
    %2547 = vsyncpa [#allocation8], 1
    %2548 = vsyncpa [#allocation11], 1
    %2549 = vsyncpa [#allocation14], 1
    %2550 = vsyncpa [#allocation17], 1
    %2551 = vsyncpa [#allocation6], 1
    %s2552 = scalar_lea.sflag [#allocation6], 1
    %2553 = vsyncpa %s2552, 1

</llo_original>
